<compile_context>
chip_gen: v6e
topology: v6e:2x2x1
jax: 0.10.0
libtpu: 0.0.40
codegen_flags: <defaults>
</compile_context>

<pallas_src>
import jax
import jax.numpy as jnp
import numpy as np
from jax import lax
from jax.experimental import pallas as pl
from jax.experimental.pallas import tpu as pltpu

LN_EPS = 1e-5   # nn.LayerNorm default eps
EPS = 1e-6      # Guidance l1norm / l2norm eps
GATE_T = 0.1


def _round_up(x, m):
    return (x + m - 1) // m * m


def _cdiv(a, b):
    return (a + b - 1) // b


def _layernorm(x, g, b):
    mu = jnp.mean(x, axis=-1, keepdims=True)
    var = jnp.mean((x - mu) ** 2, axis=-1, keepdims=True)
    return (x - mu) * lax.rsqrt(var + LN_EPS) * g + b


def _make_kernel(L, Din, H, mm_dtype, approx_recip):
    S = L - 1

    def kernel(*refs):
        x_refs = refs[:L]
        (last_ref,
         hw_ref, hb_ref, hg_ref, hbe_ref,
         aw_ref,
         w1_ref, b1_ref, w2_ref, b2_ref, mg_ref, mbe_ref,
         ow_ref, ob_ref, og_ref, obe_ref,
         ab_ref, gate_ref,
         o_ref) = refs[L:]

        def recip(x):
            return pl.reciprocal(x, approx=True) if approx_recip else 1.0 / x

        # --- hor_block: L independent (tm,Din)x(Din,H) MXU matmuls; LayerNorm
        #     applied directly on the in-register dot result (no VMEM staging).
        feats = []
        for l in range(L):
            y = (jnp.dot(x_refs[l][...].astype(mm_dtype), hw_ref[l],
                         preferred_element_type=jnp.float32)
                 + hb_ref[l:l + 1, :])
            feats.append(_layernorm(y, hg_ref[l:l + 1, :], hbe_ref[l:l + 1, :]))
        shallow, deep = feats[:-1], feats[-1]          # (L-1) x (tm,H), (tm,H)

        # --- Guidance.get_redundancy: l2norm + cosine sims (symmetric; the
        #     diagonal reuses sumsq from the normalization step).
        sumsq = [jnp.sum(s * s, axis=-1, keepdims=True) for s in shallow]
        inv_l2 = [recip(jnp.sqrt(q) + EPS) for q in sumsq]
        norm_sh = [s * r for s, r in zip(shallow, inv_l2)]
        red = [q * r * r for q, r in zip(sumsq, inv_l2)]     # diag (>= 0)
        for i in range(S):
            for j in range(i + 1, S):
                sim = jnp.maximum(
                    jnp.sum(norm_sh[i] * norm_sh[j], axis=-1, keepdims=True), 0.0)
                red[i] = red[i] + sim
                red[j] = red[j] + sim

        # --- cross attention: relu(fc_attn(shallow * deep)) / redundancy,
        #     l1-normalized over layers (values already >= 0, abs dropped).
        dw = deep * aw_ref[...]                               # hoisted (tm,H)
        ab = jnp.full((1, 1), ab_ref[0], jnp.float32)         # scalar bias (SMEM)
        ca = [jnp.maximum(jnp.sum(s * dw, axis=-1, keepdims=True) + ab, 0.0)
              * recip(red[i] + EPS)
              for i, s in enumerate(shallow)]
        denom = ca[0]
        for c in ca[1:]:
            denom = denom + c
        inv_denom = recip(denom + EPS)
        agg = (ca[0] * inv_denom) * shallow[0]
        for i in range(1, S):
            agg = agg + (ca[i] * inv_denom) * shallow[i]      # (tm, H)

        # --- Guidance.mlp + residual with guide (deep) features ---
        h1 = jnp.maximum(
            jnp.dot(agg.astype(mm_dtype), w1_ref[...],
                    preferred_element_type=jnp.float32) + b1_ref[...], 0.0)
        h2 = (jnp.dot(h1.astype(mm_dtype), w2_ref[...],
                      preferred_element_type=jnp.float32) + b2_ref[...])
        guide = _layernorm(h2, mg_ref[...], mbe_ref[...]) + deep

        # --- fc_out + norm_out + gated residual with last_feature ---
        go = (jnp.dot(jnp.maximum(guide, 0.0).astype(mm_dtype), ow_ref[...],
                      preferred_element_type=jnp.float32) + ob_ref[...])
        out = _layernorm(go, og_ref[...], obe_ref[...])
        gate = jnp.tanh(jnp.full((1, 1), gate_ref[0], jnp.float32) / GATE_T)
        o_ref[...] = out + gate * last_ref[...]

    return kernel


def _vmem_cap_bytes():
    cap = 64 * 1024 * 1024            # safe on all generations (v7x minimum)
    try:
        info = pltpu.get_tpu_info()
        c = getattr(info, "vmem_capacity_bytes", None)
        if isinstance(c, int) and c > 0:
            cap = c                   # 128 MiB on v5e/v6e, 64 MiB on v7x
    except Exception:
        pass
    return cap


def _choose_tm(N, tm):
    tm = max(8, min(int(tm), _round_up(N, 8)))
    # Keep at least ~4 grid steps when there is enough work so the single
    # "parallel" grid axis can shard across v7x's two TensorCores.
    if N >= 4 * 128:
        tm = min(tm, max(128, _round_up(_cdiv(N, 4), 8)))
    return _round_up(tm, 8)


def sherl_block_pallas(all_features_list, last_feature, p, *,
                       tm=256, matmul_dtype=jnp.bfloat16):
    L = len(all_features_list)
    bs, n_inst, Din = all_features_list[0].shape
    H = p["hor_w"].shape[-1]
    N = bs * n_inst

    tm = _choose_tm(N, tm)             # sweep 256-512 on v5e/v6e, ~256 on v7x
    Np = _round_up(N, tm)
    pad = Np - N

    xs = [f.reshape(N, Din).astype(jnp.float32) for f in all_features_list]
    last2d = last_feature.reshape(N, Din).astype(jnp.float32)
    if pad:
        xs = [jnp.pad(x, ((0, pad), (0, 0))) for x in xs]
        last2d = jnp.pad(last2d, ((0, pad), (0, 0)))

    mm = matmul_dtype
    approx_recip = (jnp.dtype(mm) != jnp.dtype(jnp.float32))

    # Matmul weights in matmul_dtype; everything elementwise stays f32.
    hw = p["hor_w"].astype(mm)                       # (L, Din, H) stacked
    hb = p["hor_b"].reshape(L, H).astype(jnp.float32)
    hg = p["hor_g"].reshape(L, H).astype(jnp.float32)
    hbe = p["hor_be"].reshape(L, H).astype(jnp.float32)
    w1 = p["mlp_w1"].astype(mm)
    w2 = p["mlp_w2"].astype(mm)
    ow = p["out_w"].astype(mm)
    attn_b = p["attn_b"].reshape(1).astype(jnp.float32)   # SMEM scalar
    gate = p["gate"].reshape(1).astype(jnp.float32)        # SMEM scalar

    row_spec = pl.BlockSpec((tm, Din), lambda i: (i, 0))
    smem_spec = pl.BlockSpec(memory_space=pltpu.MemorySpace.SMEM)
    grid = (Np // tm,)

    # --- advisory cost estimate (real per-layer matmul work + output write) ---
    mm_sz = jnp.dtype(mm).itemsize
    mm_w_elems = L * Din * H + 2 * H * Din + Din * H
    f32_p_elems = 3 * L * H + H + 4 * H + 6 * Din + 2
    flops = 2 * Np * Din * H * (L + 3) + 6 * Np * H * (L - 1)
    transc = Np * (3 * L + 3)
    bytes_acc = 4 * Np * Din * (L + 2) + mm_sz * mm_w_elems + 4 * f32_p_elems
    cost = pl.CostEstimate(flops=int(flops), transcendentals=int(transc),
                           bytes_accessed=int(bytes_acc))

    vmem_target = _vmem_cap_bytes() * 7 // 8      # leave Mosaic headroom

    operands = (*xs, last2d,
                hw, hb, hg, hbe,
                p["attn_w"].astype(jnp.float32),
                w1, p["mlp_b1"].astype(jnp.float32),
                w2, p["mlp_b2"].astype(jnp.float32),
                p["mlp_g"].astype(jnp.float32), p["mlp_be"].astype(jnp.float32),
                ow, p["out_b"].astype(jnp.float32),
                p["out_g"].astype(jnp.float32), p["out_be"].astype(jnp.float32),
                attn_b, gate)

    w_shapes = [(L, Din, H), (L, H), (L, H), (L, H),          # hor
                (1, H),                                       # attn_w
                (H, Din), (1, Din), (Din, H), (1, H),         # mlp
                (1, H), (1, H),                               # mlp LN
                (H, Din), (1, Din), (1, Din), (1, Din)]       # fc_out / norm_out

    def build_and_call(buffered):
        def whole(shape):
            r = len(shape)
            idx = lambda i, _r=r: (0,) * _r
            if buffered:
                # loop-invariant weights: single VMEM buffer is enough
                return pl.BlockSpec(shape, idx, pipeline_mode=pl.Buffered(1))
            return pl.BlockSpec(shape, idx)

        in_specs = ([row_spec] * (L + 1)
                    + [whole(s) for s in w_shapes]
                    + [smem_spec, smem_spec])

        # VMEM budget: double-buffered row tiles + weights + live intermediates
        weight_bytes = mm_sz * mm_w_elems + 4 * f32_p_elems
        row_io = 2 * (L + 2) * tm * Din * 4
        live = (2 * L + 6) * tm * max(H, Din) * 4
        vmem_est = ((1 if buffered else 2) * weight_bytes + row_io + live
                    + (4 << 20))
        vmem_limit = int(min(vmem_target, max(vmem_est, 16 << 20)))

        return pl.pallas_call(
            _make_kernel(L, Din, H, mm, approx_recip),
            out_shape=jax.ShapeDtypeStruct((Np, Din), jnp.float32),
            grid=grid,
            in_specs=in_specs,
            out_specs=row_spec,
            compiler_params=pltpu.CompilerParams(
                dimension_semantics=("parallel",),
                vmem_limit_bytes=vmem_limit),
            cost_estimate=cost,
        )(*operands)

    try:
        out = build_and_call(True)
    except Exception:
        # TODO(synk): pl.Buffered(1) (single-buffered loop-invariant weights) is
        # not accepted by this jax version; fall back to default double buffering.
        out = build_and_call(False)

    return out[:N].reshape(bs, n_inst, Din)


def sherl_block_reference(all_features_list, last_feature, p):
    """Pure-JAX mirror of the PyTorch forward (for validation)."""
    L = len(all_features_list)
    bs, n_inst, Din = all_features_list[0].shape
    H = p["hor_w"].shape[-1]

    new = []
    for l, f in enumerate(all_features_list):
        y = f @ p["hor_w"][l] + p["hor_b"][l, 0]
        new.append(_layernorm(y, p["hor_g"][l, 0], p["hor_be"][l, 0]))
    shallow = jnp.stack(new[:-1], axis=2).reshape(bs * n_inst, L - 1, H)
    deep = new[-1].reshape(bs * n_inst, 1, H)

    nf = shallow / (jnp.sqrt(jnp.sum(shallow ** 2, -1, keepdims=True)) + EPS)
    sim = nf @ jnp.swapaxes(nf, 1, 2)
    red = jnp.sum(jnp.maximum(sim, 0.0), -1, keepdims=True)
    ca = (shallow * deep) @ p["attn_w"].T + p["attn_b"]
    ca = jnp.maximum(ca, 0.0) / red
    ca = ca / (jnp.sum(jnp.abs(ca), axis=1, keepdims=True) + EPS)
    agg = jnp.sum(ca * shallow, axis=1, keepdims=True)

    h1 = jnp.maximum(agg @ p["mlp_w1"] + p["mlp_b1"], 0.0)
    h2 = h1 @ p["mlp_w2"] + p["mlp_b2"]
    guide = _layernorm(h2, p["mlp_g"][0], p["mlp_be"][0]) + deep
    guide = guide[:, 0].reshape(bs, n_inst, H)

    go = jnp.maximum(guide, 0.0) @ p["out_w"] + p["out_b"]
    out = _layernorm(go, p["out_g"][0], p["out_be"][0])
    gate = jnp.tanh(p["gate"][0, 0] / GATE_T)
    return out + gate * last_feature


def make_params(key, input_dim, hidden_dim, num_layer):
    ks = jax.random.split(key, 16)
    s = 0.1
    p = {
        "hor_w":  s * jax.random.normal(ks[0], (num_layer, input_dim, hidden_dim), jnp.float32),
        "hor_b":  s * jax.random.normal(ks[1], (num_layer, 1, hidden_dim), jnp.float32),
        "hor_g":  1.0 + s * jax.random.normal(ks[2], (num_layer, 1, hidden_dim), jnp.float32),
        "hor_be": s * jax.random.normal(ks[3], (num_layer, 1, hidden_dim), jnp.float32),
        "attn_w": s * jax.random.normal(ks[4], (1, hidden_dim), jnp.float32),
        "attn_b": s * jax.random.normal(ks[5], (1, 1), jnp.float32),
        "mlp_w1": s * jax.random.normal(ks[6], (hidden_dim, input_dim), jnp.float32),
        "mlp_b1": s * jax.random.normal(ks[7], (1, input_dim), jnp.float32),
        "mlp_w2": s * jax.random.normal(ks[8], (input_dim, hidden_dim), jnp.float32),
        "mlp_b2": s * jax.random.normal(ks[9], (1, hidden_dim), jnp.float32),
        "mlp_g":  1.0 + s * jax.random.normal(ks[10], (1, hidden_dim), jnp.float32),
        "mlp_be": s * jax.random.normal(ks[11], (1, hidden_dim), jnp.float32),
        "out_w":  s * jax.random.normal(ks[12], (hidden_dim, input_dim), jnp.float32),
        "out_b":  s * jax.random.normal(ks[13], (1, input_dim), jnp.float32),
        "out_g":  1.0 + s * jax.random.normal(ks[14], (1, input_dim), jnp.float32),
        "out_be": s * jax.random.normal(ks[15], (1, input_dim), jnp.float32),
        "gate":   jnp.zeros((1, 1), jnp.float32),   # nn.Parameter(torch.ones(1) * 0)
    }
    return p


if __name__ == "__main__":
    key = jax.random.PRNGKey(0)
    bs, n_inst = 2, 8
    input_dim, hidden_dim, num_layer = 32, 32, 3

    kx, kl, kp = jax.random.split(key, 3)
    all_features_list = [
        jax.random.normal(jax.random.fold_in(kx, i), (bs, n_inst, input_dim), jnp.float32)
        for i in range(num_layer)
    ]
    last_feature = jax.random.normal(kl, (bs, n_inst, input_dim), jnp.float32)
    params = make_params(kp, input_dim, hidden_dim, num_layer)

    ref = jax.block_until_ready(
        sherl_block_reference(all_features_list, last_feature, params))

    # Strict accuracy mode (f32 matmuls, exact divides) — validates semantics.
    out_f32 = jax.block_until_ready(
        sherl_block_pallas(all_features_list, last_feature, params,
                           tm=256, matmul_dtype=jnp.float32))
    np.testing.assert_allclose(np.asarray(out_f32), np.asarray(ref),
                               rtol=1e-4, atol=1e-4)

    # Default fast path: bf16 MXU operands + f32 accumulation, EUP reciprocals.
    out_bf16 = jax.block_until_ready(
        sherl_block_pallas(all_features_list, last_feature, params, tm=256))
    np.testing.assert_allclose(np.asarray(out_bf16), np.asarray(ref),
                               rtol=3e-2, atol=3e-2)

    print("KERNEL_OK")
</pallas_src>

<mosaic_0001>
module attributes {stable_mosaic.version = 11 : i64} {
  func.func @kernel(%arg0: i32, %arg1: memref<16x32xf32, #tpu.memory_space<vmem>>, %arg2: memref<16x32xf32, #tpu.memory_space<vmem>>, %arg3: memref<16x32xf32, #tpu.memory_space<vmem>>, %arg4: memref<16x32xf32, #tpu.memory_space<vmem>>, %arg5: memref<3x32x32xf32, #tpu.memory_space<vmem>>, %arg6: memref<3x32xf32, #tpu.memory_space<vmem>>, %arg7: memref<3x32xf32, #tpu.memory_space<vmem>>, %arg8: memref<3x32xf32, #tpu.memory_space<vmem>>, %arg9: memref<1x32xf32, #tpu.memory_space<vmem>>, %arg10: memref<32x32xf32, #tpu.memory_space<vmem>>, %arg11: memref<1x32xf32, #tpu.memory_space<vmem>>, %arg12: memref<32x32xf32, #tpu.memory_space<vmem>>, %arg13: memref<1x32xf32, #tpu.memory_space<vmem>>, %arg14: memref<1x32xf32, #tpu.memory_space<vmem>>, %arg15: memref<1x32xf32, #tpu.memory_space<vmem>>, %arg16: memref<32x32xf32, #tpu.memory_space<vmem>>, %arg17: memref<1x32xf32, #tpu.memory_space<vmem>>, %arg18: memref<1x32xf32, #tpu.memory_space<vmem>>, %arg19: memref<1x32xf32, #tpu.memory_space<vmem>>, %arg20: memref<1xf32, #tpu.memory_space<smem>>, %arg21: memref<1xf32, #tpu.memory_space<smem>>, %arg22: memref<16x32xf32, #tpu.memory_space<vmem>>) attributes {dimension_semantics = [#tpu.dimension_semantics<parallel>], iteration_bounds = array<i64: 1>, scalar_prefetch = 0 : i64, scratch_operands = 0 : i64, tpu.core_type = #tpu.core_type<tc>, window_params = [{transform_indices = @transform_0, window_bounds = array<i64: 16, 32>}, {transform_indices = @transform_1, window_bounds = array<i64: 16, 32>}, {transform_indices = @transform_2, window_bounds = array<i64: 16, 32>}, {transform_indices = @transform_3, window_bounds = array<i64: 16, 32>}, {pipeline_mode = #tpu.pipeline_mode<synchronous>, transform_indices = @transform_4, window_bounds = array<i64: 3, 32, 32>}, {pipeline_mode = #tpu.pipeline_mode<synchronous>, transform_indices = @transform_5, window_bounds = array<i64: 3, 32>}, {pipeline_mode = #tpu.pipeline_mode<synchronous>, transform_indices = @transform_6, window_bounds = array<i64: 3, 32>}, {pipeline_mode = #tpu.pipeline_mode<synchronous>, transform_indices = @transform_7, window_bounds = array<i64: 3, 32>}, {pipeline_mode = #tpu.pipeline_mode<synchronous>, transform_indices = @transform_8, window_bounds = array<i64: 1, 32>}, {pipeline_mode = #tpu.pipeline_mode<synchronous>, transform_indices = @transform_9, window_bounds = array<i64: 32, 32>}, {pipeline_mode = #tpu.pipeline_mode<synchronous>, transform_indices = @transform_10, window_bounds = array<i64: 1, 32>}, {pipeline_mode = #tpu.pipeline_mode<synchronous>, transform_indices = @transform_11, window_bounds = array<i64: 32, 32>}, {pipeline_mode = #tpu.pipeline_mode<synchronous>, transform_indices = @transform_12, window_bounds = array<i64: 1, 32>}, {pipeline_mode = #tpu.pipeline_mode<synchronous>, transform_indices = @transform_13, window_bounds = array<i64: 1, 32>}, {pipeline_mode = #tpu.pipeline_mode<synchronous>, transform_indices = @transform_14, window_bounds = array<i64: 1, 32>}, {pipeline_mode = #tpu.pipeline_mode<synchronous>, transform_indices = @transform_15, window_bounds = array<i64: 32, 32>}, {pipeline_mode = #tpu.pipeline_mode<synchronous>, transform_indices = @transform_16, window_bounds = array<i64: 1, 32>}, {pipeline_mode = #tpu.pipeline_mode<synchronous>, transform_indices = @transform_17, window_bounds = array<i64: 1, 32>}, {pipeline_mode = #tpu.pipeline_mode<synchronous>, transform_indices = @transform_18, window_bounds = array<i64: 1, 32>}, {transform_indices = @transform_19, window_bounds = array<i64: 1>}, {transform_indices = @transform_20, window_bounds = array<i64: 1>}, {transform_indices = @transform_21, window_bounds = array<i64: 16, 32>}]} {
    %c0 = arith.constant 0 : index
    %c0_0 = arith.constant 0 : index
    %0 = vector.load %arg1[%c0, %c0_0] : memref<16x32xf32, #tpu.memory_space<vmem>>, vector<16x32xf32>
    %c0_1 = arith.constant 0 : index
    %c0_2 = arith.constant 0 : index
    %c0_3 = arith.constant 0 : index
    %1 = vector.load %arg5[%c0_1, %c0_2, %c0_3] : memref<3x32x32xf32, #tpu.memory_space<vmem>>, vector<1x32x32xf32>
    %2 = vector.shape_cast %1 : vector<1x32x32xf32> to vector<32x32xf32>
    %cst = arith.constant dense<0.000000e+00> : vector<16x32xf32>
    %3 = tpu.matmul %0, %2, %cst {dimension_numbers = #tpu.dot_dimension_numbers<[1], [0], [0], [1], [0, 0, 1, 1], [], []>} : vector<16x32xf32>, vector<32x32xf32>, vector<16x32xf32> -> vector<16x32xf32>
    %c0_4 = arith.constant 0 : index
    %c0_5 = arith.constant 0 : index
    %4 = vector.load %arg6[%c0_4, %c0_5] : memref<3x32xf32, #tpu.memory_space<vmem>>, vector<1x32xf32>
    %5 = vector.broadcast %4 : vector<1x32xf32> to vector<16x32xf32>
    %6 = arith.addf %3, %5 : vector<16x32xf32>
    %c0_6 = arith.constant 0 : index
    %c0_7 = arith.constant 0 : index
    %7 = vector.load %arg7[%c0_6, %c0_7] : memref<3x32xf32, #tpu.memory_space<vmem>>, vector<1x32xf32>
    %c0_8 = arith.constant 0 : index
    %c0_9 = arith.constant 0 : index
    %8 = vector.load %arg8[%c0_8, %c0_9] : memref<3x32xf32, #tpu.memory_space<vmem>>, vector<1x32xf32>
    %cst_10 = arith.constant dense<0.000000e+00> : vector<16xf32>
    %9 = vector.multi_reduction <add>, %6, %cst_10 [1] : vector<16x32xf32> to vector<16xf32>
    %10 = vector.shape_cast %9 : vector<16xf32> to vector<16x1xf32>
    %cst_11 = arith.constant 3.200000e+01 : f32
    %11 = vector.broadcast %cst_11 : f32 to vector<16x1xf32>
    %12 = arith.divf %10, %11 : vector<16x1xf32>
    %13 = vector.broadcast %12 : vector<16x1xf32> to vector<16x32xf32>
    %14 = arith.subf %6, %13 : vector<16x32xf32>
    %15 = arith.mulf %14, %14 : vector<16x32xf32>
    %cst_12 = arith.constant dense<0.000000e+00> : vector<16xf32>
    %16 = vector.multi_reduction <add>, %15, %cst_12 [1] : vector<16x32xf32> to vector<16xf32>
    %17 = vector.shape_cast %16 : vector<16xf32> to vector<16x1xf32>
    %cst_13 = arith.constant 3.200000e+01 : f32
    %18 = vector.broadcast %cst_13 : f32 to vector<16x1xf32>
    %19 = arith.divf %17, %18 : vector<16x1xf32>
    %20 = vector.broadcast %12 : vector<16x1xf32> to vector<16x32xf32>
    %21 = arith.subf %6, %20 : vector<16x32xf32>
    %cst_14 = arith.constant 9.99999974E-6 : f32
    %22 = vector.broadcast %cst_14 : f32 to vector<16x1xf32>
    %23 = arith.addf %19, %22 : vector<16x1xf32>
    %24 = math.rsqrt %23 : vector<16x1xf32>
    %25 = vector.broadcast %24 : vector<16x1xf32> to vector<16x32xf32>
    %26 = arith.mulf %21, %25 : vector<16x32xf32>
    %27 = vector.broadcast %7 : vector<1x32xf32> to vector<16x32xf32>
    %28 = arith.mulf %26, %27 : vector<16x32xf32>
    %29 = vector.broadcast %8 : vector<1x32xf32> to vector<16x32xf32>
    %30 = arith.addf %28, %29 : vector<16x32xf32>
    %c0_15 = arith.constant 0 : index
    %c0_16 = arith.constant 0 : index
    %31 = vector.load %arg2[%c0_15, %c0_16] : memref<16x32xf32, #tpu.memory_space<vmem>>, vector<16x32xf32>
    %c1 = arith.constant 1 : index
    %c0_17 = arith.constant 0 : index
    %c0_18 = arith.constant 0 : index
    %32 = vector.load %arg5[%c1, %c0_17, %c0_18] : memref<3x32x32xf32, #tpu.memory_space<vmem>>, vector<1x32x32xf32>
    %33 = vector.shape_cast %32 : vector<1x32x32xf32> to vector<32x32xf32>
    %cst_19 = arith.constant dense<0.000000e+00> : vector<16x32xf32>
    %34 = tpu.matmul %31, %33, %cst_19 {dimension_numbers = #tpu.dot_dimension_numbers<[1], [0], [0], [1], [0, 0, 1, 1], [], []>} : vector<16x32xf32>, vector<32x32xf32>, vector<16x32xf32> -> vector<16x32xf32>
    %c1_20 = arith.constant 1 : index
    %c0_21 = arith.constant 0 : index
    %35 = vector.load %arg6[%c1_20, %c0_21] : memref<3x32xf32, #tpu.memory_space<vmem>>, vector<1x32xf32>
    %36 = vector.broadcast %35 : vector<1x32xf32> to vector<16x32xf32>
    %37 = arith.addf %34, %36 : vector<16x32xf32>
    %c1_22 = arith.constant 1 : index
    %c0_23 = arith.constant 0 : index
    %38 = vector.load %arg7[%c1_22, %c0_23] : memref<3x32xf32, #tpu.memory_space<vmem>>, vector<1x32xf32>
    %c1_24 = arith.constant 1 : index
    %c0_25 = arith.constant 0 : index
    %39 = vector.load %arg8[%c1_24, %c0_25] : memref<3x32xf32, #tpu.memory_space<vmem>>, vector<1x32xf32>
    %cst_26 = arith.constant dense<0.000000e+00> : vector<16xf32>
    %40 = vector.multi_reduction <add>, %37, %cst_26 [1] : vector<16x32xf32> to vector<16xf32>
    %41 = vector.shape_cast %40 : vector<16xf32> to vector<16x1xf32>
    %cst_27 = arith.constant 3.200000e+01 : f32
    %42 = vector.broadcast %cst_27 : f32 to vector<16x1xf32>
    %43 = arith.divf %41, %42 : vector<16x1xf32>
    %44 = vector.broadcast %43 : vector<16x1xf32> to vector<16x32xf32>
    %45 = arith.subf %37, %44 : vector<16x32xf32>
    %46 = arith.mulf %45, %45 : vector<16x32xf32>
    %cst_28 = arith.constant dense<0.000000e+00> : vector<16xf32>
    %47 = vector.multi_reduction <add>, %46, %cst_28 [1] : vector<16x32xf32> to vector<16xf32>
    %48 = vector.shape_cast %47 : vector<16xf32> to vector<16x1xf32>
    %cst_29 = arith.constant 3.200000e+01 : f32
    %49 = vector.broadcast %cst_29 : f32 to vector<16x1xf32>
    %50 = arith.divf %48, %49 : vector<16x1xf32>
    %51 = vector.broadcast %43 : vector<16x1xf32> to vector<16x32xf32>
    %52 = arith.subf %37, %51 : vector<16x32xf32>
    %cst_30 = arith.constant 9.99999974E-6 : f32
    %53 = vector.broadcast %cst_30 : f32 to vector<16x1xf32>
    %54 = arith.addf %50, %53 : vector<16x1xf32>
    %55 = math.rsqrt %54 : vector<16x1xf32>
    %56 = vector.broadcast %55 : vector<16x1xf32> to vector<16x32xf32>
    %57 = arith.mulf %52, %56 : vector<16x32xf32>
    %58 = vector.broadcast %38 : vector<1x32xf32> to vector<16x32xf32>
    %59 = arith.mulf %57, %58 : vector<16x32xf32>
    %60 = vector.broadcast %39 : vector<1x32xf32> to vector<16x32xf32>
    %61 = arith.addf %59, %60 : vector<16x32xf32>
    %c0_31 = arith.constant 0 : index
    %c0_32 = arith.constant 0 : index
    %62 = vector.load %arg3[%c0_31, %c0_32] : memref<16x32xf32, #tpu.memory_space<vmem>>, vector<16x32xf32>
    %c2 = arith.constant 2 : index
    %c0_33 = arith.constant 0 : index
    %c0_34 = arith.constant 0 : index
    %63 = vector.load %arg5[%c2, %c0_33, %c0_34] : memref<3x32x32xf32, #tpu.memory_space<vmem>>, vector<1x32x32xf32>
    %64 = vector.shape_cast %63 : vector<1x32x32xf32> to vector<32x32xf32>
    %cst_35 = arith.constant dense<0.000000e+00> : vector<16x32xf32>
    %65 = tpu.matmul %62, %64, %cst_35 {dimension_numbers = #tpu.dot_dimension_numbers<[1], [0], [0], [1], [0, 0, 1, 1], [], []>} : vector<16x32xf32>, vector<32x32xf32>, vector<16x32xf32> -> vector<16x32xf32>
    %c2_36 = arith.constant 2 : index
    %c0_37 = arith.constant 0 : index
    %66 = vector.load %arg6[%c2_36, %c0_37] : memref<3x32xf32, #tpu.memory_space<vmem>>, vector<1x32xf32>
    %67 = vector.broadcast %66 : vector<1x32xf32> to vector<16x32xf32>
    %68 = arith.addf %65, %67 : vector<16x32xf32>
    %c2_38 = arith.constant 2 : index
    %c0_39 = arith.constant 0 : index
    %69 = vector.load %arg7[%c2_38, %c0_39] : memref<3x32xf32, #tpu.memory_space<vmem>>, vector<1x32xf32>
    %c2_40 = arith.constant 2 : index
    %c0_41 = arith.constant 0 : index
    %70 = vector.load %arg8[%c2_40, %c0_41] : memref<3x32xf32, #tpu.memory_space<vmem>>, vector<1x32xf32>
    %cst_42 = arith.constant dense<0.000000e+00> : vector<16xf32>
    %71 = vector.multi_reduction <add>, %68, %cst_42 [1] : vector<16x32xf32> to vector<16xf32>
    %72 = vector.shape_cast %71 : vector<16xf32> to vector<16x1xf32>
    %cst_43 = arith.constant 3.200000e+01 : f32
    %73 = vector.broadcast %cst_43 : f32 to vector<16x1xf32>
    %74 = arith.divf %72, %73 : vector<16x1xf32>
    %75 = vector.broadcast %74 : vector<16x1xf32> to vector<16x32xf32>
    %76 = arith.subf %68, %75 : vector<16x32xf32>
    %77 = arith.mulf %76, %76 : vector<16x32xf32>
    %cst_44 = arith.constant dense<0.000000e+00> : vector<16xf32>
    %78 = vector.multi_reduction <add>, %77, %cst_44 [1] : vector<16x32xf32> to vector<16xf32>
    %79 = vector.shape_cast %78 : vector<16xf32> to vector<16x1xf32>
    %cst_45 = arith.constant 3.200000e+01 : f32
    %80 = vector.broadcast %cst_45 : f32 to vector<16x1xf32>
    %81 = arith.divf %79, %80 : vector<16x1xf32>
    %82 = vector.broadcast %74 : vector<16x1xf32> to vector<16x32xf32>
    %83 = arith.subf %68, %82 : vector<16x32xf32>
    %cst_46 = arith.constant 9.99999974E-6 : f32
    %84 = vector.broadcast %cst_46 : f32 to vector<16x1xf32>
    %85 = arith.addf %81, %84 : vector<16x1xf32>
    %86 = math.rsqrt %85 : vector<16x1xf32>
    %87 = vector.broadcast %86 : vector<16x1xf32> to vector<16x32xf32>
    %88 = arith.mulf %83, %87 : vector<16x32xf32>
    %89 = vector.broadcast %69 : vector<1x32xf32> to vector<16x32xf32>
    %90 = arith.mulf %88, %89 : vector<16x32xf32>
    %91 = vector.broadcast %70 : vector<1x32xf32> to vector<16x32xf32>
    %92 = arith.addf %90, %91 : vector<16x32xf32>
    %93 = arith.mulf %30, %30 : vector<16x32xf32>
    %cst_47 = arith.constant dense<0.000000e+00> : vector<16xf32>
    %94 = vector.multi_reduction <add>, %93, %cst_47 [1] : vector<16x32xf32> to vector<16xf32>
    %95 = vector.shape_cast %94 : vector<16xf32> to vector<16x1xf32>
    %96 = arith.mulf %61, %61 : vector<16x32xf32>
    %cst_48 = arith.constant dense<0.000000e+00> : vector<16xf32>
    %97 = vector.multi_reduction <add>, %96, %cst_48 [1] : vector<16x32xf32> to vector<16xf32>
    %98 = vector.shape_cast %97 : vector<16xf32> to vector<16x1xf32>
    %99 = math.sqrt %95 : vector<16x1xf32>
    %cst_49 = arith.constant 9.99999997E-7 : f32
    %100 = vector.broadcast %cst_49 : f32 to vector<16x1xf32>
    %101 = arith.addf %99, %100 : vector<16x1xf32>
    %cst_50 = arith.constant 1.000000e+00 : f32
    %102 = vector.broadcast %cst_50 : f32 to vector<16x1xf32>
    %103 = arith.divf %102, %101 : vector<16x1xf32>
    %104 = math.sqrt %98 : vector<16x1xf32>
    %cst_51 = arith.constant 9.99999997E-7 : f32
    %105 = vector.broadcast %cst_51 : f32 to vector<16x1xf32>
    %106 = arith.addf %104, %105 : vector<16x1xf32>
    %cst_52 = arith.constant 1.000000e+00 : f32
    %107 = vector.broadcast %cst_52 : f32 to vector<16x1xf32>
    %108 = arith.divf %107, %106 : vector<16x1xf32>
    %109 = vector.broadcast %103 : vector<16x1xf32> to vector<16x32xf32>
    %110 = arith.mulf %30, %109 : vector<16x32xf32>
    %111 = vector.broadcast %108 : vector<16x1xf32> to vector<16x32xf32>
    %112 = arith.mulf %61, %111 : vector<16x32xf32>
    %113 = arith.mulf %95, %103 : vector<16x1xf32>
    %114 = arith.mulf %113, %103 : vector<16x1xf32>
    %115 = arith.mulf %98, %108 : vector<16x1xf32>
    %116 = arith.mulf %115, %108 : vector<16x1xf32>
    %117 = arith.mulf %110, %112 : vector<16x32xf32>
    %cst_53 = arith.constant dense<0.000000e+00> : vector<16xf32>
    %118 = vector.multi_reduction <add>, %117, %cst_53 [1] : vector<16x32xf32> to vector<16xf32>
    %119 = vector.shape_cast %118 : vector<16xf32> to vector<16x1xf32>
    %cst_54 = arith.constant 0.000000e+00 : f32
    %120 = vector.broadcast %cst_54 : f32 to vector<16x1xf32>
    %121 = arith.maximumf %119, %120 : vector<16x1xf32>
    %122 = arith.addf %114, %121 : vector<16x1xf32>
    %123 = arith.addf %116, %121 : vector<16x1xf32>
    %c0_55 = arith.constant 0 : index
    %c0_56 = arith.constant 0 : index
    %124 = vector.load %arg9[%c0_55, %c0_56] : memref<1x32xf32, #tpu.memory_space<vmem>>, vector<1x32xf32>
    %125 = vector.broadcast %124 : vector<1x32xf32> to vector<16x32xf32>
    %126 = arith.mulf %92, %125 : vector<16x32xf32>
    %c0_57 = arith.constant 0 : index
    %127 = memref.load %arg20[%c0_57] : memref<1xf32, #tpu.memory_space<smem>>
    %128 = vector.broadcast %127 : f32 to vector<1x1xf32>
    %129 = arith.mulf %30, %126 : vector<16x32xf32>
    %cst_58 = arith.constant dense<0.000000e+00> : vector<16xf32>
    %130 = vector.multi_reduction <add>, %129, %cst_58 [1] : vector<16x32xf32> to vector<16xf32>
    %131 = vector.shape_cast %130 : vector<16xf32> to vector<16x1xf32>
    %132 = vector.broadcast %128 : vector<1x1xf32> to vector<16x1xf32>
    %133 = arith.addf %131, %132 : vector<16x1xf32>
    %cst_59 = arith.constant 0.000000e+00 : f32
    %134 = vector.broadcast %cst_59 : f32 to vector<16x1xf32>
    %135 = arith.maximumf %133, %134 : vector<16x1xf32>
    %cst_60 = arith.constant 9.99999997E-7 : f32
    %136 = vector.broadcast %cst_60 : f32 to vector<16x1xf32>
    %137 = arith.addf %122, %136 : vector<16x1xf32>
    %cst_61 = arith.constant 1.000000e+00 : f32
    %138 = vector.broadcast %cst_61 : f32 to vector<16x1xf32>
    %139 = arith.divf %138, %137 : vector<16x1xf32>
    %140 = arith.mulf %135, %139 : vector<16x1xf32>
    %141 = arith.mulf %61, %126 : vector<16x32xf32>
    %cst_62 = arith.constant dense<0.000000e+00> : vector<16xf32>
    %142 = vector.multi_reduction <add>, %141, %cst_62 [1] : vector<16x32xf32> to vector<16xf32>
    %143 = vector.shape_cast %142 : vector<16xf32> to vector<16x1xf32>
    %144 = vector.broadcast %128 : vector<1x1xf32> to vector<16x1xf32>
    %145 = arith.addf %143, %144 : vector<16x1xf32>
    %cst_63 = arith.constant 0.000000e+00 : f32
    %146 = vector.broadcast %cst_63 : f32 to vector<16x1xf32>
    %147 = arith.maximumf %145, %146 : vector<16x1xf32>
    %cst_64 = arith.constant 9.99999997E-7 : f32
    %148 = vector.broadcast %cst_64 : f32 to vector<16x1xf32>
    %149 = arith.addf %123, %148 : vector<16x1xf32>
    %cst_65 = arith.constant 1.000000e+00 : f32
    %150 = vector.broadcast %cst_65 : f32 to vector<16x1xf32>
    %151 = arith.divf %150, %149 : vector<16x1xf32>
    %152 = arith.mulf %147, %151 : vector<16x1xf32>
    %153 = arith.addf %140, %152 : vector<16x1xf32>
    %cst_66 = arith.constant 9.99999997E-7 : f32
    %154 = vector.broadcast %cst_66 : f32 to vector<16x1xf32>
    %155 = arith.addf %153, %154 : vector<16x1xf32>
    %cst_67 = arith.constant 1.000000e+00 : f32
    %156 = vector.broadcast %cst_67 : f32 to vector<16x1xf32>
    %157 = arith.divf %156, %155 : vector<16x1xf32>
    %158 = arith.mulf %140, %157 : vector<16x1xf32>
    %159 = vector.broadcast %158 : vector<16x1xf32> to vector<16x32xf32>
    %160 = arith.mulf %159, %30 : vector<16x32xf32>
    %161 = arith.mulf %152, %157 : vector<16x1xf32>
    %162 = vector.broadcast %161 : vector<16x1xf32> to vector<16x32xf32>
    %163 = arith.mulf %162, %61 : vector<16x32xf32>
    %164 = arith.addf %160, %163 : vector<16x32xf32>
    %c0_68 = arith.constant 0 : index
    %c0_69 = arith.constant 0 : index
    %165 = vector.load %arg10[%c0_68, %c0_69] : memref<32x32xf32, #tpu.memory_space<vmem>>, vector<32x32xf32>
    %cst_70 = arith.constant dense<0.000000e+00> : vector<16x32xf32>
    %166 = tpu.matmul %164, %165, %cst_70 {dimension_numbers = #tpu.dot_dimension_numbers<[1], [0], [0], [1], [0, 0, 1, 1], [], []>} : vector<16x32xf32>, vector<32x32xf32>, vector<16x32xf32> -> vector<16x32xf32>
    %c0_71 = arith.constant 0 : index
    %c0_72 = arith.constant 0 : index
    %167 = vector.load %arg11[%c0_71, %c0_72] : memref<1x32xf32, #tpu.memory_space<vmem>>, vector<1x32xf32>
    %168 = vector.broadcast %167 : vector<1x32xf32> to vector<16x32xf32>
    %169 = arith.addf %166, %168 : vector<16x32xf32>
    %cst_73 = arith.constant 0.000000e+00 : f32
    %170 = vector.broadcast %cst_73 : f32 to vector<16x32xf32>
    %171 = arith.maximumf %169, %170 : vector<16x32xf32>
    %c0_74 = arith.constant 0 : index
    %c0_75 = arith.constant 0 : index
    %172 = vector.load %arg12[%c0_74, %c0_75] : memref<32x32xf32, #tpu.memory_space<vmem>>, vector<32x32xf32>
    %cst_76 = arith.constant dense<0.000000e+00> : vector<16x32xf32>
    %173 = tpu.matmul %171, %172, %cst_76 {dimension_numbers = #tpu.dot_dimension_numbers<[1], [0], [0], [1], [0, 0, 1, 1], [], []>} : vector<16x32xf32>, vector<32x32xf32>, vector<16x32xf32> -> vector<16x32xf32>
    %c0_77 = arith.constant 0 : index
    %c0_78 = arith.constant 0 : index
    %174 = vector.load %arg13[%c0_77, %c0_78] : memref<1x32xf32, #tpu.memory_space<vmem>>, vector<1x32xf32>
    %175 = vector.broadcast %174 : vector<1x32xf32> to vector<16x32xf32>
    %176 = arith.addf %173, %175 : vector<16x32xf32>
    %c0_79 = arith.constant 0 : index
    %c0_80 = arith.constant 0 : index
    %177 = vector.load %arg14[%c0_79, %c0_80] : memref<1x32xf32, #tpu.memory_space<vmem>>, vector<1x32xf32>
    %c0_81 = arith.constant 0 : index
    %c0_82 = arith.constant 0 : index
    %178 = vector.load %arg15[%c0_81, %c0_82] : memref<1x32xf32, #tpu.memory_space<vmem>>, vector<1x32xf32>
    %cst_83 = arith.constant dense<0.000000e+00> : vector<16xf32>
    %179 = vector.multi_reduction <add>, %176, %cst_83 [1] : vector<16x32xf32> to vector<16xf32>
    %180 = vector.shape_cast %179 : vector<16xf32> to vector<16x1xf32>
    %cst_84 = arith.constant 3.200000e+01 : f32
    %181 = vector.broadcast %cst_84 : f32 to vector<16x1xf32>
    %182 = arith.divf %180, %181 : vector<16x1xf32>
    %183 = vector.broadcast %182 : vector<16x1xf32> to vector<16x32xf32>
    %184 = arith.subf %176, %183 : vector<16x32xf32>
    %185 = arith.mulf %184, %184 : vector<16x32xf32>
    %cst_85 = arith.constant dense<0.000000e+00> : vector<16xf32>
    %186 = vector.multi_reduction <add>, %185, %cst_85 [1] : vector<16x32xf32> to vector<16xf32>
    %187 = vector.shape_cast %186 : vector<16xf32> to vector<16x1xf32>
    %cst_86 = arith.constant 3.200000e+01 : f32
    %188 = vector.broadcast %cst_86 : f32 to vector<16x1xf32>
    %189 = arith.divf %187, %188 : vector<16x1xf32>
    %190 = vector.broadcast %182 : vector<16x1xf32> to vector<16x32xf32>
    %191 = arith.subf %176, %190 : vector<16x32xf32>
    %cst_87 = arith.constant 9.99999974E-6 : f32
    %192 = vector.broadcast %cst_87 : f32 to vector<16x1xf32>
    %193 = arith.addf %189, %192 : vector<16x1xf32>
    %194 = math.rsqrt %193 : vector<16x1xf32>
    %195 = vector.broadcast %194 : vector<16x1xf32> to vector<16x32xf32>
    %196 = arith.mulf %191, %195 : vector<16x32xf32>
    %197 = vector.broadcast %177 : vector<1x32xf32> to vector<16x32xf32>
    %198 = arith.mulf %196, %197 : vector<16x32xf32>
    %199 = vector.broadcast %178 : vector<1x32xf32> to vector<16x32xf32>
    %200 = arith.addf %198, %199 : vector<16x32xf32>
    %201 = arith.addf %200, %92 : vector<16x32xf32>
    %cst_88 = arith.constant 0.000000e+00 : f32
    %202 = vector.broadcast %cst_88 : f32 to vector<16x32xf32>
    %203 = arith.maximumf %201, %202 : vector<16x32xf32>
    %c0_89 = arith.constant 0 : index
    %c0_90 = arith.constant 0 : index
    %204 = vector.load %arg16[%c0_89, %c0_90] : memref<32x32xf32, #tpu.memory_space<vmem>>, vector<32x32xf32>
    %cst_91 = arith.constant dense<0.000000e+00> : vector<16x32xf32>
    %205 = tpu.matmul %203, %204, %cst_91 {dimension_numbers = #tpu.dot_dimension_numbers<[1], [0], [0], [1], [0, 0, 1, 1], [], []>} : vector<16x32xf32>, vector<32x32xf32>, vector<16x32xf32> -> vector<16x32xf32>
    %c0_92 = arith.constant 0 : index
    %c0_93 = arith.constant 0 : index
    %206 = vector.load %arg17[%c0_92, %c0_93] : memref<1x32xf32, #tpu.memory_space<vmem>>, vector<1x32xf32>
    %207 = vector.broadcast %206 : vector<1x32xf32> to vector<16x32xf32>
    %208 = arith.addf %205, %207 : vector<16x32xf32>
    %c0_94 = arith.constant 0 : index
    %c0_95 = arith.constant 0 : index
    %209 = vector.load %arg18[%c0_94, %c0_95] : memref<1x32xf32, #tpu.memory_space<vmem>>, vector<1x32xf32>
    %c0_96 = arith.constant 0 : index
    %c0_97 = arith.constant 0 : index
    %210 = vector.load %arg19[%c0_96, %c0_97] : memref<1x32xf32, #tpu.memory_space<vmem>>, vector<1x32xf32>
    %cst_98 = arith.constant dense<0.000000e+00> : vector<16xf32>
    %211 = vector.multi_reduction <add>, %208, %cst_98 [1] : vector<16x32xf32> to vector<16xf32>
    %212 = vector.shape_cast %211 : vector<16xf32> to vector<16x1xf32>
    %cst_99 = arith.constant 3.200000e+01 : f32
    %213 = vector.broadcast %cst_99 : f32 to vector<16x1xf32>
    %214 = arith.divf %212, %213 : vector<16x1xf32>
    %215 = vector.broadcast %214 : vector<16x1xf32> to vector<16x32xf32>
    %216 = arith.subf %208, %215 : vector<16x32xf32>
    %217 = arith.mulf %216, %216 : vector<16x32xf32>
    %cst_100 = arith.constant dense<0.000000e+00> : vector<16xf32>
    %218 = vector.multi_reduction <add>, %217, %cst_100 [1] : vector<16x32xf32> to vector<16xf32>
    %219 = vector.shape_cast %218 : vector<16xf32> to vector<16x1xf32>
    %cst_101 = arith.constant 3.200000e+01 : f32
    %220 = vector.broadcast %cst_101 : f32 to vector<16x1xf32>
    %221 = arith.divf %219, %220 : vector<16x1xf32>
    %222 = vector.broadcast %214 : vector<16x1xf32> to vector<16x32xf32>
    %223 = arith.subf %208, %222 : vector<16x32xf32>
    %cst_102 = arith.constant 9.99999974E-6 : f32
    %224 = vector.broadcast %cst_102 : f32 to vector<16x1xf32>
    %225 = arith.addf %221, %224 : vector<16x1xf32>
    %226 = math.rsqrt %225 : vector<16x1xf32>
    %227 = vector.broadcast %226 : vector<16x1xf32> to vector<16x32xf32>
    %228 = arith.mulf %223, %227 : vector<16x32xf32>
    %229 = vector.broadcast %209 : vector<1x32xf32> to vector<16x32xf32>
    %230 = arith.mulf %228, %229 : vector<16x32xf32>
    %231 = vector.broadcast %210 : vector<1x32xf32> to vector<16x32xf32>
    %232 = arith.addf %230, %231 : vector<16x32xf32>
    %c0_103 = arith.constant 0 : index
    %233 = memref.load %arg21[%c0_103] : memref<1xf32, #tpu.memory_space<smem>>
    %234 = vector.broadcast %233 : f32 to vector<1x1xf32>
    %cst_104 = arith.constant 1.000000e-01 : f32
    %235 = vector.broadcast %cst_104 : f32 to vector<1x1xf32>
    %236 = arith.divf %234, %235 : vector<1x1xf32>
    %237 = math.tanh %236 : vector<1x1xf32>
    %c0_105 = arith.constant 0 : index
    %c0_106 = arith.constant 0 : index
    %238 = vector.load %arg4[%c0_105, %c0_106] : memref<16x32xf32, #tpu.memory_space<vmem>>, vector<16x32xf32>
    %239 = vector.broadcast %237 : vector<1x1xf32> to vector<16x32xf32>
    %240 = arith.mulf %239, %238 : vector<16x32xf32>
    %241 = arith.addf %232, %240 : vector<16x32xf32>
    %c0_107 = arith.constant 0 : index
    %c0_108 = arith.constant 0 : index
    %242 = vector.load %arg22[%c0_107, %c0_108] : memref<16x32xf32, #tpu.memory_space<vmem>>, vector<16x32xf32>
    tpu.vector_store %arg22[%c0_107, %c0_108], %241 {strides = array<i32>} : memref<16x32xf32, #tpu.memory_space<vmem>>, vector<16x32xf32>,
    return
  }
  func.func @transform_0(%arg0: i32) -> (i32, i32) {
    %c0_i32 = arith.constant 0 : i32
    %c0_i32_0 = arith.constant 0 : i32
    return %arg0, %c0_i32 : i32, i32
  }
  func.func @transform_1(%arg0: i32) -> (i32, i32) {
    %c0_i32 = arith.constant 0 : i32
    %c0_i32_0 = arith.constant 0 : i32
    return %arg0, %c0_i32 : i32, i32
  }
  func.func @transform_2(%arg0: i32) -> (i32, i32) {
    %c0_i32 = arith.constant 0 : i32
    %c0_i32_0 = arith.constant 0 : i32
    return %arg0, %c0_i32 : i32, i32
  }
  func.func @transform_3(%arg0: i32) -> (i32, i32) {
    %c0_i32 = arith.constant 0 : i32
    %c0_i32_0 = arith.constant 0 : i32
    return %arg0, %c0_i32 : i32, i32
  }
  func.func @transform_4(%arg0: i32) -> (i32, i32, i32) {
    %c0_i32 = arith.constant 0 : i32
    %c0_i32_0 = arith.constant 0 : i32
    %c0_i32_1 = arith.constant 0 : i32
    %c0_i32_2 = arith.constant 0 : i32
    return %c0_i32, %c0_i32_0, %c0_i32_1 : i32, i32, i32
  }
  func.func @transform_5(%arg0: i32) -> (i32, i32) {
    %c0_i32 = arith.constant 0 : i32
    %c0_i32_0 = arith.constant 0 : i32
    %c0_i32_1 = arith.constant 0 : i32
    return %c0_i32, %c0_i32_0 : i32, i32
  }
  func.func @transform_6(%arg0: i32) -> (i32, i32) {
    %c0_i32 = arith.constant 0 : i32
    %c0_i32_0 = arith.constant 0 : i32
    %c0_i32_1 = arith.constant 0 : i32
    return %c0_i32, %c0_i32_0 : i32, i32
  }
  func.func @transform_7(%arg0: i32) -> (i32, i32) {
    %c0_i32 = arith.constant 0 : i32
    %c0_i32_0 = arith.constant 0 : i32
    %c0_i32_1 = arith.constant 0 : i32
    return %c0_i32, %c0_i32_0 : i32, i32
  }
  func.func @transform_8(%arg0: i32) -> (i32, i32) {
    %c0_i32 = arith.constant 0 : i32
    %c0_i32_0 = arith.constant 0 : i32
    %c0_i32_1 = arith.constant 0 : i32
    return %c0_i32, %c0_i32_0 : i32, i32
  }
  func.func @transform_9(%arg0: i32) -> (i32, i32) {
    %c0_i32 = arith.constant 0 : i32
    %c0_i32_0 = arith.constant 0 : i32
    %c0_i32_1 = arith.constant 0 : i32
    return %c0_i32, %c0_i32_0 : i32, i32
  }
  func.func @transform_10(%arg0: i32) -> (i32, i32) {
    %c0_i32 = arith.constant 0 : i32
    %c0_i32_0 = arith.constant 0 : i32
    %c0_i32_1 = arith.constant 0 : i32
    return %c0_i32, %c0_i32_0 : i32, i32
  }
  func.func @transform_11(%arg0: i32) -> (i32, i32) {
    %c0_i32 = arith.constant 0 : i32
    %c0_i32_0 = arith.constant 0 : i32
    %c0_i32_1 = arith.constant 0 : i32
    return %c0_i32, %c0_i32_0 : i32, i32
  }
  func.func @transform_12(%arg0: i32) -> (i32, i32) {
    %c0_i32 = arith.constant 0 : i32
    %c0_i32_0 = arith.constant 0 : i32
    %c0_i32_1 = arith.constant 0 : i32
    return %c0_i32, %c0_i32_0 : i32, i32
  }
  func.func @transform_13(%arg0: i32) -> (i32, i32) {
    %c0_i32 = arith.constant 0 : i32
    %c0_i32_0 = arith.constant 0 : i32
    %c0_i32_1 = arith.constant 0 : i32
    return %c0_i32, %c0_i32_0 : i32, i32
  }
  func.func @transform_14(%arg0: i32) -> (i32, i32) {
    %c0_i32 = arith.constant 0 : i32
    %c0_i32_0 = arith.constant 0 : i32
    %c0_i32_1 = arith.constant 0 : i32
    return %c0_i32, %c0_i32_0 : i32, i32
  }
  func.func @transform_15(%arg0: i32) -> (i32, i32) {
    %c0_i32 = arith.constant 0 : i32
    %c0_i32_0 = arith.constant 0 : i32
    %c0_i32_1 = arith.constant 0 : i32
    return %c0_i32, %c0_i32_0 : i32, i32
  }
  func.func @transform_16(%arg0: i32) -> (i32, i32) {
    %c0_i32 = arith.constant 0 : i32
    %c0_i32_0 = arith.constant 0 : i32
    %c0_i32_1 = arith.constant 0 : i32
    return %c0_i32, %c0_i32_0 : i32, i32
  }
  func.func @transform_17(%arg0: i32) -> (i32, i32) {
    %c0_i32 = arith.constant 0 : i32
    %c0_i32_0 = arith.constant 0 : i32
    %c0_i32_1 = arith.constant 0 : i32
    return %c0_i32, %c0_i32_0 : i32, i32
  }
  func.func @transform_18(%arg0: i32) -> (i32, i32) {
    %c0_i32 = arith.constant 0 : i32
    %c0_i32_0 = arith.constant 0 : i32
    %c0_i32_1 = arith.constant 0 : i32
    return %c0_i32, %c0_i32_0 : i32, i32
  }
  func.func @transform_19(%arg0: i32) -> i32 {
    %c0_i32 = arith.constant 0 : i32
    %c0_i32_0 = arith.constant 0 : i32
    return %c0_i32 : i32
  }
  func.func @transform_20(%arg0: i32) -> i32 {
    %c0_i32 = arith.constant 0 : i32
    %c0_i32_0 = arith.constant 0 : i32
    return %c0_i32 : i32
  }
  func.func @transform_21(%arg0: i32) -> (i32, i32) {
    %c0_i32 = arith.constant 0 : i32
    %c0_i32_0 = arith.constant 0 : i32
    return %arg0, %c0_i32 : i32, i32
  }
}

module attributes {stable_mosaic.version = 11 : i64} {
  func.func @kernel(%arg0: i32, %arg1: memref<16x32xf32, #tpu.memory_space<vmem>>, %arg2: memref<16x32xf32, #tpu.memory_space<vmem>>, %arg3: memref<16x32xf32, #tpu.memory_space<vmem>>, %arg4: memref<16x32xf32, #tpu.memory_space<vmem>>, %arg5: memref<3x32x32xf32, #tpu.memory_space<vmem>>, %arg6: memref<3x32xf32, #tpu.memory_space<vmem>>, %arg7: memref<3x32xf32, #tpu.memory_space<vmem>>, %arg8: memref<3x32xf32, #tpu.memory_space<vmem>>, %arg9: memref<1x32xf32, #tpu.memory_space<vmem>>, %arg10: memref<32x32xf32, #tpu.memory_space<vmem>>, %arg11: memref<1x32xf32, #tpu.memory_space<vmem>>, %arg12: memref<32x32xf32, #tpu.memory_space<vmem>>, %arg13: memref<1x32xf32, #tpu.memory_space<vmem>>, %arg14: memref<1x32xf32, #tpu.memory_space<vmem>>, %arg15: memref<1x32xf32, #tpu.memory_space<vmem>>, %arg16: memref<32x32xf32, #tpu.memory_space<vmem>>, %arg17: memref<1x32xf32, #tpu.memory_space<vmem>>, %arg18: memref<1x32xf32, #tpu.memory_space<vmem>>, %arg19: memref<1x32xf32, #tpu.memory_space<vmem>>, %arg20: memref<1xf32, #tpu.memory_space<smem>>, %arg21: memref<1xf32, #tpu.memory_space<smem>>, %arg22: memref<16x32xf32, #tpu.memory_space<vmem>>) attributes {dimension_semantics = [#tpu.dimension_semantics<parallel>], iteration_bounds = array<i64: 1>, scalar_prefetch = 0 : i64, scratch_operands = 0 : i64, tpu.core_type = #tpu.core_type<tc>, window_params = [{transform_indices = @transform_0, window_bounds = array<i64: 16, 32>}, {transform_indices = @transform_1, window_bounds = array<i64: 16, 32>}, {transform_indices = @transform_2, window_bounds = array<i64: 16, 32>}, {transform_indices = @transform_3, window_bounds = array<i64: 16, 32>}, {pipeline_mode = #tpu.pipeline_mode<synchronous>, transform_indices = @transform_4, window_bounds = array<i64: 3, 32, 32>}, {pipeline_mode = #tpu.pipeline_mode<synchronous>, transform_indices = @transform_5, window_bounds = array<i64: 3, 32>}, {pipeline_mode = #tpu.pipeline_mode<synchronous>, transform_indices = @transform_6, window_bounds = array<i64: 3, 32>}, {pipeline_mode = #tpu.pipeline_mode<synchronous>, transform_indices = @transform_7, window_bounds = array<i64: 3, 32>}, {pipeline_mode = #tpu.pipeline_mode<synchronous>, transform_indices = @transform_8, window_bounds = array<i64: 1, 32>}, {pipeline_mode = #tpu.pipeline_mode<synchronous>, transform_indices = @transform_9, window_bounds = array<i64: 32, 32>}, {pipeline_mode = #tpu.pipeline_mode<synchronous>, transform_indices = @transform_10, window_bounds = array<i64: 1, 32>}, {pipeline_mode = #tpu.pipeline_mode<synchronous>, transform_indices = @transform_11, window_bounds = array<i64: 32, 32>}, {pipeline_mode = #tpu.pipeline_mode<synchronous>, transform_indices = @transform_12, window_bounds = array<i64: 1, 32>}, {pipeline_mode = #tpu.pipeline_mode<synchronous>, transform_indices = @transform_13, window_bounds = array<i64: 1, 32>}, {pipeline_mode = #tpu.pipeline_mode<synchronous>, transform_indices = @transform_14, window_bounds = array<i64: 1, 32>}, {pipeline_mode = #tpu.pipeline_mode<synchronous>, transform_indices = @transform_15, window_bounds = array<i64: 32, 32>}, {pipeline_mode = #tpu.pipeline_mode<synchronous>, transform_indices = @transform_16, window_bounds = array<i64: 1, 32>}, {pipeline_mode = #tpu.pipeline_mode<synchronous>, transform_indices = @transform_17, window_bounds = array<i64: 1, 32>}, {pipeline_mode = #tpu.pipeline_mode<synchronous>, transform_indices = @transform_18, window_bounds = array<i64: 1, 32>}, {transform_indices = @transform_19, window_bounds = array<i64: 1>}, {transform_indices = @transform_20, window_bounds = array<i64: 1>}, {transform_indices = @transform_21, window_bounds = array<i64: 16, 32>}]} {
    %c0 = arith.constant 0 : index
    %c0_0 = arith.constant 0 : index
    %0 = vector.load %arg1[%c0, %c0_0] : memref<16x32xf32, #tpu.memory_space<vmem>>, vector<16x32xf32>
    %c0_1 = arith.constant 0 : index
    %c0_2 = arith.constant 0 : index
    %c0_3 = arith.constant 0 : index
    %1 = vector.load %arg5[%c0_1, %c0_2, %c0_3] : memref<3x32x32xf32, #tpu.memory_space<vmem>>, vector<1x32x32xf32>
    %2 = vector.shape_cast %1 : vector<1x32x32xf32> to vector<32x32xf32>
    %cst = arith.constant dense<0.000000e+00> : vector<16x32xf32>
    %3 = tpu.matmul %0, %2, %cst {dimension_numbers = #tpu.dot_dimension_numbers<[1], [0], [0], [1], [0, 0, 1, 1], [], []>} : vector<16x32xf32>, vector<32x32xf32>, vector<16x32xf32> -> vector<16x32xf32>
    %c0_4 = arith.constant 0 : index
    %c0_5 = arith.constant 0 : index
    %4 = vector.load %arg6[%c0_4, %c0_5] : memref<3x32xf32, #tpu.memory_space<vmem>>, vector<1x32xf32>
    %5 = vector.broadcast %4 : vector<1x32xf32> to vector<16x32xf32>
    %6 = arith.addf %3, %5 : vector<16x32xf32>
    %c0_6 = arith.constant 0 : index
    %c0_7 = arith.constant 0 : index
    %7 = vector.load %arg7[%c0_6, %c0_7] : memref<3x32xf32, #tpu.memory_space<vmem>>, vector<1x32xf32>
    %c0_8 = arith.constant 0 : index
    %c0_9 = arith.constant 0 : index
    %8 = vector.load %arg8[%c0_8, %c0_9] : memref<3x32xf32, #tpu.memory_space<vmem>>, vector<1x32xf32>
    %cst_10 = arith.constant dense<0.000000e+00> : vector<16xf32>
    %9 = vector.multi_reduction <add>, %6, %cst_10 [1] : vector<16x32xf32> to vector<16xf32>
    %10 = vector.shape_cast %9 : vector<16xf32> to vector<16x1xf32>
    %cst_11 = arith.constant 3.200000e+01 : f32
    %11 = vector.broadcast %cst_11 : f32 to vector<16x1xf32>
    %12 = arith.divf %10, %11 : vector<16x1xf32>
    %13 = vector.broadcast %12 : vector<16x1xf32> to vector<16x32xf32>
    %14 = arith.subf %6, %13 : vector<16x32xf32>
    %15 = arith.mulf %14, %14 : vector<16x32xf32>
    %cst_12 = arith.constant dense<0.000000e+00> : vector<16xf32>
    %16 = vector.multi_reduction <add>, %15, %cst_12 [1] : vector<16x32xf32> to vector<16xf32>
    %17 = vector.shape_cast %16 : vector<16xf32> to vector<16x1xf32>
    %cst_13 = arith.constant 3.200000e+01 : f32
    %18 = vector.broadcast %cst_13 : f32 to vector<16x1xf32>
    %19 = arith.divf %17, %18 : vector<16x1xf32>
    %20 = vector.broadcast %12 : vector<16x1xf32> to vector<16x32xf32>
    %21 = arith.subf %6, %20 : vector<16x32xf32>
    %cst_14 = arith.constant 9.99999974E-6 : f32
    %22 = vector.broadcast %cst_14 : f32 to vector<16x1xf32>
    %23 = arith.addf %19, %22 : vector<16x1xf32>
    %24 = math.rsqrt %23 : vector<16x1xf32>
    %25 = vector.broadcast %24 : vector<16x1xf32> to vector<16x32xf32>
    %26 = arith.mulf %21, %25 : vector<16x32xf32>
    %27 = vector.broadcast %7 : vector<1x32xf32> to vector<16x32xf32>
    %28 = arith.mulf %26, %27 : vector<16x32xf32>
    %29 = vector.broadcast %8 : vector<1x32xf32> to vector<16x32xf32>
    %30 = arith.addf %28, %29 : vector<16x32xf32>
    %c0_15 = arith.constant 0 : index
    %c0_16 = arith.constant 0 : index
    %31 = vector.load %arg2[%c0_15, %c0_16] : memref<16x32xf32, #tpu.memory_space<vmem>>, vector<16x32xf32>
    %c1 = arith.constant 1 : index
    %c0_17 = arith.constant 0 : index
    %c0_18 = arith.constant 0 : index
    %32 = vector.load %arg5[%c1, %c0_17, %c0_18] : memref<3x32x32xf32, #tpu.memory_space<vmem>>, vector<1x32x32xf32>
    %33 = vector.shape_cast %32 : vector<1x32x32xf32> to vector<32x32xf32>
    %cst_19 = arith.constant dense<0.000000e+00> : vector<16x32xf32>
    %34 = tpu.matmul %31, %33, %cst_19 {dimension_numbers = #tpu.dot_dimension_numbers<[1], [0], [0], [1], [0, 0, 1, 1], [], []>} : vector<16x32xf32>, vector<32x32xf32>, vector<16x32xf32> -> vector<16x32xf32>
    %c1_20 = arith.constant 1 : index
    %c0_21 = arith.constant 0 : index
    %35 = vector.load %arg6[%c1_20, %c0_21] : memref<3x32xf32, #tpu.memory_space<vmem>>, vector<1x32xf32>
    %36 = vector.broadcast %35 : vector<1x32xf32> to vector<16x32xf32>
    %37 = arith.addf %34, %36 : vector<16x32xf32>
    %c1_22 = arith.constant 1 : index
    %c0_23 = arith.constant 0 : index
    %38 = vector.load %arg7[%c1_22, %c0_23] : memref<3x32xf32, #tpu.memory_space<vmem>>, vector<1x32xf32>
    %c1_24 = arith.constant 1 : index
    %c0_25 = arith.constant 0 : index
    %39 = vector.load %arg8[%c1_24, %c0_25] : memref<3x32xf32, #tpu.memory_space<vmem>>, vector<1x32xf32>
    %cst_26 = arith.constant dense<0.000000e+00> : vector<16xf32>
    %40 = vector.multi_reduction <add>, %37, %cst_26 [1] : vector<16x32xf32> to vector<16xf32>
    %41 = vector.shape_cast %40 : vector<16xf32> to vector<16x1xf32>
    %cst_27 = arith.constant 3.200000e+01 : f32
    %42 = vector.broadcast %cst_27 : f32 to vector<16x1xf32>
    %43 = arith.divf %41, %42 : vector<16x1xf32>
    %44 = vector.broadcast %43 : vector<16x1xf32> to vector<16x32xf32>
    %45 = arith.subf %37, %44 : vector<16x32xf32>
    %46 = arith.mulf %45, %45 : vector<16x32xf32>
    %cst_28 = arith.constant dense<0.000000e+00> : vector<16xf32>
    %47 = vector.multi_reduction <add>, %46, %cst_28 [1] : vector<16x32xf32> to vector<16xf32>
    %48 = vector.shape_cast %47 : vector<16xf32> to vector<16x1xf32>
    %cst_29 = arith.constant 3.200000e+01 : f32
    %49 = vector.broadcast %cst_29 : f32 to vector<16x1xf32>
    %50 = arith.divf %48, %49 : vector<16x1xf32>
    %51 = vector.broadcast %43 : vector<16x1xf32> to vector<16x32xf32>
    %52 = arith.subf %37, %51 : vector<16x32xf32>
    %cst_30 = arith.constant 9.99999974E-6 : f32
    %53 = vector.broadcast %cst_30 : f32 to vector<16x1xf32>
    %54 = arith.addf %50, %53 : vector<16x1xf32>
    %55 = math.rsqrt %54 : vector<16x1xf32>
    %56 = vector.broadcast %55 : vector<16x1xf32> to vector<16x32xf32>
    %57 = arith.mulf %52, %56 : vector<16x32xf32>
    %58 = vector.broadcast %38 : vector<1x32xf32> to vector<16x32xf32>
    %59 = arith.mulf %57, %58 : vector<16x32xf32>
    %60 = vector.broadcast %39 : vector<1x32xf32> to vector<16x32xf32>
    %61 = arith.addf %59, %60 : vector<16x32xf32>
    %c0_31 = arith.constant 0 : index
    %c0_32 = arith.constant 0 : index
    %62 = vector.load %arg3[%c0_31, %c0_32] : memref<16x32xf32, #tpu.memory_space<vmem>>, vector<16x32xf32>
    %c2 = arith.constant 2 : index
    %c0_33 = arith.constant 0 : index
    %c0_34 = arith.constant 0 : index
    %63 = vector.load %arg5[%c2, %c0_33, %c0_34] : memref<3x32x32xf32, #tpu.memory_space<vmem>>, vector<1x32x32xf32>
    %64 = vector.shape_cast %63 : vector<1x32x32xf32> to vector<32x32xf32>
    %cst_35 = arith.constant dense<0.000000e+00> : vector<16x32xf32>
    %65 = tpu.matmul %62, %64, %cst_35 {dimension_numbers = #tpu.dot_dimension_numbers<[1], [0], [0], [1], [0, 0, 1, 1], [], []>} : vector<16x32xf32>, vector<32x32xf32>, vector<16x32xf32> -> vector<16x32xf32>
    %c2_36 = arith.constant 2 : index
    %c0_37 = arith.constant 0 : index
    %66 = vector.load %arg6[%c2_36, %c0_37] : memref<3x32xf32, #tpu.memory_space<vmem>>, vector<1x32xf32>
    %67 = vector.broadcast %66 : vector<1x32xf32> to vector<16x32xf32>
    %68 = arith.addf %65, %67 : vector<16x32xf32>
    %c2_38 = arith.constant 2 : index
    %c0_39 = arith.constant 0 : index
    %69 = vector.load %arg7[%c2_38, %c0_39] : memref<3x32xf32, #tpu.memory_space<vmem>>, vector<1x32xf32>
    %c2_40 = arith.constant 2 : index
    %c0_41 = arith.constant 0 : index
    %70 = vector.load %arg8[%c2_40, %c0_41] : memref<3x32xf32, #tpu.memory_space<vmem>>, vector<1x32xf32>
    %cst_42 = arith.constant dense<0.000000e+00> : vector<16xf32>
    %71 = vector.multi_reduction <add>, %68, %cst_42 [1] : vector<16x32xf32> to vector<16xf32>
    %72 = vector.shape_cast %71 : vector<16xf32> to vector<16x1xf32>
    %cst_43 = arith.constant 3.200000e+01 : f32
    %73 = vector.broadcast %cst_43 : f32 to vector<16x1xf32>
    %74 = arith.divf %72, %73 : vector<16x1xf32>
    %75 = vector.broadcast %74 : vector<16x1xf32> to vector<16x32xf32>
    %76 = arith.subf %68, %75 : vector<16x32xf32>
    %77 = arith.mulf %76, %76 : vector<16x32xf32>
    %cst_44 = arith.constant dense<0.000000e+00> : vector<16xf32>
    %78 = vector.multi_reduction <add>, %77, %cst_44 [1] : vector<16x32xf32> to vector<16xf32>
    %79 = vector.shape_cast %78 : vector<16xf32> to vector<16x1xf32>
    %cst_45 = arith.constant 3.200000e+01 : f32
    %80 = vector.broadcast %cst_45 : f32 to vector<16x1xf32>
    %81 = arith.divf %79, %80 : vector<16x1xf32>
    %82 = vector.broadcast %74 : vector<16x1xf32> to vector<16x32xf32>
    %83 = arith.subf %68, %82 : vector<16x32xf32>
    %cst_46 = arith.constant 9.99999974E-6 : f32
    %84 = vector.broadcast %cst_46 : f32 to vector<16x1xf32>
    %85 = arith.addf %81, %84 : vector<16x1xf32>
    %86 = math.rsqrt %85 : vector<16x1xf32>
    %87 = vector.broadcast %86 : vector<16x1xf32> to vector<16x32xf32>
    %88 = arith.mulf %83, %87 : vector<16x32xf32>
    %89 = vector.broadcast %69 : vector<1x32xf32> to vector<16x32xf32>
    %90 = arith.mulf %88, %89 : vector<16x32xf32>
    %91 = vector.broadcast %70 : vector<1x32xf32> to vector<16x32xf32>
    %92 = arith.addf %90, %91 : vector<16x32xf32>
    %93 = arith.mulf %30, %30 : vector<16x32xf32>
    %cst_47 = arith.constant dense<0.000000e+00> : vector<16xf32>
    %94 = vector.multi_reduction <add>, %93, %cst_47 [1] : vector<16x32xf32> to vector<16xf32>
    %95 = vector.shape_cast %94 : vector<16xf32> to vector<16x1xf32>
    %96 = arith.mulf %61, %61 : vector<16x32xf32>
    %cst_48 = arith.constant dense<0.000000e+00> : vector<16xf32>
    %97 = vector.multi_reduction <add>, %96, %cst_48 [1] : vector<16x32xf32> to vector<16xf32>
    %98 = vector.shape_cast %97 : vector<16xf32> to vector<16x1xf32>
    %99 = math.sqrt %95 : vector<16x1xf32>
    %cst_49 = arith.constant 9.99999997E-7 : f32
    %100 = vector.broadcast %cst_49 : f32 to vector<16x1xf32>
    %101 = arith.addf %99, %100 : vector<16x1xf32>
    %cst_50 = arith.constant 1.000000e+00 : f32
    %102 = vector.broadcast %cst_50 : f32 to vector<16x1xf32>
    %103 = arith.divf %102, %101 : vector<16x1xf32>
    %104 = math.sqrt %98 : vector<16x1xf32>
    %cst_51 = arith.constant 9.99999997E-7 : f32
    %105 = vector.broadcast %cst_51 : f32 to vector<16x1xf32>
    %106 = arith.addf %104, %105 : vector<16x1xf32>
    %cst_52 = arith.constant 1.000000e+00 : f32
    %107 = vector.broadcast %cst_52 : f32 to vector<16x1xf32>
    %108 = arith.divf %107, %106 : vector<16x1xf32>
    %109 = vector.broadcast %103 : vector<16x1xf32> to vector<16x32xf32>
    %110 = arith.mulf %30, %109 : vector<16x32xf32>
    %111 = vector.broadcast %108 : vector<16x1xf32> to vector<16x32xf32>
    %112 = arith.mulf %61, %111 : vector<16x32xf32>
    %113 = arith.mulf %95, %103 : vector<16x1xf32>
    %114 = arith.mulf %113, %103 : vector<16x1xf32>
    %115 = arith.mulf %98, %108 : vector<16x1xf32>
    %116 = arith.mulf %115, %108 : vector<16x1xf32>
    %117 = arith.mulf %110, %112 : vector<16x32xf32>
    %cst_53 = arith.constant dense<0.000000e+00> : vector<16xf32>
    %118 = vector.multi_reduction <add>, %117, %cst_53 [1] : vector<16x32xf32> to vector<16xf32>
    %119 = vector.shape_cast %118 : vector<16xf32> to vector<16x1xf32>
    %cst_54 = arith.constant 0.000000e+00 : f32
    %120 = vector.broadcast %cst_54 : f32 to vector<16x1xf32>
    %121 = arith.maximumf %119, %120 : vector<16x1xf32>
    %122 = arith.addf %114, %121 : vector<16x1xf32>
    %123 = arith.addf %116, %121 : vector<16x1xf32>
    %c0_55 = arith.constant 0 : index
    %c0_56 = arith.constant 0 : index
    %124 = vector.load %arg9[%c0_55, %c0_56] : memref<1x32xf32, #tpu.memory_space<vmem>>, vector<1x32xf32>
    %125 = vector.broadcast %124 : vector<1x32xf32> to vector<16x32xf32>
    %126 = arith.mulf %92, %125 : vector<16x32xf32>
    %c0_57 = arith.constant 0 : index
    %127 = memref.load %arg20[%c0_57] : memref<1xf32, #tpu.memory_space<smem>>
    %128 = vector.broadcast %127 : f32 to vector<1x1xf32>
    %129 = arith.mulf %30, %126 : vector<16x32xf32>
    %cst_58 = arith.constant dense<0.000000e+00> : vector<16xf32>
    %130 = vector.multi_reduction <add>, %129, %cst_58 [1] : vector<16x32xf32> to vector<16xf32>
    %131 = vector.shape_cast %130 : vector<16xf32> to vector<16x1xf32>
    %132 = vector.broadcast %128 : vector<1x1xf32> to vector<16x1xf32>
    %133 = arith.addf %131, %132 : vector<16x1xf32>
    %cst_59 = arith.constant 0.000000e+00 : f32
    %134 = vector.broadcast %cst_59 : f32 to vector<16x1xf32>
    %135 = arith.maximumf %133, %134 : vector<16x1xf32>
    %cst_60 = arith.constant 9.99999997E-7 : f32
    %136 = vector.broadcast %cst_60 : f32 to vector<16x1xf32>
    %137 = arith.addf %122, %136 : vector<16x1xf32>
    %cst_61 = arith.constant 1.000000e+00 : f32
    %138 = vector.broadcast %cst_61 : f32 to vector<16x1xf32>
    %139 = arith.divf %138, %137 : vector<16x1xf32>
    %140 = arith.mulf %135, %139 : vector<16x1xf32>
    %141 = arith.mulf %61, %126 : vector<16x32xf32>
    %cst_62 = arith.constant dense<0.000000e+00> : vector<16xf32>
    %142 = vector.multi_reduction <add>, %141, %cst_62 [1] : vector<16x32xf32> to vector<16xf32>
    %143 = vector.shape_cast %142 : vector<16xf32> to vector<16x1xf32>
    %144 = vector.broadcast %128 : vector<1x1xf32> to vector<16x1xf32>
    %145 = arith.addf %143, %144 : vector<16x1xf32>
    %cst_63 = arith.constant 0.000000e+00 : f32
    %146 = vector.broadcast %cst_63 : f32 to vector<16x1xf32>
    %147 = arith.maximumf %145, %146 : vector<16x1xf32>
    %cst_64 = arith.constant 9.99999997E-7 : f32
    %148 = vector.broadcast %cst_64 : f32 to vector<16x1xf32>
    %149 = arith.addf %123, %148 : vector<16x1xf32>
    %cst_65 = arith.constant 1.000000e+00 : f32
    %150 = vector.broadcast %cst_65 : f32 to vector<16x1xf32>
    %151 = arith.divf %150, %149 : vector<16x1xf32>
    %152 = arith.mulf %147, %151 : vector<16x1xf32>
    %153 = arith.addf %140, %152 : vector<16x1xf32>
    %cst_66 = arith.constant 9.99999997E-7 : f32
    %154 = vector.broadcast %cst_66 : f32 to vector<16x1xf32>
    %155 = arith.addf %153, %154 : vector<16x1xf32>
    %cst_67 = arith.constant 1.000000e+00 : f32
    %156 = vector.broadcast %cst_67 : f32 to vector<16x1xf32>
    %157 = arith.divf %156, %155 : vector<16x1xf32>
    %158 = arith.mulf %140, %157 : vector<16x1xf32>
    %159 = vector.broadcast %158 : vector<16x1xf32> to vector<16x32xf32>
    %160 = arith.mulf %159, %30 : vector<16x32xf32>
    %161 = arith.mulf %152, %157 : vector<16x1xf32>
    %162 = vector.broadcast %161 : vector<16x1xf32> to vector<16x32xf32>
    %163 = arith.mulf %162, %61 : vector<16x32xf32>
    %164 = arith.addf %160, %163 : vector<16x32xf32>
    %c0_68 = arith.constant 0 : index
    %c0_69 = arith.constant 0 : index
    %165 = vector.load %arg10[%c0_68, %c0_69] : memref<32x32xf32, #tpu.memory_space<vmem>>, vector<32x32xf32>
    %cst_70 = arith.constant dense<0.000000e+00> : vector<16x32xf32>
    %166 = tpu.matmul %164, %165, %cst_70 {dimension_numbers = #tpu.dot_dimension_numbers<[1], [0], [0], [1], [0, 0, 1, 1], [], []>} : vector<16x32xf32>, vector<32x32xf32>, vector<16x32xf32> -> vector<16x32xf32>
    %c0_71 = arith.constant 0 : index
    %c0_72 = arith.constant 0 : index
    %167 = vector.load %arg11[%c0_71, %c0_72] : memref<1x32xf32, #tpu.memory_space<vmem>>, vector<1x32xf32>
    %168 = vector.broadcast %167 : vector<1x32xf32> to vector<16x32xf32>
    %169 = arith.addf %166, %168 : vector<16x32xf32>
    %cst_73 = arith.constant 0.000000e+00 : f32
    %170 = vector.broadcast %cst_73 : f32 to vector<16x32xf32>
    %171 = arith.maximumf %169, %170 : vector<16x32xf32>
    %c0_74 = arith.constant 0 : index
    %c0_75 = arith.constant 0 : index
    %172 = vector.load %arg12[%c0_74, %c0_75] : memref<32x32xf32, #tpu.memory_space<vmem>>, vector<32x32xf32>
    %cst_76 = arith.constant dense<0.000000e+00> : vector<16x32xf32>
    %173 = tpu.matmul %171, %172, %cst_76 {dimension_numbers = #tpu.dot_dimension_numbers<[1], [0], [0], [1], [0, 0, 1, 1], [], []>} : vector<16x32xf32>, vector<32x32xf32>, vector<16x32xf32> -> vector<16x32xf32>
    %c0_77 = arith.constant 0 : index
    %c0_78 = arith.constant 0 : index
    %174 = vector.load %arg13[%c0_77, %c0_78] : memref<1x32xf32, #tpu.memory_space<vmem>>, vector<1x32xf32>
    %175 = vector.broadcast %174 : vector<1x32xf32> to vector<16x32xf32>
    %176 = arith.addf %173, %175 : vector<16x32xf32>
    %c0_79 = arith.constant 0 : index
    %c0_80 = arith.constant 0 : index
    %177 = vector.load %arg14[%c0_79, %c0_80] : memref<1x32xf32, #tpu.memory_space<vmem>>, vector<1x32xf32>
    %c0_81 = arith.constant 0 : index
    %c0_82 = arith.constant 0 : index
    %178 = vector.load %arg15[%c0_81, %c0_82] : memref<1x32xf32, #tpu.memory_space<vmem>>, vector<1x32xf32>
    %cst_83 = arith.constant dense<0.000000e+00> : vector<16xf32>
    %179 = vector.multi_reduction <add>, %176, %cst_83 [1] : vector<16x32xf32> to vector<16xf32>
    %180 = vector.shape_cast %179 : vector<16xf32> to vector<16x1xf32>
    %cst_84 = arith.constant 3.200000e+01 : f32
    %181 = vector.broadcast %cst_84 : f32 to vector<16x1xf32>
    %182 = arith.divf %180, %181 : vector<16x1xf32>
    %183 = vector.broadcast %182 : vector<16x1xf32> to vector<16x32xf32>
    %184 = arith.subf %176, %183 : vector<16x32xf32>
    %185 = arith.mulf %184, %184 : vector<16x32xf32>
    %cst_85 = arith.constant dense<0.000000e+00> : vector<16xf32>
    %186 = vector.multi_reduction <add>, %185, %cst_85 [1] : vector<16x32xf32> to vector<16xf32>
    %187 = vector.shape_cast %186 : vector<16xf32> to vector<16x1xf32>
    %cst_86 = arith.constant 3.200000e+01 : f32
    %188 = vector.broadcast %cst_86 : f32 to vector<16x1xf32>
    %189 = arith.divf %187, %188 : vector<16x1xf32>
    %190 = vector.broadcast %182 : vector<16x1xf32> to vector<16x32xf32>
    %191 = arith.subf %176, %190 : vector<16x32xf32>
    %cst_87 = arith.constant 9.99999974E-6 : f32
    %192 = vector.broadcast %cst_87 : f32 to vector<16x1xf32>
    %193 = arith.addf %189, %192 : vector<16x1xf32>
    %194 = math.rsqrt %193 : vector<16x1xf32>
    %195 = vector.broadcast %194 : vector<16x1xf32> to vector<16x32xf32>
    %196 = arith.mulf %191, %195 : vector<16x32xf32>
    %197 = vector.broadcast %177 : vector<1x32xf32> to vector<16x32xf32>
    %198 = arith.mulf %196, %197 : vector<16x32xf32>
    %199 = vector.broadcast %178 : vector<1x32xf32> to vector<16x32xf32>
    %200 = arith.addf %198, %199 : vector<16x32xf32>
    %201 = arith.addf %200, %92 : vector<16x32xf32>
    %cst_88 = arith.constant 0.000000e+00 : f32
    %202 = vector.broadcast %cst_88 : f32 to vector<16x32xf32>
    %203 = arith.maximumf %201, %202 : vector<16x32xf32>
    %c0_89 = arith.constant 0 : index
    %c0_90 = arith.constant 0 : index
    %204 = vector.load %arg16[%c0_89, %c0_90] : memref<32x32xf32, #tpu.memory_space<vmem>>, vector<32x32xf32>
    %cst_91 = arith.constant dense<0.000000e+00> : vector<16x32xf32>
    %205 = tpu.matmul %203, %204, %cst_91 {dimension_numbers = #tpu.dot_dimension_numbers<[1], [0], [0], [1], [0, 0, 1, 1], [], []>} : vector<16x32xf32>, vector<32x32xf32>, vector<16x32xf32> -> vector<16x32xf32>
    %c0_92 = arith.constant 0 : index
    %c0_93 = arith.constant 0 : index
    %206 = vector.load %arg17[%c0_92, %c0_93] : memref<1x32xf32, #tpu.memory_space<vmem>>, vector<1x32xf32>
    %207 = vector.broadcast %206 : vector<1x32xf32> to vector<16x32xf32>
    %208 = arith.addf %205, %207 : vector<16x32xf32>
    %c0_94 = arith.constant 0 : index
    %c0_95 = arith.constant 0 : index
    %209 = vector.load %arg18[%c0_94, %c0_95] : memref<1x32xf32, #tpu.memory_space<vmem>>, vector<1x32xf32>
    %c0_96 = arith.constant 0 : index
    %c0_97 = arith.constant 0 : index
    %210 = vector.load %arg19[%c0_96, %c0_97] : memref<1x32xf32, #tpu.memory_space<vmem>>, vector<1x32xf32>
    %cst_98 = arith.constant dense<0.000000e+00> : vector<16xf32>
    %211 = vector.multi_reduction <add>, %208, %cst_98 [1] : vector<16x32xf32> to vector<16xf32>
    %212 = vector.shape_cast %211 : vector<16xf32> to vector<16x1xf32>
    %cst_99 = arith.constant 3.200000e+01 : f32
    %213 = vector.broadcast %cst_99 : f32 to vector<16x1xf32>
    %214 = arith.divf %212, %213 : vector<16x1xf32>
    %215 = vector.broadcast %214 : vector<16x1xf32> to vector<16x32xf32>
    %216 = arith.subf %208, %215 : vector<16x32xf32>
    %217 = arith.mulf %216, %216 : vector<16x32xf32>
    %cst_100 = arith.constant dense<0.000000e+00> : vector<16xf32>
    %218 = vector.multi_reduction <add>, %217, %cst_100 [1] : vector<16x32xf32> to vector<16xf32>
    %219 = vector.shape_cast %218 : vector<16xf32> to vector<16x1xf32>
    %cst_101 = arith.constant 3.200000e+01 : f32
    %220 = vector.broadcast %cst_101 : f32 to vector<16x1xf32>
    %221 = arith.divf %219, %220 : vector<16x1xf32>
    %222 = vector.broadcast %214 : vector<16x1xf32> to vector<16x32xf32>
    %223 = arith.subf %208, %222 : vector<16x32xf32>
    %cst_102 = arith.constant 9.99999974E-6 : f32
    %224 = vector.broadcast %cst_102 : f32 to vector<16x1xf32>
    %225 = arith.addf %221, %224 : vector<16x1xf32>
    %226 = math.rsqrt %225 : vector<16x1xf32>
    %227 = vector.broadcast %226 : vector<16x1xf32> to vector<16x32xf32>
    %228 = arith.mulf %223, %227 : vector<16x32xf32>
    %229 = vector.broadcast %209 : vector<1x32xf32> to vector<16x32xf32>
    %230 = arith.mulf %228, %229 : vector<16x32xf32>
    %231 = vector.broadcast %210 : vector<1x32xf32> to vector<16x32xf32>
    %232 = arith.addf %230, %231 : vector<16x32xf32>
    %c0_103 = arith.constant 0 : index
    %233 = memref.load %arg21[%c0_103] : memref<1xf32, #tpu.memory_space<smem>>
    %234 = vector.broadcast %233 : f32 to vector<1x1xf32>
    %cst_104 = arith.constant 1.000000e-01 : f32
    %235 = vector.broadcast %cst_104 : f32 to vector<1x1xf32>
    %236 = arith.divf %234, %235 : vector<1x1xf32>
    %237 = math.tanh %236 : vector<1x1xf32>
    %c0_105 = arith.constant 0 : index
    %c0_106 = arith.constant 0 : index
    %238 = vector.load %arg4[%c0_105, %c0_106] : memref<16x32xf32, #tpu.memory_space<vmem>>, vector<16x32xf32>
    %239 = vector.broadcast %237 : vector<1x1xf32> to vector<16x32xf32>
    %240 = arith.mulf %239, %238 : vector<16x32xf32>
    %241 = arith.addf %232, %240 : vector<16x32xf32>
    %c0_107 = arith.constant 0 : index
    %c0_108 = arith.constant 0 : index
    %242 = vector.load %arg22[%c0_107, %c0_108] : memref<16x32xf32, #tpu.memory_space<vmem>>, vector<16x32xf32>
    tpu.vector_store %arg22[%c0_107, %c0_108], %241 {strides = array<i32>} : memref<16x32xf32, #tpu.memory_space<vmem>>, vector<16x32xf32>,
    return
  }
  func.func @transform_0(%arg0: i32) -> (i32, i32) {
    %c0_i32 = arith.constant 0 : i32
    %c0_i32_0 = arith.constant 0 : i32
    return %arg0, %c0_i32 : i32, i32
  }
  func.func @transform_1(%arg0: i32) -> (i32, i32) {
    %c0_i32 = arith.constant 0 : i32
    %c0_i32_0 = arith.constant 0 : i32
    return %arg0, %c0_i32 : i32, i32
  }
  func.func @transform_2(%arg0: i32) -> (i32, i32) {
    %c0_i32 = arith.constant 0 : i32
    %c0_i32_0 = arith.constant 0 : i32
    return %arg0, %c0_i32 : i32, i32
  }
  func.func @transform_3(%arg0: i32) -> (i32, i32) {
    %c0_i32 = arith.constant 0 : i32
    %c0_i32_0 = arith.constant 0 : i32
    return %arg0, %c0_i32 : i32, i32
  }
  func.func @transform_4(%arg0: i32) -> (i32, i32, i32) {
    %c0_i32 = arith.constant 0 : i32
    %c0_i32_0 = arith.constant 0 : i32
    %c0_i32_1 = arith.constant 0 : i32
    %c0_i32_2 = arith.constant 0 : i32
    return %c0_i32, %c0_i32_0, %c0_i32_1 : i32, i32, i32
  }
  func.func @transform_5(%arg0: i32) -> (i32, i32) {
    %c0_i32 = arith.constant 0 : i32
    %c0_i32_0 = arith.constant 0 : i32
    %c0_i32_1 = arith.constant 0 : i32
    return %c0_i32, %c0_i32_0 : i32, i32
  }
  func.func @transform_6(%arg0: i32) -> (i32, i32) {
    %c0_i32 = arith.constant 0 : i32
    %c0_i32_0 = arith.constant 0 : i32
    %c0_i32_1 = arith.constant 0 : i32
    return %c0_i32, %c0_i32_0 : i32, i32
  }
  func.func @transform_7(%arg0: i32) -> (i32, i32) {
    %c0_i32 = arith.constant 0 : i32
    %c0_i32_0 = arith.constant 0 : i32
    %c0_i32_1 = arith.constant 0 : i32
    return %c0_i32, %c0_i32_0 : i32, i32
  }
  func.func @transform_8(%arg0: i32) -> (i32, i32) {
    %c0_i32 = arith.constant 0 : i32
    %c0_i32_0 = arith.constant 0 : i32
    %c0_i32_1 = arith.constant 0 : i32
    return %c0_i32, %c0_i32_0 : i32, i32
  }
  func.func @transform_9(%arg0: i32) -> (i32, i32) {
    %c0_i32 = arith.constant 0 : i32
    %c0_i32_0 = arith.constant 0 : i32
    %c0_i32_1 = arith.constant 0 : i32
    return %c0_i32, %c0_i32_0 : i32, i32
  }
  func.func @transform_10(%arg0: i32) -> (i32, i32) {
    %c0_i32 = arith.constant 0 : i32
    %c0_i32_0 = arith.constant 0 : i32
    %c0_i32_1 = arith.constant 0 : i32
    return %c0_i32, %c0_i32_0 : i32, i32
  }
  func.func @transform_11(%arg0: i32) -> (i32, i32) {
    %c0_i32 = arith.constant 0 : i32
    %c0_i32_0 = arith.constant 0 : i32
    %c0_i32_1 = arith.constant 0 : i32
    return %c0_i32, %c0_i32_0 : i32, i32
  }
  func.func @transform_12(%arg0: i32) -> (i32, i32) {
    %c0_i32 = arith.constant 0 : i32
    %c0_i32_0 = arith.constant 0 : i32
    %c0_i32_1 = arith.constant 0 : i32
    return %c0_i32, %c0_i32_0 : i32, i32
  }
  func.func @transform_13(%arg0: i32) -> (i32, i32) {
    %c0_i32 = arith.constant 0 : i32
    %c0_i32_0 = arith.constant 0 : i32
    %c0_i32_1 = arith.constant 0 : i32
    return %c0_i32, %c0_i32_0 : i32, i32
  }
  func.func @transform_14(%arg0: i32) -> (i32, i32) {
    %c0_i32 = arith.constant 0 : i32
    %c0_i32_0 = arith.constant 0 : i32
    %c0_i32_1 = arith.constant 0 : i32
    return %c0_i32, %c0_i32_0 : i32, i32
  }
  func.func @transform_15(%arg0: i32) -> (i32, i32) {
    %c0_i32 = arith.constant 0 : i32
    %c0_i32_0 = arith.constant 0 : i32
    %c0_i32_1 = arith.constant 0 : i32
    return %c0_i32, %c0_i32_0 : i32, i32
  }
  func.func @transform_16(%arg0: i32) -> (i32, i32) {
    %c0_i32 = arith.constant 0 : i32
    %c0_i32_0 = arith.constant 0 : i32
    %c0_i32_1 = arith.constant 0 : i32
    return %c0_i32, %c0_i32_0 : i32, i32
  }
  func.func @transform_17(%arg0: i32) -> (i32, i32) {
    %c0_i32 = arith.constant 0 : i32
    %c0_i32_0 = arith.constant 0 : i32
    %c0_i32_1 = arith.constant 0 : i32
    return %c0_i32, %c0_i32_0 : i32, i32
  }
  func.func @transform_18(%arg0: i32) -> (i32, i32) {
    %c0_i32 = arith.constant 0 : i32
    %c0_i32_0 = arith.constant 0 : i32
    %c0_i32_1 = arith.constant 0 : i32
    return %c0_i32, %c0_i32_0 : i32, i32
  }
  func.func @transform_19(%arg0: i32) -> i32 {
    %c0_i32 = arith.constant 0 : i32
    %c0_i32_0 = arith.constant 0 : i32
    return %c0_i32 : i32
  }
  func.func @transform_20(%arg0: i32) -> i32 {
    %c0_i32 = arith.constant 0 : i32
    %c0_i32_0 = arith.constant 0 : i32
    return %c0_i32 : i32
  }
  func.func @transform_21(%arg0: i32) -> (i32, i32) {
    %c0_i32 = arith.constant 0 : i32
    %c0_i32_0 = arith.constant 0 : i32
    return %arg0, %c0_i32 : i32, i32
  }
}

</mosaic_0001>

<llo_original>
// kernel: tpu_custom_call.1
$region0: #{tpu_custom_call.1}
  #allocation0 [shape = 'u32[]', space=smem, size = 0x4, offset = 0x4, fixed_abs, tag = 'smem constant byte address 0x4 - core index']
  #allocation1 [shape = 'u32[144,128]{1,0:T(1,128)}', space=vmem, size = 0x12000, scoped, tag = 'internal scratch']
  #allocation2 [shape = 'f32[1]{0:T(128)S(6)}', space=smem, size = 0x200, scoped, tag = 'scoped memory for tpu_custom_call.1']
  #allocation3 [shape = 'f32[1]{0:T(128)S(6)}', space=smem, size = 0x200, scoped, tag = 'scoped memory for tpu_custom_call.1']
  %s0 = inlined_call_operand.hbm [shape: f32[16,32], index: 0, kind: input, shape index: {}]
  %s1 = inlined_call_operand.hbm [shape: f32[16,32], index: 1, kind: input, shape index: {}]
  %s2 = inlined_call_operand.hbm [shape: f32[16,32], index: 2, kind: input, shape index: {}]
  %s3 = inlined_call_operand.hbm [shape: f32[16,32], index: 3, kind: input, shape index: {}]
  %s4 = inlined_call_operand.hbm [shape: f32[3,32,32], index: 4, kind: input, shape index: {}]
  %s5 = inlined_call_operand.vmem [shape: f32[3,32], index: 5, kind: input, shape index: {}]
  %s6 = inlined_call_operand.vmem [shape: f32[3,32], index: 6, kind: input, shape index: {}]
  %s7 = inlined_call_operand.vmem [shape: f32[3,32], index: 7, kind: input, shape index: {}]
  %s8 = inlined_call_operand.vmem [shape: f32[1,32], index: 8, kind: input, shape index: {}]
  %s9 = inlined_call_operand.hbm [shape: f32[32,32], index: 9, kind: input, shape index: {}]
  %s10 = inlined_call_operand.vmem [shape: f32[1,32], index: 10, kind: input, shape index: {}]
  %s11 = inlined_call_operand.hbm [shape: f32[32,32], index: 11, kind: input, shape index: {}]
  %s12 = inlined_call_operand.vmem [shape: f32[1,32], index: 12, kind: input, shape index: {}]
  %s13 = inlined_call_operand.vmem [shape: f32[1,32], index: 13, kind: input, shape index: {}]
  %s14 = inlined_call_operand.vmem [shape: f32[1,32], index: 14, kind: input, shape index: {}]
  %s15 = inlined_call_operand.hbm [shape: f32[32,32], index: 15, kind: input, shape index: {}]
  %s16 = inlined_call_operand.vmem [shape: f32[1,32], index: 16, kind: input, shape index: {}]
  %s17 = inlined_call_operand.vmem [shape: f32[1,32], index: 17, kind: input, shape index: {}]
  %s18 = inlined_call_operand.vmem [shape: f32[1,32], index: 18, kind: input, shape index: {}]
  %s19 = inlined_call_operand.<no memory space> [shape: f32[1], index: 19, kind: input, shape index: {}]
  %s20 = inlined_call_operand.<no memory space> [shape: f32[1], index: 20, kind: input, shape index: {}]
  %s21 = inlined_call_operand.hbm [shape: f32[16,32], index: 21, kind: output, shape index: {}]
  %s22 = sld [smem:[#allocation0]]
  $region126: #{tpu_custom_call.1} parent=0
    _
  %s24 = ssub.s32 1, %s22
  %s25 = scalar_select 0, %s24, %s22
  %26 = sst [smem:[#allocation2]] %s19
  %27 = sst [smem:[#allocation3]] %s20
  $region1: #{tpu_custom_call.1} parent=0
    #allocation4 [shape = 'u8[8192]{0}', space=vmem, size = 0x2000, scoped, tag = 'input window, operand 0, single buffered']
    #allocation5 [shape = 's32[1]{0}', space=sflag, size = 0x4, scoped, tag = 'scoped memory for tpu_custom_call.1']
    #allocation6 [shape = 's32[1]{0}', space=sflag, size = 0x4, scoped, tag = 'scoped memory for tpu_custom_call.1']
    #allocation7 [shape = 'u8[8192]{0}', space=vmem, size = 0x2000, scoped, tag = 'input window, operand 1, single buffered']
    #allocation8 [shape = 's32[1]{0}', space=sflag, size = 0x4, scoped, tag = 'scoped memory for tpu_custom_call.1']
    #allocation9 [shape = 'u8[8192]{0}', space=vmem, size = 0x2000, scoped, tag = 'input window, operand 2, single buffered']
    #allocation10 [shape = 'u8[8192]{0}', space=vmem, size = 0x2000, scoped, tag = 'input window, operand 3, single buffered']
    #allocation11 [shape = 's32[1]{0}', space=sflag, size = 0x4, scoped, tag = 'scoped memory for tpu_custom_call.1']
    #allocation12 [shape = 'u8[49152]{0}', space=vmem, size = 0xc000, scoped, tag = 'input window, operand 4, single buffered']
    #allocation13 [shape = 'u8[16384]{0}', space=vmem, size = 0x4000, scoped, tag = 'input window, operand 9, single buffered']
    #allocation14 [shape = 's32[1]{0}', space=sflag, size = 0x4, scoped, tag = 'scoped memory for tpu_custom_call.1']
    #allocation15 [shape = 'u8[16384]{0}', space=vmem, size = 0x4000, scoped, tag = 'input window, operand 11, single buffered']
    #allocation16 [shape = 'u8[16384]{0}', space=vmem, size = 0x4000, scoped, tag = 'input window, operand 15, single buffered']
    #allocation17 [shape = 's32[1]{0}', space=sflag, size = 0x4, scoped, tag = 'scoped memory for tpu_custom_call.1']
    #allocation18 [shape = 'u8[8192]{0}', space=vmem, size = 0x2000, scoped, tag = 'output window, operand 0, single buffered']
    %28 = vsyncpa [#allocation5], 0
    %29 = vsyncpa [#allocation8], 0
    %30 = vsyncpa [#allocation11], 0
    %31 = vsyncpa [#allocation14], 0
    %32 = vsyncpa [#allocation17], 0
    %33 = vsyncpa [#allocation6], 0
    // Predicated region
    $region2: #{tpu_custom_call.1} parent=1 // pred_check
      _
    $region3: #{tpu_custom_call.1} parent=1 // pred_check_branch
      %35 = sbr.rel (0) target = $region5
    $region4: #{tpu_custom_call.1} parent=1 // pred_region
      %s37 = ssub.s32 256, 256
      %38 = vsyncadd [#allocation5], %s37
      %s39 = sshll.u32 [#allocation4], 4
      %s40 = int_to_ptr.vmem [resolvable:$true] %s39
      %45 = dma.hbm_to_vmem [thread:$0]  %s0, 256, %s40, [#allocation5], 128, 128, 8
    $region5: #{tpu_custom_call.1} parent=1 // pred_fallthru
      _
    // Predicated region
    $region6: #{tpu_custom_call.1} parent=1 // pred_check
      _
    $region7: #{tpu_custom_call.1} parent=1 // pred_check_branch
      %47 = sbr.rel (0) target = $region9
    $region8: #{tpu_custom_call.1} parent=1 // pred_region
      %s49 = ssub.s32 256, 256
      %50 = vsyncadd [#allocation8], %s49
      %s51 = sshll.u32 [#allocation7], 4
      %s52 = int_to_ptr.vmem [resolvable:$true] %s51
      %57 = dma.hbm_to_vmem [thread:$0]  %s1, 256, %s52, [#allocation8], 128, 128, 8
    $region9: #{tpu_custom_call.1} parent=1 // pred_fallthru
      _
    // Predicated region
    $region10: #{tpu_custom_call.1} parent=1 // pred_check
      _
    $region11: #{tpu_custom_call.1} parent=1 // pred_check_branch
      %59 = sbr.rel (0) target = $region13
    $region12: #{tpu_custom_call.1} parent=1 // pred_region
      %s61 = ssub.s32 256, 256
      %62 = vsyncadd [#allocation8], %s61
      %s63 = sshll.u32 [#allocation9], 4
      %s64 = int_to_ptr.vmem [resolvable:$true] %s63
      %69 = dma.hbm_to_vmem [thread:$0]  %s2, 256, %s64, [#allocation8], 128, 128, 8
    $region13: #{tpu_custom_call.1} parent=1 // pred_fallthru
      _
    // Predicated region
    $region14: #{tpu_custom_call.1} parent=1 // pred_check
      _
    $region15: #{tpu_custom_call.1} parent=1 // pred_check_branch
      %71 = sbr.rel (0) target = $region17
    $region16: #{tpu_custom_call.1} parent=1 // pred_region
      %s73 = ssub.s32 256, 256
      %74 = vsyncadd [#allocation11], %s73
      %s75 = sshll.u32 [#allocation10], 4
      %s76 = int_to_ptr.vmem [resolvable:$true] %s75
      %81 = dma.hbm_to_vmem [thread:$0]  %s3, 256, %s76, [#allocation11], 128, 128, 8
    $region17: #{tpu_custom_call.1} parent=1 // pred_fallthru
      _
    // Predicated region
    $region18: #{tpu_custom_call.1} parent=1 // pred_check
      _
    $region19: #{tpu_custom_call.1} parent=1 // pred_check_branch
      %83 = sbr.rel (0) target = $region21
    $region20: #{tpu_custom_call.1} parent=1 // pred_region
      %s85 = ssub.s32 1536, 1536
      %86 = vsyncadd [#allocation11], %s85
      %s87 = sshll.u32 [#allocation12], 4
      %s88 = int_to_ptr.vmem [resolvable:$true] %s87
      %93 = dma.hbm_to_vmem [thread:$0]  %s4, 1536, %s88, [#allocation11], 128, 128, 8
    $region21: #{tpu_custom_call.1} parent=1 // pred_fallthru
      _
    // Predicated region
    $region22: #{tpu_custom_call.1} parent=1 // pred_check
      _
    $region23: #{tpu_custom_call.1} parent=1 // pred_check_branch
      %95 = sbr.rel (0) target = $region25
    $region24: #{tpu_custom_call.1} parent=1 // pred_region
      _
    $region25: #{tpu_custom_call.1} parent=1 // pred_fallthru
      _
    // Predicated region
    $region26: #{tpu_custom_call.1} parent=1 // pred_check
      _
    $region27: #{tpu_custom_call.1} parent=1 // pred_check_branch
      %97 = sbr.rel (0) target = $region29
    $region28: #{tpu_custom_call.1} parent=1 // pred_region
      _
    $region29: #{tpu_custom_call.1} parent=1 // pred_fallthru
      _
    // Predicated region
    $region30: #{tpu_custom_call.1} parent=1 // pred_check
      _
    $region31: #{tpu_custom_call.1} parent=1 // pred_check_branch
      %99 = sbr.rel (0) target = $region33
    $region32: #{tpu_custom_call.1} parent=1 // pred_region
      _
    $region33: #{tpu_custom_call.1} parent=1 // pred_fallthru
      _
    // Predicated region
    $region34: #{tpu_custom_call.1} parent=1 // pred_check
      _
    $region35: #{tpu_custom_call.1} parent=1 // pred_check_branch
      %101 = sbr.rel (0) target = $region37
    $region36: #{tpu_custom_call.1} parent=1 // pred_region
      _
    $region37: #{tpu_custom_call.1} parent=1 // pred_fallthru
      _
    // Predicated region
    $region38: #{tpu_custom_call.1} parent=1 // pred_check
      _
    $region39: #{tpu_custom_call.1} parent=1 // pred_check_branch
      %103 = sbr.rel (0) target = $region41
    $region40: #{tpu_custom_call.1} parent=1 // pred_region
      %s105 = ssub.s32 512, 512
      %106 = vsyncadd [#allocation14], %s105
      %s107 = sshll.u32 [#allocation13], 4
      %s108 = int_to_ptr.vmem [resolvable:$true] %s107
      %113 = dma.hbm_to_vmem [thread:$0]  %s9, 512, %s108, [#allocation14], 128, 128, 8
    $region41: #{tpu_custom_call.1} parent=1 // pred_fallthru
      _
    // Predicated region
    $region42: #{tpu_custom_call.1} parent=1 // pred_check
      _
    $region43: #{tpu_custom_call.1} parent=1 // pred_check_branch
      %115 = sbr.rel (0) target = $region45
    $region44: #{tpu_custom_call.1} parent=1 // pred_region
      _
    $region45: #{tpu_custom_call.1} parent=1 // pred_fallthru
      _
    // Predicated region
    $region46: #{tpu_custom_call.1} parent=1 // pred_check
      _
    $region47: #{tpu_custom_call.1} parent=1 // pred_check_branch
      %117 = sbr.rel (0) target = $region49
    $region48: #{tpu_custom_call.1} parent=1 // pred_region
      %s119 = ssub.s32 512, 512
      %120 = vsyncadd [#allocation14], %s119
      %s121 = sshll.u32 [#allocation15], 4
      %s122 = int_to_ptr.vmem [resolvable:$true] %s121
      %127 = dma.hbm_to_vmem [thread:$0]  %s11, 512, %s122, [#allocation14], 128, 128, 8
    $region49: #{tpu_custom_call.1} parent=1 // pred_fallthru
      _
    // Predicated region
    $region50: #{tpu_custom_call.1} parent=1 // pred_check
      _
    $region51: #{tpu_custom_call.1} parent=1 // pred_check_branch
      %129 = sbr.rel (0) target = $region53
    $region52: #{tpu_custom_call.1} parent=1 // pred_region
      _
    $region53: #{tpu_custom_call.1} parent=1 // pred_fallthru
      _
    // Predicated region
    $region54: #{tpu_custom_call.1} parent=1 // pred_check
      _
    $region55: #{tpu_custom_call.1} parent=1 // pred_check_branch
      %131 = sbr.rel (0) target = $region57
    $region56: #{tpu_custom_call.1} parent=1 // pred_region
      _
    $region57: #{tpu_custom_call.1} parent=1 // pred_fallthru
      _
    // Predicated region
    $region58: #{tpu_custom_call.1} parent=1 // pred_check
      _
    $region59: #{tpu_custom_call.1} parent=1 // pred_check_branch
      %133 = sbr.rel (0) target = $region61
    $region60: #{tpu_custom_call.1} parent=1 // pred_region
      _
    $region61: #{tpu_custom_call.1} parent=1 // pred_fallthru
      _
    // Predicated region
    $region62: #{tpu_custom_call.1} parent=1 // pred_check
      _
    $region63: #{tpu_custom_call.1} parent=1 // pred_check_branch
      %135 = sbr.rel (0) target = $region65
    $region64: #{tpu_custom_call.1} parent=1 // pred_region
      %s137 = ssub.s32 512, 512
      %138 = vsyncadd [#allocation17], %s137
      %s139 = sshll.u32 [#allocation16], 4
      %s140 = int_to_ptr.vmem [resolvable:$true] %s139
      %145 = dma.hbm_to_vmem [thread:$0]  %s15, 512, %s140, [#allocation17], 128, 128, 8
    $region65: #{tpu_custom_call.1} parent=1 // pred_fallthru
      _
    // Predicated region
    $region66: #{tpu_custom_call.1} parent=1 // pred_check
      _
    $region67: #{tpu_custom_call.1} parent=1 // pred_check_branch
      %147 = sbr.rel (0) target = $region69
    $region68: #{tpu_custom_call.1} parent=1 // pred_region
      _
    $region69: #{tpu_custom_call.1} parent=1 // pred_fallthru
      _
    // Predicated region
    $region70: #{tpu_custom_call.1} parent=1 // pred_check
      _
    $region71: #{tpu_custom_call.1} parent=1 // pred_check_branch
      %149 = sbr.rel (0) target = $region73
    $region72: #{tpu_custom_call.1} parent=1 // pred_region
      _
    $region73: #{tpu_custom_call.1} parent=1 // pred_fallthru
      _
    // Predicated region
    $region74: #{tpu_custom_call.1} parent=1 // pred_check
      _
    $region75: #{tpu_custom_call.1} parent=1 // pred_check_branch
      %151 = sbr.rel (0) target = $region77
    $region76: #{tpu_custom_call.1} parent=1 // pred_region
      _
    $region77: #{tpu_custom_call.1} parent=1 // pred_fallthru
      _
    // Predicated region
    $region78: #{tpu_custom_call.1} parent=1 // pred_check
      _
    $region79: #{tpu_custom_call.1} parent=1 // pred_check_branch
      %153 = sbr.rel (0) target = $region81
    $region80: #{tpu_custom_call.1} parent=1 // pred_region
      _
    $region81: #{tpu_custom_call.1} parent=1 // pred_fallthru
      _
    // Predicated region
    $region82: #{tpu_custom_call.1} parent=1 // pred_check
      _
    $region83: #{tpu_custom_call.1} parent=1 // pred_check_branch
      %155 = sbr.rel (0) target = $region85
    $region84: #{tpu_custom_call.1} parent=1 // pred_region
      _
    $region85: #{tpu_custom_call.1} parent=1 // pred_fallthru
      _
    // Predicated region
    $region86: #{tpu_custom_call.1} parent=1 // pred_check
      _
    $region87: #{tpu_custom_call.1} parent=1 // pred_check_branch
      %157 = sbr.rel (0) target = $region89
    $region88: #{tpu_custom_call.1} parent=1 // pred_region
      %158 = dma.done [#allocation5], 256
    $region89: #{tpu_custom_call.1} parent=1 // pred_fallthru
      _
    // Predicated region
    $region90: #{tpu_custom_call.1} parent=1 // pred_check
      _
    $region91: #{tpu_custom_call.1} parent=1 // pred_check_branch
      %160 = sbr.rel (0) target = $region93
    $region92: #{tpu_custom_call.1} parent=1 // pred_region
      %161 = dma.done [#allocation8], 256
    $region93: #{tpu_custom_call.1} parent=1 // pred_fallthru
      _
    // Predicated region
    $region94: #{tpu_custom_call.1} parent=1 // pred_check
      _
    $region95: #{tpu_custom_call.1} parent=1 // pred_check_branch
      %163 = sbr.rel (0) target = $region97
    $region96: #{tpu_custom_call.1} parent=1 // pred_region
      %164 = dma.done [#allocation8], 256
    $region97: #{tpu_custom_call.1} parent=1 // pred_fallthru
      _
    // Predicated region
    $region98: #{tpu_custom_call.1} parent=1 // pred_check
      _
    $region99: #{tpu_custom_call.1} parent=1 // pred_check_branch
      %166 = sbr.rel (0) target = $region101
    $region100: #{tpu_custom_call.1} parent=1 // pred_region
      %167 = dma.done [#allocation11], 256
    $region101: #{tpu_custom_call.1} parent=1 // pred_fallthru
      _
    // Predicated region
    $region102: #{tpu_custom_call.1} parent=1 // pred_check
      _
    $region103: #{tpu_custom_call.1} parent=1 // pred_check_branch
      %169 = sbr.rel (0) target = $region105
    $region104: #{tpu_custom_call.1} parent=1 // pred_region
      %170 = dma.done [#allocation11], 1536
    $region105: #{tpu_custom_call.1} parent=1 // pred_fallthru
      _
    // Predicated region
    $region106: #{tpu_custom_call.1} parent=1 // pred_check
      _
    $region107: #{tpu_custom_call.1} parent=1 // pred_check_branch
      %172 = sbr.rel (0) target = $region109
    $region108: #{tpu_custom_call.1} parent=1 // pred_region
      %173 = dma.done [#allocation14], 512
    $region109: #{tpu_custom_call.1} parent=1 // pred_fallthru
      _
    // Predicated region
    $region110: #{tpu_custom_call.1} parent=1 // pred_check
      _
    $region111: #{tpu_custom_call.1} parent=1 // pred_check_branch
      %175 = sbr.rel (0) target = $region113
    $region112: #{tpu_custom_call.1} parent=1 // pred_region
      %176 = dma.done [#allocation14], 512
    $region113: #{tpu_custom_call.1} parent=1 // pred_fallthru
      _
    // Predicated region
    $region114: #{tpu_custom_call.1} parent=1 // pred_check
      _
    $region115: #{tpu_custom_call.1} parent=1 // pred_check_branch
      %178 = sbr.rel (0) target = $region117
    $region116: #{tpu_custom_call.1} parent=1 // pred_region
      %179 = dma.done [#allocation17], 512
    $region117: #{tpu_custom_call.1} parent=1 // pred_fallthru
      _
    %v180 = vld [vmem:[#allocation4] sm:$0xff]
    %v181 = vld [vmem:[#allocation4 + $0x8] sm:$0xff]
    %v182 = vld [vmem:[#allocation12] sm:$0xff]
    %v183 = vld [vmem:[#allocation12 + $0x8] sm:$0xff]
    %v184 = vld [vmem:[#allocation12 + $0x10] sm:$0xff]
    %v185 = vld [vmem:[#allocation12 + $0x18] sm:$0xff]
    %v186 = vld [vmem:[%s5] sm:$0x1]
    %v187 = vlaneseq
    %v188 = vshrl.u32 %v187, 7
    %v189 = vsub.s32 0, %v188
    %v190 = vrot.slane %v186, %v189
    %vm191 = vcmask 261120
    %v193 = vsel %vm191, %v180, 0
    %v196 = vsel %vm191, %v181, 0
    %198 = vmatprep.subr.mxu0 0.0
    %199 = vmatpush1.msra.mxu0 0.0
    %200 = vmatprep.subr.mxu0 0.0
    %201 = vmatpush1.msra.mxu0 0.0
    %202 = vmatprep.subr.mxu0 0.0
    %203 = vmatpush1.msra.mxu0 0.0
    %204 = vmatprep.subr.mxu0 0.0
    %205 = vmatpush1.msra.mxu0 0.0
    %206 = vmatprep.subr.mxu0 0.0
    %207 = vmatpush1.msra.mxu0 0.0
    %208 = vmatprep.subr.mxu0 0.0
    %209 = vmatpush1.msra.mxu0 0.0
    %210 = vmatprep.subr.mxu0 0.0
    %211 = vmatpush1.msra.mxu0 0.0
    %212 = vmatprep.subr.mxu0 0.0
    %213 = vmatpush1.msra.mxu0 0.0
    %214 = vmatprep.subr.mxu0 0.0
    %215 = vmatpush1.msra.mxu0 0.0
    %216 = vmatprep.subr.mxu0 0.0
    %217 = vmatpush1.msra.mxu0 0.0
    %218 = vmatprep.subr.mxu0 0.0
    %219 = vmatpush1.msra.mxu0 0.0
    %220 = vmatprep.subr.mxu0 0.0
    %221 = vmatpush1.msra.mxu0 0.0
    %222 = vmatprep.subr.mxu0 0.0
    %223 = vmatpush1.msra.mxu0 %v185
    %224 = vmatprep.subr.mxu0 0.0
    %225 = vmatpush1.msra.mxu0 %v184
    %226 = vmatprep.subr.mxu0 0.0
    %227 = vmatpush1.msra.mxu0 %v183
    %228 = vmatprep.subr.mxu0 0.0
    %229 = vmatpush1.msra.mxu0 %v182
    %230 = vmatprep.subr.mxu0 0.0
    %231 = vmatpush2.msra.mxu0 0.0
    %232 = vmatprep.subr.mxu0 0.0
    %233 = vmatpush2.msra.mxu0 0.0
    %234 = vmatprep.subr.mxu0 0.0
    %235 = vmatpush2.msra.mxu0 0.0
    %236 = vmatprep.subr.mxu0 0.0
    %237 = vmatpush2.msra.mxu0 0.0
    %238 = vmatprep.subr.mxu0 0.0
    %239 = vmatpush2.msra.mxu0 0.0
    %240 = vmatprep.subr.mxu0 0.0
    %241 = vmatpush2.msra.mxu0 0.0
    %242 = vmatprep.subr.mxu0 0.0
    %243 = vmatpush2.msra.mxu0 0.0
    %244 = vmatprep.subr.mxu0 0.0
    %245 = vmatpush2.msra.mxu0 0.0
    %246 = vmatprep.subr.mxu0 0.0
    %247 = vmatpush2.msra.mxu0 0.0
    %248 = vmatprep.subr.mxu0 0.0
    %249 = vmatpush2.msra.mxu0 0.0
    %250 = vmatprep.subr.mxu0 0.0
    %251 = vmatpush2.msra.mxu0 0.0
    %252 = vmatprep.subr.mxu0 0.0
    %253 = vmatpush2.msra.mxu0 0.0
    %254 = vmatprep.subr.mxu0 0.0
    %255 = vmatpush2.msra.mxu0 0.0
    %256 = vmatprep.subr.mxu0 0.0
    %257 = vmatpush2.msra.mxu0 0.0
    %258 = vmatprep.subr.mxu0 0.0
    %259 = vmatpush2.msra.mxu0 0.0
    %260 = vmatprep.subr.mxu0 0.0
    %261 = vmatpush2.msra.mxu0 0.0
    %262 = vmatprep.mubr.f32.mxu0 0.0
    %263 = vmatmul.mubr.f32.gmra.mxu0 %v193
    %v264 = vpop.f32.mrf.mxu0
    %v265 = vadd.f32 %v190, %v264
    %v266 = vpop.f32.mrf.mxu0
    %267 = vmatprep.mubr.f32.mxu0 0.0
    %268 = vmatmul.mubr.f32.gmra.mxu0 %v196
    %v269 = vpop.f32.mrf.mxu0
    %v270 = vadd.f32 %v190, %v269
    %v271 = vpop.f32.mrf.mxu0
    %272 = vdwg.mxu0
    %v273 = vld [vmem:[%s6] sm:$0x1]
    %v274 = vld [vmem:[%s7] sm:$0x1]
    %v275 = vsel %vm191, %v265, 0.0
    %276 = vadd.xlane.f32.xlu0 %v275
    %v277 = vpop.xlane.xlu0 %276
    %v278 = vsel %vm191, %v270, 0.0
    %279 = vadd.xlane.f32.xlu0 %v278
    %v280 = vpop.xlane.xlu0 %279
    %v281 = vrcp.pop 32.0
    %v282 = vmul.f32 %v277, %v281
    %v283 = vmul.f32 %v280, %v281
    %v284 = vsub.f32 %v265, %v282
    %v285 = vsub.f32 %v270, %v283
    %v286 = vmul.f32 %v284, %v284
    %v287 = vmul.f32 %v285, %v285
    %v288 = vsel %vm191, %v286, 0.0
    %289 = vadd.xlane.f32.xlu0 %v288
    %v290 = vpop.xlane.xlu0 %289
    %v291 = vsel %vm191, %v287, 0.0
    %292 = vadd.xlane.f32.xlu0 %v291
    %v293 = vpop.xlane.xlu0 %292
    %v294 = vmul.f32 %v290, %v281
    %v295 = vmul.f32 %v293, %v281
    %v296 = vadd.f32 %v294, 1e-05
    %v297 = vadd.f32 %v295, 1e-05
    %v298 = vrsqrt.pop %v296
    %v299 = vrsqrt.pop %v297
    %v300 = vmul.f32 %v284, %v298
    %v301 = vmul.f32 %v285, %v299
    %v302 = vlaneseq
    %v303 = vshrl.u32 %v302, 7
    %v304 = vsub.s32 0, %v303
    %v305 = vrot.slane %v273, %v304
    %v306 = vmul.f32 %v300, %v305
    %v307 = vmul.f32 %v301, %v305
    %v308 = vlaneseq
    %v309 = vshrl.u32 %v308, 7
    %v310 = vsub.s32 0, %v309
    %v311 = vrot.slane %v274, %v310
    %v312 = vadd.f32 %v306, %v311
    %v313 = vadd.f32 %v307, %v311
    %v314 = vld [vmem:[#allocation7] sm:$0xff]
    %v315 = vld [vmem:[#allocation7 + $0x8] sm:$0xff]
    %s316 = scalar_lea.vmem [#allocation12], 32
    %v317 = vld [vmem:[%s316] sm:$0xff]
    %v318 = vld [vmem:[%s316 + $0x8] sm:$0xff]
    %v319 = vld [vmem:[%s316 + $0x10] sm:$0xff]
    %v320 = vld [vmem:[%s316 + $0x18] sm:$0xff]
    %v321 = vld [vmem:[%s5 + $0x1] sm:$0x1]
    %v322 = vlaneseq
    %v323 = vshrl.u32 %v322, 7
    %v324 = vsub.s32 0, %v323
    %v325 = vrot.slane %v321, %v324
    %v327 = vsel %vm191, %v314, 0
    %v330 = vsel %vm191, %v315, 0
    %332 = vmatprep.subr.mxu0 0.0
    %333 = vmatpush1.msra.mxu0 0.0
    %334 = vmatprep.subr.mxu0 0.0
    %335 = vmatpush1.msra.mxu0 0.0
    %336 = vmatprep.subr.mxu0 0.0
    %337 = vmatpush1.msra.mxu0 0.0
    %338 = vmatprep.subr.mxu0 0.0
    %339 = vmatpush1.msra.mxu0 0.0
    %340 = vmatprep.subr.mxu0 0.0
    %341 = vmatpush1.msra.mxu0 0.0
    %342 = vmatprep.subr.mxu0 0.0
    %343 = vmatpush1.msra.mxu0 0.0
    %344 = vmatprep.subr.mxu0 0.0
    %345 = vmatpush1.msra.mxu0 0.0
    %346 = vmatprep.subr.mxu0 0.0
    %347 = vmatpush1.msra.mxu0 0.0
    %348 = vmatprep.subr.mxu0 0.0
    %349 = vmatpush1.msra.mxu0 0.0
    %350 = vmatprep.subr.mxu0 0.0
    %351 = vmatpush1.msra.mxu0 0.0
    %352 = vmatprep.subr.mxu0 0.0
    %353 = vmatpush1.msra.mxu0 0.0
    %354 = vmatprep.subr.mxu0 0.0
    %355 = vmatpush1.msra.mxu0 0.0
    %356 = vmatprep.subr.mxu0 0.0
    %357 = vmatpush1.msra.mxu0 %v320
    %358 = vmatprep.subr.mxu0 0.0
    %359 = vmatpush1.msra.mxu0 %v319
    %360 = vmatprep.subr.mxu0 0.0
    %361 = vmatpush1.msra.mxu0 %v318
    %362 = vmatprep.subr.mxu0 0.0
    %363 = vmatpush1.msra.mxu0 %v317
    %364 = vmatprep.subr.mxu0 0.0
    %365 = vmatpush2.msra.mxu0 0.0
    %366 = vmatprep.subr.mxu0 0.0
    %367 = vmatpush2.msra.mxu0 0.0
    %368 = vmatprep.subr.mxu0 0.0
    %369 = vmatpush2.msra.mxu0 0.0
    %370 = vmatprep.subr.mxu0 0.0
    %371 = vmatpush2.msra.mxu0 0.0
    %372 = vmatprep.subr.mxu0 0.0
    %373 = vmatpush2.msra.mxu0 0.0
    %374 = vmatprep.subr.mxu0 0.0
    %375 = vmatpush2.msra.mxu0 0.0
    %376 = vmatprep.subr.mxu0 0.0
    %377 = vmatpush2.msra.mxu0 0.0
    %378 = vmatprep.subr.mxu0 0.0
    %379 = vmatpush2.msra.mxu0 0.0
    %380 = vmatprep.subr.mxu0 0.0
    %381 = vmatpush2.msra.mxu0 0.0
    %382 = vmatprep.subr.mxu0 0.0
    %383 = vmatpush2.msra.mxu0 0.0
    %384 = vmatprep.subr.mxu0 0.0
    %385 = vmatpush2.msra.mxu0 0.0
    %386 = vmatprep.subr.mxu0 0.0
    %387 = vmatpush2.msra.mxu0 0.0
    %388 = vmatprep.subr.mxu0 0.0
    %389 = vmatpush2.msra.mxu0 0.0
    %390 = vmatprep.subr.mxu0 0.0
    %391 = vmatpush2.msra.mxu0 0.0
    %392 = vmatprep.subr.mxu0 0.0
    %393 = vmatpush2.msra.mxu0 0.0
    %394 = vmatprep.subr.mxu0 0.0
    %395 = vmatpush2.msra.mxu0 0.0
    %396 = vmatprep.mubr.f32.mxu0 0.0
    %397 = vmatmul.mubr.f32.gmra.mxu0 %v327
    %v398 = vpop.f32.mrf.mxu0
    %v399 = vadd.f32 %v325, %v398
    %v400 = vpop.f32.mrf.mxu0
    %401 = vmatprep.mubr.f32.mxu0 0.0
    %402 = vmatmul.mubr.f32.gmra.mxu0 %v330
    %v403 = vpop.f32.mrf.mxu0
    %v404 = vadd.f32 %v325, %v403
    %v405 = vpop.f32.mrf.mxu0
    %406 = vdwg.mxu0
    %v407 = vld [vmem:[%s6 + $0x1] sm:$0x1]
    %v408 = vld [vmem:[%s7 + $0x1] sm:$0x1]
    %v409 = vsel %vm191, %v399, 0.0
    %410 = vadd.xlane.f32.xlu0 %v409
    %v411 = vpop.xlane.xlu0 %410
    %v412 = vsel %vm191, %v404, 0.0
    %413 = vadd.xlane.f32.xlu0 %v412
    %v414 = vpop.xlane.xlu0 %413
    %v415 = vmul.f32 %v411, %v281
    %v416 = vmul.f32 %v414, %v281
    %v417 = vsub.f32 %v399, %v415
    %v418 = vsub.f32 %v404, %v416
    %v419 = vmul.f32 %v417, %v417
    %v420 = vmul.f32 %v418, %v418
    %v421 = vsel %vm191, %v419, 0.0
    %422 = vadd.xlane.f32.xlu0 %v421
    %v423 = vpop.xlane.xlu0 %422
    %v424 = vsel %vm191, %v420, 0.0
    %425 = vadd.xlane.f32.xlu0 %v424
    %v426 = vpop.xlane.xlu0 %425
    %v427 = vmul.f32 %v423, %v281
    %v428 = vmul.f32 %v426, %v281
    %v429 = vadd.f32 %v427, 1e-05
    %v430 = vadd.f32 %v428, 1e-05
    %v431 = vrsqrt.pop %v429
    %v432 = vrsqrt.pop %v430
    %v433 = vmul.f32 %v417, %v431
    %v434 = vmul.f32 %v418, %v432
    %v435 = vlaneseq
    %v436 = vshrl.u32 %v435, 7
    %v437 = vsub.s32 0, %v436
    %v438 = vrot.slane %v407, %v437
    %v439 = vmul.f32 %v433, %v438
    %v440 = vmul.f32 %v434, %v438
    %v441 = vlaneseq
    %v442 = vshrl.u32 %v441, 7
    %v443 = vsub.s32 0, %v442
    %v444 = vrot.slane %v408, %v443
    %v445 = vadd.f32 %v439, %v444
    %v446 = vadd.f32 %v440, %v444
    %v447 = vld [vmem:[#allocation9] sm:$0xff]
    %v448 = vld [vmem:[#allocation9 + $0x8] sm:$0xff]
    %s449 = scalar_lea.vmem [#allocation12], 64
    %v450 = vld [vmem:[%s449] sm:$0xff]
    %v451 = vld [vmem:[%s449 + $0x8] sm:$0xff]
    %v452 = vld [vmem:[%s449 + $0x10] sm:$0xff]
    %v453 = vld [vmem:[%s449 + $0x18] sm:$0xff]
    %v454 = vld [vmem:[%s5 + $0x2] sm:$0x1]
    %v455 = vlaneseq
    %v456 = vshrl.u32 %v455, 7
    %v457 = vsub.s32 0, %v456
    %v458 = vrot.slane %v454, %v457
    %v460 = vsel %vm191, %v447, 0
    %v463 = vsel %vm191, %v448, 0
    %465 = vmatprep.subr.mxu0 0.0
    %466 = vmatpush1.msra.mxu0 0.0
    %467 = vmatprep.subr.mxu0 0.0
    %468 = vmatpush1.msra.mxu0 0.0
    %469 = vmatprep.subr.mxu0 0.0
    %470 = vmatpush1.msra.mxu0 0.0
    %471 = vmatprep.subr.mxu0 0.0
    %472 = vmatpush1.msra.mxu0 0.0
    %473 = vmatprep.subr.mxu0 0.0
    %474 = vmatpush1.msra.mxu0 0.0
    %475 = vmatprep.subr.mxu0 0.0
    %476 = vmatpush1.msra.mxu0 0.0
    %477 = vmatprep.subr.mxu0 0.0
    %478 = vmatpush1.msra.mxu0 0.0
    %479 = vmatprep.subr.mxu0 0.0
    %480 = vmatpush1.msra.mxu0 0.0
    %481 = vmatprep.subr.mxu0 0.0
    %482 = vmatpush1.msra.mxu0 0.0
    %483 = vmatprep.subr.mxu0 0.0
    %484 = vmatpush1.msra.mxu0 0.0
    %485 = vmatprep.subr.mxu0 0.0
    %486 = vmatpush1.msra.mxu0 0.0
    %487 = vmatprep.subr.mxu0 0.0
    %488 = vmatpush1.msra.mxu0 0.0
    %489 = vmatprep.subr.mxu0 0.0
    %490 = vmatpush1.msra.mxu0 %v453
    %491 = vmatprep.subr.mxu0 0.0
    %492 = vmatpush1.msra.mxu0 %v452
    %493 = vmatprep.subr.mxu0 0.0
    %494 = vmatpush1.msra.mxu0 %v451
    %495 = vmatprep.subr.mxu0 0.0
    %496 = vmatpush1.msra.mxu0 %v450
    %497 = vmatprep.subr.mxu0 0.0
    %498 = vmatpush2.msra.mxu0 0.0
    %499 = vmatprep.subr.mxu0 0.0
    %500 = vmatpush2.msra.mxu0 0.0
    %501 = vmatprep.subr.mxu0 0.0
    %502 = vmatpush2.msra.mxu0 0.0
    %503 = vmatprep.subr.mxu0 0.0
    %504 = vmatpush2.msra.mxu0 0.0
    %505 = vmatprep.subr.mxu0 0.0
    %506 = vmatpush2.msra.mxu0 0.0
    %507 = vmatprep.subr.mxu0 0.0
    %508 = vmatpush2.msra.mxu0 0.0
    %509 = vmatprep.subr.mxu0 0.0
    %510 = vmatpush2.msra.mxu0 0.0
    %511 = vmatprep.subr.mxu0 0.0
    %512 = vmatpush2.msra.mxu0 0.0
    %513 = vmatprep.subr.mxu0 0.0
    %514 = vmatpush2.msra.mxu0 0.0
    %515 = vmatprep.subr.mxu0 0.0
    %516 = vmatpush2.msra.mxu0 0.0
    %517 = vmatprep.subr.mxu0 0.0
    %518 = vmatpush2.msra.mxu0 0.0
    %519 = vmatprep.subr.mxu0 0.0
    %520 = vmatpush2.msra.mxu0 0.0
    %521 = vmatprep.subr.mxu0 0.0
    %522 = vmatpush2.msra.mxu0 0.0
    %523 = vmatprep.subr.mxu0 0.0
    %524 = vmatpush2.msra.mxu0 0.0
    %525 = vmatprep.subr.mxu0 0.0
    %526 = vmatpush2.msra.mxu0 0.0
    %527 = vmatprep.subr.mxu0 0.0
    %528 = vmatpush2.msra.mxu0 0.0
    %529 = vmatprep.mubr.f32.mxu0 0.0
    %530 = vmatmul.mubr.f32.gmra.mxu0 %v460
    %v531 = vpop.f32.mrf.mxu0
    %v532 = vadd.f32 %v458, %v531
    %v533 = vpop.f32.mrf.mxu0
    %534 = vmatprep.mubr.f32.mxu0 0.0
    %535 = vmatmul.mubr.f32.gmra.mxu0 %v463
    %v536 = vpop.f32.mrf.mxu0
    %v537 = vadd.f32 %v458, %v536
    %v538 = vpop.f32.mrf.mxu0
    %539 = vdwg.mxu0
    %v540 = vld [vmem:[%s6 + $0x2] sm:$0x1]
    %v541 = vld [vmem:[%s7 + $0x2] sm:$0x1]
    %v542 = vsel %vm191, %v532, 0.0
    %543 = vadd.xlane.f32.xlu0 %v542
    %v544 = vpop.xlane.xlu0 %543
    %v545 = vsel %vm191, %v537, 0.0
    %546 = vadd.xlane.f32.xlu0 %v545
    %v547 = vpop.xlane.xlu0 %546
    %v548 = vmul.f32 %v544, %v281
    %v549 = vmul.f32 %v547, %v281
    %v550 = vsub.f32 %v532, %v548
    %v551 = vsub.f32 %v537, %v549
    %v552 = vmul.f32 %v550, %v550
    %v553 = vmul.f32 %v551, %v551
    %v554 = vsel %vm191, %v552, 0.0
    %555 = vadd.xlane.f32.xlu0 %v554
    %v556 = vpop.xlane.xlu0 %555
    %v557 = vsel %vm191, %v553, 0.0
    %558 = vadd.xlane.f32.xlu0 %v557
    %v559 = vpop.xlane.xlu0 %558
    %v560 = vmul.f32 %v556, %v281
    %v561 = vmul.f32 %v559, %v281
    %v562 = vadd.f32 %v560, 1e-05
    %v563 = vadd.f32 %v561, 1e-05
    %v564 = vrsqrt.pop %v562
    %v565 = vrsqrt.pop %v563
    %v566 = vmul.f32 %v550, %v564
    %v567 = vmul.f32 %v551, %v565
    %v568 = vlaneseq
    %v569 = vshrl.u32 %v568, 7
    %v570 = vsub.s32 0, %v569
    %v571 = vrot.slane %v540, %v570
    %v572 = vmul.f32 %v566, %v571
    %v573 = vmul.f32 %v567, %v571
    %v574 = vlaneseq
    %v575 = vshrl.u32 %v574, 7
    %v576 = vsub.s32 0, %v575
    %v577 = vrot.slane %v541, %v576
    %v578 = vadd.f32 %v572, %v577
    %v579 = vadd.f32 %v573, %v577
    %v580 = vmul.f32 %v312, %v312
    %v581 = vmul.f32 %v313, %v313
    %v582 = vsel %vm191, %v580, 0.0
    %583 = vadd.xlane.f32.xlu0 %v582
    %v584 = vpop.xlane.xlu0 %583
    %v585 = vsel %vm191, %v581, 0.0
    %586 = vadd.xlane.f32.xlu0 %v585
    %v587 = vpop.xlane.xlu0 %586
    %v588 = vmul.f32 %v445, %v445
    %v589 = vmul.f32 %v446, %v446
    %v590 = vsel %vm191, %v588, 0.0
    %591 = vadd.xlane.f32.xlu0 %v590
    %v592 = vpop.xlane.xlu0 %591
    %v593 = vsel %vm191, %v589, 0.0
    %594 = vadd.xlane.f32.xlu0 %v593
    %v595 = vpop.xlane.xlu0 %594
    %v596 = vrsqrt.pop %v584
    %v597 = vmul.f32 %v584, %v596
    %vm598 = vcmp.eq.f32.partialorder %v584, inf
    %v599 = vsel %vm598, %v584, %v597
    %vm600 = vcmp.eq.f32.partialorder %v584, 0.0
    %v601 = vand.u32 %v584, 2147483648
    %v602 = vsel %vm600, %v601, %v599
    %v603 = vrsqrt.pop %v587
    %v604 = vmul.f32 %v587, %v603
    %vm605 = vcmp.eq.f32.partialorder %v587, inf
    %v606 = vsel %vm605, %v587, %v604
    %vm607 = vcmp.eq.f32.partialorder %v587, 0.0
    %v608 = vand.u32 %v587, 2147483648
    %v609 = vsel %vm607, %v608, %v606
    %v610 = vadd.f32 %v602, 1e-06
    %v611 = vadd.f32 %v609, 1e-06
    %v612 = vrcp.pop %v610
    %v613 = vmul.f32 1.0, %v612
    %v614 = vrcp.pop %v611
    %v615 = vmul.f32 1.0, %v614
    %v616 = vrsqrt.pop %v592
    %v617 = vmul.f32 %v592, %v616
    %vm618 = vcmp.eq.f32.partialorder %v592, inf
    %v619 = vsel %vm618, %v592, %v617
    %vm620 = vcmp.eq.f32.partialorder %v592, 0.0
    %v621 = vand.u32 %v592, 2147483648
    %v622 = vsel %vm620, %v621, %v619
    %v623 = vrsqrt.pop %v595
    %v624 = vmul.f32 %v595, %v623
    %vm625 = vcmp.eq.f32.partialorder %v595, inf
    %v626 = vsel %vm625, %v595, %v624
    %vm627 = vcmp.eq.f32.partialorder %v595, 0.0
    %v628 = vand.u32 %v595, 2147483648
    %v629 = vsel %vm627, %v628, %v626
    %v630 = vadd.f32 %v622, 1e-06
    %v631 = vadd.f32 %v629, 1e-06
    %v632 = vrcp.pop %v630
    %v633 = vmul.f32 1.0, %v632
    %v634 = vrcp.pop %v631
    %v635 = vmul.f32 1.0, %v634
    %v636 = vmul.f32 %v312, %v613
    %v637 = vmul.f32 %v313, %v615
    %v638 = vmul.f32 %v445, %v633
    %v639 = vmul.f32 %v446, %v635
    %v640 = vmul.f32 %v584, %v613
    %v641 = vmul.f32 %v587, %v615
    %v642 = vmul.f32 %v640, %v613
    %v643 = vmul.f32 %v641, %v615
    %v644 = vmul.f32 %v592, %v633
    %v645 = vmul.f32 %v595, %v635
    %v646 = vmul.f32 %v644, %v633
    %v647 = vmul.f32 %v645, %v635
    %v648 = vmul.f32 %v636, %v638
    %v649 = vmul.f32 %v637, %v639
    %v650 = vsel %vm191, %v648, 0.0
    %651 = vadd.xlane.f32.xlu0 %v650
    %v652 = vpop.xlane.xlu0 %651
    %v653 = vsel %vm191, %v649, 0.0
    %654 = vadd.xlane.f32.xlu0 %v653
    %v655 = vpop.xlane.xlu0 %654
    %v656 = vmax.f32 %v652, 0.0
    %v657 = vmax.f32 %v655, 0.0
    %v658 = vadd.f32 %v642, %v656
    %v659 = vadd.f32 %v643, %v657
    %v660 = vadd.f32 %v646, %v656
    %v661 = vadd.f32 %v647, %v657
    %v662 = vld [vmem:[%s8] sm:$0x1]
    %v664 = vlaneseq
    %v665 = vshrl.u32 %v664, 7
    %v666 = vsub.s32 0, %v665
    %v667 = vrot.slane %v662, %v666
    %v669 = vmul.f32 %v578, %v667
    %v670 = vmul.f32 %v579, %v667
    %s671 = sld [smem:[#allocation2]]
    %v672 = vmul.f32 %v312, %v669
    %v673 = vmul.f32 %v313, %v670
    %v674 = vsel %vm191, %v672, 0.0
    %675 = vadd.xlane.f32.xlu0 %v674
    %v676 = vpop.xlane.xlu0 %675
    %v677 = vsel %vm191, %v673, 0.0
    %678 = vadd.xlane.f32.xlu0 %v677
    %v679 = vpop.xlane.xlu0 %678
    %v680 = vstv %s671
    %v681 = vadd.f32 %v676, %v680
    %v682 = vadd.f32 %v679, %v680
    %v683 = vmax.f32 %v681, 0.0
    %v684 = vmax.f32 %v682, 0.0
    %v685 = vadd.f32 %v658, 1e-06
    %v686 = vadd.f32 %v659, 1e-06
    %v687 = vrcp.pop %v685
    %v688 = vmul.f32 1.0, %v687
    %v689 = vrcp.pop %v686
    %v690 = vmul.f32 1.0, %v689
    %v691 = vmul.f32 %v683, %v688
    %v692 = vmul.f32 %v684, %v690
    %v693 = vmul.f32 %v445, %v669
    %v694 = vmul.f32 %v446, %v670
    %v695 = vsel %vm191, %v693, 0.0
    %696 = vadd.xlane.f32.xlu0 %v695
    %v697 = vpop.xlane.xlu0 %696
    %v698 = vsel %vm191, %v694, 0.0
    %699 = vadd.xlane.f32.xlu0 %v698
    %v700 = vpop.xlane.xlu0 %699
    %v701 = vadd.f32 %v697, %v680
    %v702 = vadd.f32 %v700, %v680
    %v703 = vmax.f32 %v701, 0.0
    %v704 = vmax.f32 %v702, 0.0
    %v705 = vadd.f32 %v660, 1e-06
    %v706 = vadd.f32 %v661, 1e-06
    %v707 = vrcp.pop %v705
    %v708 = vmul.f32 1.0, %v707
    %v709 = vrcp.pop %v706
    %v710 = vmul.f32 1.0, %v709
    %v711 = vmul.f32 %v703, %v708
    %v712 = vmul.f32 %v704, %v710
    %v713 = vadd.f32 %v691, %v711
    %v714 = vadd.f32 %v692, %v712
    %v715 = vadd.f32 %v713, 1e-06
    %v716 = vadd.f32 %v714, 1e-06
    %v717 = vrcp.pop %v715
    %v718 = vmul.f32 1.0, %v717
    %v719 = vrcp.pop %v716
    %v720 = vmul.f32 1.0, %v719
    %v721 = vmul.f32 %v691, %v718
    %v722 = vmul.f32 %v692, %v720
    %v723 = vmul.f32 %v721, %v312
    %v724 = vmul.f32 %v722, %v313
    %v725 = vmul.f32 %v711, %v718
    %v726 = vmul.f32 %v712, %v720
    %v727 = vmul.f32 %v725, %v445
    %v728 = vmul.f32 %v726, %v446
    %v729 = vadd.f32 %v723, %v727
    %v730 = vadd.f32 %v724, %v728
    %v731 = vld [vmem:[#allocation13] sm:$0xff]
    %v732 = vld [vmem:[#allocation13 + $0x8] sm:$0xff]
    %v733 = vld [vmem:[#allocation13 + $0x10] sm:$0xff]
    %v734 = vld [vmem:[#allocation13 + $0x18] sm:$0xff]
    %v735 = vld [vmem:[%s10] sm:$0x1]
    %v737 = vlaneseq
    %v738 = vshrl.u32 %v737, 7
    %v739 = vsub.s32 0, %v738
    %v740 = vrot.slane %v735, %v739
    %v743 = vsel %vm191, %v729, 0
    %v746 = vsel %vm191, %v730, 0
    %748 = vmatprep.subr.mxu0 0.0
    %749 = vmatpush1.msra.mxu0 0.0
    %750 = vmatprep.subr.mxu0 0.0
    %751 = vmatpush1.msra.mxu0 0.0
    %752 = vmatprep.subr.mxu0 0.0
    %753 = vmatpush1.msra.mxu0 0.0
    %754 = vmatprep.subr.mxu0 0.0
    %755 = vmatpush1.msra.mxu0 0.0
    %756 = vmatprep.subr.mxu0 0.0
    %757 = vmatpush1.msra.mxu0 0.0
    %758 = vmatprep.subr.mxu0 0.0
    %759 = vmatpush1.msra.mxu0 0.0
    %760 = vmatprep.subr.mxu0 0.0
    %761 = vmatpush1.msra.mxu0 0.0
    %762 = vmatprep.subr.mxu0 0.0
    %763 = vmatpush1.msra.mxu0 0.0
    %764 = vmatprep.subr.mxu0 0.0
    %765 = vmatpush1.msra.mxu0 0.0
    %766 = vmatprep.subr.mxu0 0.0
    %767 = vmatpush1.msra.mxu0 0.0
    %768 = vmatprep.subr.mxu0 0.0
    %769 = vmatpush1.msra.mxu0 0.0
    %770 = vmatprep.subr.mxu0 0.0
    %771 = vmatpush1.msra.mxu0 0.0
    %772 = vmatprep.subr.mxu0 0.0
    %773 = vmatpush1.msra.mxu0 %v734
    %774 = vmatprep.subr.mxu0 0.0
    %775 = vmatpush1.msra.mxu0 %v733
    %776 = vmatprep.subr.mxu0 0.0
    %777 = vmatpush1.msra.mxu0 %v732
    %778 = vmatprep.subr.mxu0 0.0
    %779 = vmatpush1.msra.mxu0 %v731
    %780 = vmatprep.subr.mxu0 0.0
    %781 = vmatpush2.msra.mxu0 0.0
    %782 = vmatprep.subr.mxu0 0.0
    %783 = vmatpush2.msra.mxu0 0.0
    %784 = vmatprep.subr.mxu0 0.0
    %785 = vmatpush2.msra.mxu0 0.0
    %786 = vmatprep.subr.mxu0 0.0
    %787 = vmatpush2.msra.mxu0 0.0
    %788 = vmatprep.subr.mxu0 0.0
    %789 = vmatpush2.msra.mxu0 0.0
    %790 = vmatprep.subr.mxu0 0.0
    %791 = vmatpush2.msra.mxu0 0.0
    %792 = vmatprep.subr.mxu0 0.0
    %793 = vmatpush2.msra.mxu0 0.0
    %794 = vmatprep.subr.mxu0 0.0
    %795 = vmatpush2.msra.mxu0 0.0
    %796 = vmatprep.subr.mxu0 0.0
    %797 = vmatpush2.msra.mxu0 0.0
    %798 = vmatprep.subr.mxu0 0.0
    %799 = vmatpush2.msra.mxu0 0.0
    %800 = vmatprep.subr.mxu0 0.0
    %801 = vmatpush2.msra.mxu0 0.0
    %802 = vmatprep.subr.mxu0 0.0
    %803 = vmatpush2.msra.mxu0 0.0
    %804 = vmatprep.subr.mxu0 0.0
    %805 = vmatpush2.msra.mxu0 0.0
    %806 = vmatprep.subr.mxu0 0.0
    %807 = vmatpush2.msra.mxu0 0.0
    %808 = vmatprep.subr.mxu0 0.0
    %809 = vmatpush2.msra.mxu0 0.0
    %810 = vmatprep.subr.mxu0 0.0
    %811 = vmatpush2.msra.mxu0 0.0
    %812 = vmatprep.mubr.f32.mxu0 0.0
    %813 = vmatmul.mubr.f32.gmra.mxu0 %v743
    %v814 = vpop.f32.mrf.mxu0
    %v815 = vadd.f32 %v740, %v814
    %v816 = vpop.f32.mrf.mxu0
    %817 = vmatprep.mubr.f32.mxu0 0.0
    %818 = vmatmul.mubr.f32.gmra.mxu0 %v746
    %v819 = vpop.f32.mrf.mxu0
    %v820 = vadd.f32 %v740, %v819
    %v821 = vpop.f32.mrf.mxu0
    %822 = vdwg.mxu0
    %v823 = vmax.f32 %v815, 0.0
    %v824 = vmax.f32 %v820, 0.0
    %v825 = vld [vmem:[#allocation15] sm:$0xff]
    %v826 = vld [vmem:[#allocation15 + $0x8] sm:$0xff]
    %v827 = vld [vmem:[#allocation15 + $0x10] sm:$0xff]
    %v828 = vld [vmem:[#allocation15 + $0x18] sm:$0xff]
    %v829 = vld [vmem:[%s12] sm:$0x1]
    %v831 = vlaneseq
    %v832 = vshrl.u32 %v831, 7
    %v833 = vsub.s32 0, %v832
    %v834 = vrot.slane %v829, %v833
    %v837 = vsel %vm191, %v823, 0
    %v840 = vsel %vm191, %v824, 0
    %842 = vmatprep.subr.mxu0 0.0
    %843 = vmatpush1.msra.mxu0 0.0
    %844 = vmatprep.subr.mxu0 0.0
    %845 = vmatpush1.msra.mxu0 0.0
    %846 = vmatprep.subr.mxu0 0.0
    %847 = vmatpush1.msra.mxu0 0.0
    %848 = vmatprep.subr.mxu0 0.0
    %849 = vmatpush1.msra.mxu0 0.0
    %850 = vmatprep.subr.mxu0 0.0
    %851 = vmatpush1.msra.mxu0 0.0
    %852 = vmatprep.subr.mxu0 0.0
    %853 = vmatpush1.msra.mxu0 0.0
    %854 = vmatprep.subr.mxu0 0.0
    %855 = vmatpush1.msra.mxu0 0.0
    %856 = vmatprep.subr.mxu0 0.0
    %857 = vmatpush1.msra.mxu0 0.0
    %858 = vmatprep.subr.mxu0 0.0
    %859 = vmatpush1.msra.mxu0 0.0
    %860 = vmatprep.subr.mxu0 0.0
    %861 = vmatpush1.msra.mxu0 0.0
    %862 = vmatprep.subr.mxu0 0.0
    %863 = vmatpush1.msra.mxu0 0.0
    %864 = vmatprep.subr.mxu0 0.0
    %865 = vmatpush1.msra.mxu0 0.0
    %866 = vmatprep.subr.mxu0 0.0
    %867 = vmatpush1.msra.mxu0 %v828
    %868 = vmatprep.subr.mxu0 0.0
    %869 = vmatpush1.msra.mxu0 %v827
    %870 = vmatprep.subr.mxu0 0.0
    %871 = vmatpush1.msra.mxu0 %v826
    %872 = vmatprep.subr.mxu0 0.0
    %873 = vmatpush1.msra.mxu0 %v825
    %874 = vmatprep.subr.mxu0 0.0
    %875 = vmatpush2.msra.mxu0 0.0
    %876 = vmatprep.subr.mxu0 0.0
    %877 = vmatpush2.msra.mxu0 0.0
    %878 = vmatprep.subr.mxu0 0.0
    %879 = vmatpush2.msra.mxu0 0.0
    %880 = vmatprep.subr.mxu0 0.0
    %881 = vmatpush2.msra.mxu0 0.0
    %882 = vmatprep.subr.mxu0 0.0
    %883 = vmatpush2.msra.mxu0 0.0
    %884 = vmatprep.subr.mxu0 0.0
    %885 = vmatpush2.msra.mxu0 0.0
    %886 = vmatprep.subr.mxu0 0.0
    %887 = vmatpush2.msra.mxu0 0.0
    %888 = vmatprep.subr.mxu0 0.0
    %889 = vmatpush2.msra.mxu0 0.0
    %890 = vmatprep.subr.mxu0 0.0
    %891 = vmatpush2.msra.mxu0 0.0
    %892 = vmatprep.subr.mxu0 0.0
    %893 = vmatpush2.msra.mxu0 0.0
    %894 = vmatprep.subr.mxu0 0.0
    %895 = vmatpush2.msra.mxu0 0.0
    %896 = vmatprep.subr.mxu0 0.0
    %897 = vmatpush2.msra.mxu0 0.0
    %898 = vmatprep.subr.mxu0 0.0
    %899 = vmatpush2.msra.mxu0 0.0
    %900 = vmatprep.subr.mxu0 0.0
    %901 = vmatpush2.msra.mxu0 0.0
    %902 = vmatprep.subr.mxu0 0.0
    %903 = vmatpush2.msra.mxu0 0.0
    %904 = vmatprep.subr.mxu0 0.0
    %905 = vmatpush2.msra.mxu0 0.0
    %906 = vmatprep.mubr.f32.mxu0 0.0
    %907 = vmatmul.mubr.f32.gmra.mxu0 %v837
    %v908 = vpop.f32.mrf.mxu0
    %v909 = vadd.f32 %v834, %v908
    %v910 = vpop.f32.mrf.mxu0
    %911 = vmatprep.mubr.f32.mxu0 0.0
    %912 = vmatmul.mubr.f32.gmra.mxu0 %v840
    %v913 = vpop.f32.mrf.mxu0
    %v914 = vadd.f32 %v834, %v913
    %v915 = vpop.f32.mrf.mxu0
    %916 = vdwg.mxu0
    %v917 = vld [vmem:[%s13] sm:$0x1]
    %v918 = vld [vmem:[%s14] sm:$0x1]
    %v919 = vsel %vm191, %v909, 0.0
    %920 = vadd.xlane.f32.xlu0 %v919
    %v921 = vpop.xlane.xlu0 %920
    %v922 = vsel %vm191, %v914, 0.0
    %923 = vadd.xlane.f32.xlu0 %v922
    %v924 = vpop.xlane.xlu0 %923
    %v925 = vmul.f32 %v921, %v281
    %v926 = vmul.f32 %v924, %v281
    %v927 = vsub.f32 %v909, %v925
    %v928 = vsub.f32 %v914, %v926
    %v929 = vmul.f32 %v927, %v927
    %v930 = vmul.f32 %v928, %v928
    %v931 = vsel %vm191, %v929, 0.0
    %932 = vadd.xlane.f32.xlu0 %v931
    %v933 = vpop.xlane.xlu0 %932
    %v934 = vsel %vm191, %v930, 0.0
    %935 = vadd.xlane.f32.xlu0 %v934
    %v936 = vpop.xlane.xlu0 %935
    %v937 = vmul.f32 %v933, %v281
    %v938 = vmul.f32 %v936, %v281
    %v939 = vadd.f32 %v937, 1e-05
    %v940 = vadd.f32 %v938, 1e-05
    %v941 = vrsqrt.pop %v939
    %v942 = vrsqrt.pop %v940
    %v943 = vmul.f32 %v927, %v941
    %v944 = vmul.f32 %v928, %v942
    %v946 = vlaneseq
    %v947 = vshrl.u32 %v946, 7
    %v948 = vsub.s32 0, %v947
    %v949 = vrot.slane %v917, %v948
    %v951 = vmul.f32 %v943, %v949
    %v952 = vmul.f32 %v944, %v949
    %v954 = vlaneseq
    %v955 = vshrl.u32 %v954, 7
    %v956 = vsub.s32 0, %v955
    %v957 = vrot.slane %v918, %v956
    %v959 = vadd.f32 %v951, %v957
    %v960 = vadd.f32 %v952, %v957
    %v961 = vadd.f32 %v959, %v578
    %v962 = vadd.f32 %v960, %v579
    %v963 = vmax.f32 %v961, 0.0
    %v964 = vmax.f32 %v962, 0.0
    %v965 = vld [vmem:[#allocation16] sm:$0xff]
    %v966 = vld [vmem:[#allocation16 + $0x8] sm:$0xff]
    %v967 = vld [vmem:[#allocation16 + $0x10] sm:$0xff]
    %v968 = vld [vmem:[#allocation16 + $0x18] sm:$0xff]
    %v969 = vld [vmem:[%s16] sm:$0x1]
    %v971 = vlaneseq
    %v972 = vshrl.u32 %v971, 7
    %v973 = vsub.s32 0, %v972
    %v974 = vrot.slane %v969, %v973
    %v977 = vsel %vm191, %v963, 0
    %v980 = vsel %vm191, %v964, 0
    %982 = vmatprep.subr.mxu0 0.0
    %983 = vmatpush1.msra.mxu0 0.0
    %984 = vmatprep.subr.mxu0 0.0
    %985 = vmatpush1.msra.mxu0 0.0
    %986 = vmatprep.subr.mxu0 0.0
    %987 = vmatpush1.msra.mxu0 0.0
    %988 = vmatprep.subr.mxu0 0.0
    %989 = vmatpush1.msra.mxu0 0.0
    %990 = vmatprep.subr.mxu0 0.0
    %991 = vmatpush1.msra.mxu0 0.0
    %992 = vmatprep.subr.mxu0 0.0
    %993 = vmatpush1.msra.mxu0 0.0
    %994 = vmatprep.subr.mxu0 0.0
    %995 = vmatpush1.msra.mxu0 0.0
    %996 = vmatprep.subr.mxu0 0.0
    %997 = vmatpush1.msra.mxu0 0.0
    %998 = vmatprep.subr.mxu0 0.0
    %999 = vmatpush1.msra.mxu0 0.0
    %1000 = vmatprep.subr.mxu0 0.0
    %1001 = vmatpush1.msra.mxu0 0.0
    %1002 = vmatprep.subr.mxu0 0.0
    %1003 = vmatpush1.msra.mxu0 0.0
    %1004 = vmatprep.subr.mxu0 0.0
    %1005 = vmatpush1.msra.mxu0 0.0
    %1006 = vmatprep.subr.mxu0 0.0
    %1007 = vmatpush1.msra.mxu0 %v968
    %1008 = vmatprep.subr.mxu0 0.0
    %1009 = vmatpush1.msra.mxu0 %v967
    %1010 = vmatprep.subr.mxu0 0.0
    %1011 = vmatpush1.msra.mxu0 %v966
    %1012 = vmatprep.subr.mxu0 0.0
    %1013 = vmatpush1.msra.mxu0 %v965
    %1014 = vmatprep.subr.mxu0 0.0
    %1015 = vmatpush2.msra.mxu0 0.0
    %1016 = vmatprep.subr.mxu0 0.0
    %1017 = vmatpush2.msra.mxu0 0.0
    %1018 = vmatprep.subr.mxu0 0.0
    %1019 = vmatpush2.msra.mxu0 0.0
    %1020 = vmatprep.subr.mxu0 0.0
    %1021 = vmatpush2.msra.mxu0 0.0
    %1022 = vmatprep.subr.mxu0 0.0
    %1023 = vmatpush2.msra.mxu0 0.0
    %1024 = vmatprep.subr.mxu0 0.0
    %1025 = vmatpush2.msra.mxu0 0.0
    %1026 = vmatprep.subr.mxu0 0.0
    %1027 = vmatpush2.msra.mxu0 0.0
    %1028 = vmatprep.subr.mxu0 0.0
    %1029 = vmatpush2.msra.mxu0 0.0
    %1030 = vmatprep.subr.mxu0 0.0
    %1031 = vmatpush2.msra.mxu0 0.0
    %1032 = vmatprep.subr.mxu0 0.0
    %1033 = vmatpush2.msra.mxu0 0.0
    %1034 = vmatprep.subr.mxu0 0.0
    %1035 = vmatpush2.msra.mxu0 0.0
    %1036 = vmatprep.subr.mxu0 0.0
    %1037 = vmatpush2.msra.mxu0 0.0
    %1038 = vmatprep.subr.mxu0 0.0
    %1039 = vmatpush2.msra.mxu0 0.0
    %1040 = vmatprep.subr.mxu0 0.0
    %1041 = vmatpush2.msra.mxu0 0.0
    %1042 = vmatprep.subr.mxu0 0.0
    %1043 = vmatpush2.msra.mxu0 0.0
    %1044 = vmatprep.subr.mxu0 0.0
    %1045 = vmatpush2.msra.mxu0 0.0
    %1046 = vmatprep.mubr.f32.mxu0 0.0
    %1047 = vmatmul.mubr.f32.gmra.mxu0 %v977
    %v1048 = vpop.f32.mrf.mxu0
    %v1049 = vadd.f32 %v974, %v1048
    %v1050 = vpop.f32.mrf.mxu0
    %1051 = vmatprep.mubr.f32.mxu0 0.0
    %1052 = vmatmul.mubr.f32.gmra.mxu0 %v980
    %v1053 = vpop.f32.mrf.mxu0
    %v1054 = vadd.f32 %v974, %v1053
    %v1055 = vpop.f32.mrf.mxu0
    %1056 = vdwg.mxu0
    %v1057 = vld [vmem:[%s17] sm:$0x1]
    %v1058 = vld [vmem:[%s18] sm:$0x1]
    %v1059 = vsel %vm191, %v1049, 0.0
    %1060 = vadd.xlane.f32.xlu0 %v1059
    %v1061 = vpop.xlane.xlu0 %1060
    %v1062 = vsel %vm191, %v1054, 0.0
    %1063 = vadd.xlane.f32.xlu0 %v1062
    %v1064 = vpop.xlane.xlu0 %1063
    %v1065 = vmul.f32 %v1061, %v281
    %v1066 = vmul.f32 %v1064, %v281
    %v1067 = vsub.f32 %v1049, %v1065
    %v1068 = vsub.f32 %v1054, %v1066
    %v1069 = vmul.f32 %v1067, %v1067
    %v1070 = vmul.f32 %v1068, %v1068
    %v1071 = vsel %vm191, %v1069, 0.0
    %1072 = vadd.xlane.f32.xlu0 %v1071
    %v1073 = vpop.xlane.xlu0 %1072
    %v1074 = vsel %vm191, %v1070, 0.0
    %1075 = vadd.xlane.f32.xlu0 %v1074
    %v1076 = vpop.xlane.xlu0 %1075
    %v1077 = vmul.f32 %v1073, %v281
    %v1078 = vmul.f32 %v1076, %v281
    %v1079 = vadd.f32 %v1077, 1e-05
    %v1080 = vadd.f32 %v1078, 1e-05
    %v1081 = vrsqrt.pop %v1079
    %v1082 = vrsqrt.pop %v1080
    %v1083 = vmul.f32 %v1067, %v1081
    %v1084 = vmul.f32 %v1068, %v1082
    %v1086 = vlaneseq
    %v1087 = vshrl.u32 %v1086, 7
    %v1088 = vsub.s32 0, %v1087
    %v1089 = vrot.slane %v1057, %v1088
    %v1091 = vmul.f32 %v1083, %v1089
    %v1092 = vmul.f32 %v1084, %v1089
    %v1094 = vlaneseq
    %v1095 = vshrl.u32 %v1094, 7
    %v1096 = vsub.s32 0, %v1095
    %v1097 = vrot.slane %v1058, %v1096
    %v1099 = vadd.f32 %v1091, %v1097
    %v1100 = vadd.f32 %v1092, %v1097
    %s1101 = sld [smem:[#allocation3]]
    %v1102 = vstv %s1101
    %v1103 = vrcp.pop 0.1
    %v1104 = vmul.f32 %v1102, %v1103
    %v1105 = vtanh.pop %v1104
    %v1106 = vld [vmem:[#allocation10] sm:$0xff]
    %v1107 = vld [vmem:[#allocation10 + $0x8] sm:$0xff]
    %v1108 = vmul.f32 %v1105, %v1106
    %v1109 = vmul.f32 %v1105, %v1107
    %v1110 = vadd.f32 %v1099, %v1108
    %v1111 = vadd.f32 %v1100, %v1109
    %1112 = vst.msk [vmem:[#allocation18] sm:$0xff] %vm191, %v1110
    %1113 = vst.msk [vmem:[#allocation18 + $0x8] sm:$0xff] %vm191, %v1111
    // Predicated region
    $region118: #{tpu_custom_call.1} parent=1 // pred_check
      _
    $region119: #{tpu_custom_call.1} parent=1 // pred_check_branch
      %1115 = sbr.rel (0) target = $region121
    $region120: #{tpu_custom_call.1} parent=1 // pred_region
      %s1117 = ssub.s32 256, 256
      %1118 = vsyncadd [#allocation6], %s1117
      %s1119 = sshll.u32 [#allocation18], 4
      %s1120 = int_to_ptr.vmem [resolvable:$true] %s1119
      %1125 = dma.vmem_to_hbm [thread:$0]  %s1120, 256, %s21, [#allocation6], 128, 128, 8
    $region121: #{tpu_custom_call.1} parent=1 // pred_fallthru
      _
    // Predicated region
    $region122: #{tpu_custom_call.1} parent=1 // pred_check
      _
    $region123: #{tpu_custom_call.1} parent=1 // pred_check_branch
      %1127 = sbr.rel (0) target = $region125
    $region124: #{tpu_custom_call.1} parent=1 // pred_region
      %1128 = dma.done [#allocation6], 256
    $region125: #{tpu_custom_call.1} parent=1 // pred_fallthru
      _
    %1129 = vsyncpa [#allocation5], 1
    %1130 = vsyncpa [#allocation8], 1
    %1131 = vsyncpa [#allocation11], 1
    %1132 = vsyncpa [#allocation14], 1
    %1133 = vsyncpa [#allocation17], 1
    %1134 = vsyncpa [#allocation6], 1

// kernel: tpu_custom_call.1
$region0: #{tpu_custom_call.1}
  #allocation0 [shape = 'u32[]', space=smem, size = 0x4, offset = 0x4, fixed_abs, tag = 'smem constant byte address 0x4 - core index']
  #allocation1 [shape = 'u32[144,128]{1,0:T(1,128)}', space=vmem, size = 0x12000, scoped, tag = 'internal scratch']
  #allocation2 [shape = 'f32[1]{0:T(128)S(6)}', space=smem, size = 0x200, scoped, tag = 'scoped memory for tpu_custom_call.1']
  #allocation3 [shape = 'f32[1]{0:T(128)S(6)}', space=smem, size = 0x200, scoped, tag = 'scoped memory for tpu_custom_call.1']
  %s0 = inlined_call_operand.hbm [shape: f32[16,32], index: 0, kind: input, shape index: {}]
  %s1 = inlined_call_operand.hbm [shape: f32[16,32], index: 1, kind: input, shape index: {}]
  %s2 = inlined_call_operand.hbm [shape: f32[16,32], index: 2, kind: input, shape index: {}]
  %s3 = inlined_call_operand.hbm [shape: f32[16,32], index: 3, kind: input, shape index: {}]
  %s4 = inlined_call_operand.hbm [shape: f32[3,32,32], index: 4, kind: input, shape index: {}]
  %s5 = inlined_call_operand.vmem [shape: f32[3,32], index: 5, kind: input, shape index: {}]
  %s6 = inlined_call_operand.vmem [shape: f32[3,32], index: 6, kind: input, shape index: {}]
  %s7 = inlined_call_operand.vmem [shape: f32[3,32], index: 7, kind: input, shape index: {}]
  %s8 = inlined_call_operand.vmem [shape: f32[1,32], index: 8, kind: input, shape index: {}]
  %s9 = inlined_call_operand.hbm [shape: f32[32,32], index: 9, kind: input, shape index: {}]
  %s10 = inlined_call_operand.vmem [shape: f32[1,32], index: 10, kind: input, shape index: {}]
  %s11 = inlined_call_operand.hbm [shape: f32[32,32], index: 11, kind: input, shape index: {}]
  %s12 = inlined_call_operand.vmem [shape: f32[1,32], index: 12, kind: input, shape index: {}]
  %s13 = inlined_call_operand.vmem [shape: f32[1,32], index: 13, kind: input, shape index: {}]
  %s14 = inlined_call_operand.vmem [shape: f32[1,32], index: 14, kind: input, shape index: {}]
  %s15 = inlined_call_operand.hbm [shape: f32[32,32], index: 15, kind: input, shape index: {}]
  %s16 = inlined_call_operand.vmem [shape: f32[1,32], index: 16, kind: input, shape index: {}]
  %s17 = inlined_call_operand.vmem [shape: f32[1,32], index: 17, kind: input, shape index: {}]
  %s18 = inlined_call_operand.vmem [shape: f32[1,32], index: 18, kind: input, shape index: {}]
  %s19 = inlined_call_operand.<no memory space> [shape: f32[1], index: 19, kind: input, shape index: {}]
  %s20 = inlined_call_operand.<no memory space> [shape: f32[1], index: 20, kind: input, shape index: {}]
  %s21 = inlined_call_operand.hbm [shape: f32[16,32], index: 21, kind: output, shape index: {}]
  %s22 = sld [smem:[#allocation0]]
  $region126: #{tpu_custom_call.1} parent=0
    _
  %s24 = ssub.s32 1, %s22
  %s25 = scalar_select 0, %s24, %s22
  %26 = sst [smem:[#allocation2]] %s19
  %27 = sst [smem:[#allocation3]] %s20
  $region1: #{tpu_custom_call.1} parent=0
    #allocation4 [shape = 'u8[8192]{0}', space=vmem, size = 0x2000, scoped, tag = 'input window, operand 0, single buffered']
    #allocation5 [shape = 's32[1]{0}', space=sflag, size = 0x4, scoped, tag = 'scoped memory for tpu_custom_call.1']
    #allocation6 [shape = 's32[1]{0}', space=sflag, size = 0x4, scoped, tag = 'scoped memory for tpu_custom_call.1']
    #allocation7 [shape = 'u8[8192]{0}', space=vmem, size = 0x2000, scoped, tag = 'input window, operand 1, single buffered']
    #allocation8 [shape = 's32[1]{0}', space=sflag, size = 0x4, scoped, tag = 'scoped memory for tpu_custom_call.1']
    #allocation9 [shape = 'u8[8192]{0}', space=vmem, size = 0x2000, scoped, tag = 'input window, operand 2, single buffered']
    #allocation10 [shape = 'u8[8192]{0}', space=vmem, size = 0x2000, scoped, tag = 'input window, operand 3, single buffered']
    #allocation11 [shape = 's32[1]{0}', space=sflag, size = 0x4, scoped, tag = 'scoped memory for tpu_custom_call.1']
    #allocation12 [shape = 'u8[49152]{0}', space=vmem, size = 0xc000, scoped, tag = 'input window, operand 4, single buffered']
    #allocation13 [shape = 'u8[16384]{0}', space=vmem, size = 0x4000, scoped, tag = 'input window, operand 9, single buffered']
    #allocation14 [shape = 's32[1]{0}', space=sflag, size = 0x4, scoped, tag = 'scoped memory for tpu_custom_call.1']
    #allocation15 [shape = 'u8[16384]{0}', space=vmem, size = 0x4000, scoped, tag = 'input window, operand 11, single buffered']
    #allocation16 [shape = 'u8[16384]{0}', space=vmem, size = 0x4000, scoped, tag = 'input window, operand 15, single buffered']
    #allocation17 [shape = 's32[1]{0}', space=sflag, size = 0x4, scoped, tag = 'scoped memory for tpu_custom_call.1']
    #allocation18 [shape = 'u8[8192]{0}', space=vmem, size = 0x2000, scoped, tag = 'output window, operand 0, single buffered']
    %28 = vsyncpa [#allocation5], 0
    %29 = vsyncpa [#allocation8], 0
    %30 = vsyncpa [#allocation11], 0
    %31 = vsyncpa [#allocation14], 0
    %32 = vsyncpa [#allocation17], 0
    %33 = vsyncpa [#allocation6], 0
    // Predicated region
    $region2: #{tpu_custom_call.1} parent=1 // pred_check
      _
    $region3: #{tpu_custom_call.1} parent=1 // pred_check_branch
      %35 = sbr.rel (0) target = $region5
    $region4: #{tpu_custom_call.1} parent=1 // pred_region
      %s37 = ssub.s32 256, 256
      %38 = vsyncadd [#allocation5], %s37
      %s39 = sshll.u32 [#allocation4], 4
      %s40 = int_to_ptr.vmem [resolvable:$true] %s39
      %45 = dma.hbm_to_vmem [thread:$0]  %s0, 256, %s40, [#allocation5], 128, 128, 8
    $region5: #{tpu_custom_call.1} parent=1 // pred_fallthru
      _
    // Predicated region
    $region6: #{tpu_custom_call.1} parent=1 // pred_check
      _
    $region7: #{tpu_custom_call.1} parent=1 // pred_check_branch
      %47 = sbr.rel (0) target = $region9
    $region8: #{tpu_custom_call.1} parent=1 // pred_region
      %s49 = ssub.s32 256, 256
      %50 = vsyncadd [#allocation8], %s49
      %s51 = sshll.u32 [#allocation7], 4
      %s52 = int_to_ptr.vmem [resolvable:$true] %s51
      %57 = dma.hbm_to_vmem [thread:$0]  %s1, 256, %s52, [#allocation8], 128, 128, 8
    $region9: #{tpu_custom_call.1} parent=1 // pred_fallthru
      _
    // Predicated region
    $region10: #{tpu_custom_call.1} parent=1 // pred_check
      _
    $region11: #{tpu_custom_call.1} parent=1 // pred_check_branch
      %59 = sbr.rel (0) target = $region13
    $region12: #{tpu_custom_call.1} parent=1 // pred_region
      %s61 = ssub.s32 256, 256
      %62 = vsyncadd [#allocation8], %s61
      %s63 = sshll.u32 [#allocation9], 4
      %s64 = int_to_ptr.vmem [resolvable:$true] %s63
      %69 = dma.hbm_to_vmem [thread:$0]  %s2, 256, %s64, [#allocation8], 128, 128, 8
    $region13: #{tpu_custom_call.1} parent=1 // pred_fallthru
      _
    // Predicated region
    $region14: #{tpu_custom_call.1} parent=1 // pred_check
      _
    $region15: #{tpu_custom_call.1} parent=1 // pred_check_branch
      %71 = sbr.rel (0) target = $region17
    $region16: #{tpu_custom_call.1} parent=1 // pred_region
      %s73 = ssub.s32 256, 256
      %74 = vsyncadd [#allocation11], %s73
      %s75 = sshll.u32 [#allocation10], 4
      %s76 = int_to_ptr.vmem [resolvable:$true] %s75
      %81 = dma.hbm_to_vmem [thread:$0]  %s3, 256, %s76, [#allocation11], 128, 128, 8
    $region17: #{tpu_custom_call.1} parent=1 // pred_fallthru
      _
    // Predicated region
    $region18: #{tpu_custom_call.1} parent=1 // pred_check
      _
    $region19: #{tpu_custom_call.1} parent=1 // pred_check_branch
      %83 = sbr.rel (0) target = $region21
    $region20: #{tpu_custom_call.1} parent=1 // pred_region
      %s85 = ssub.s32 1536, 1536
      %86 = vsyncadd [#allocation11], %s85
      %s87 = sshll.u32 [#allocation12], 4
      %s88 = int_to_ptr.vmem [resolvable:$true] %s87
      %93 = dma.hbm_to_vmem [thread:$0]  %s4, 1536, %s88, [#allocation11], 128, 128, 8
    $region21: #{tpu_custom_call.1} parent=1 // pred_fallthru
      _
    // Predicated region
    $region22: #{tpu_custom_call.1} parent=1 // pred_check
      _
    $region23: #{tpu_custom_call.1} parent=1 // pred_check_branch
      %95 = sbr.rel (0) target = $region25
    $region24: #{tpu_custom_call.1} parent=1 // pred_region
      _
    $region25: #{tpu_custom_call.1} parent=1 // pred_fallthru
      _
    // Predicated region
    $region26: #{tpu_custom_call.1} parent=1 // pred_check
      _
    $region27: #{tpu_custom_call.1} parent=1 // pred_check_branch
      %97 = sbr.rel (0) target = $region29
    $region28: #{tpu_custom_call.1} parent=1 // pred_region
      _
    $region29: #{tpu_custom_call.1} parent=1 // pred_fallthru
      _
    // Predicated region
    $region30: #{tpu_custom_call.1} parent=1 // pred_check
      _
    $region31: #{tpu_custom_call.1} parent=1 // pred_check_branch
      %99 = sbr.rel (0) target = $region33
    $region32: #{tpu_custom_call.1} parent=1 // pred_region
      _
    $region33: #{tpu_custom_call.1} parent=1 // pred_fallthru
      _
    // Predicated region
    $region34: #{tpu_custom_call.1} parent=1 // pred_check
      _
    $region35: #{tpu_custom_call.1} parent=1 // pred_check_branch
      %101 = sbr.rel (0) target = $region37
    $region36: #{tpu_custom_call.1} parent=1 // pred_region
      _
    $region37: #{tpu_custom_call.1} parent=1 // pred_fallthru
      _
    // Predicated region
    $region38: #{tpu_custom_call.1} parent=1 // pred_check
      _
    $region39: #{tpu_custom_call.1} parent=1 // pred_check_branch
      %103 = sbr.rel (0) target = $region41
    $region40: #{tpu_custom_call.1} parent=1 // pred_region
      %s105 = ssub.s32 512, 512
      %106 = vsyncadd [#allocation14], %s105
      %s107 = sshll.u32 [#allocation13], 4
      %s108 = int_to_ptr.vmem [resolvable:$true] %s107
      %113 = dma.hbm_to_vmem [thread:$0]  %s9, 512, %s108, [#allocation14], 128, 128, 8
    $region41: #{tpu_custom_call.1} parent=1 // pred_fallthru
      _
    // Predicated region
    $region42: #{tpu_custom_call.1} parent=1 // pred_check
      _
    $region43: #{tpu_custom_call.1} parent=1 // pred_check_branch
      %115 = sbr.rel (0) target = $region45
    $region44: #{tpu_custom_call.1} parent=1 // pred_region
      _
    $region45: #{tpu_custom_call.1} parent=1 // pred_fallthru
      _
    // Predicated region
    $region46: #{tpu_custom_call.1} parent=1 // pred_check
      _
    $region47: #{tpu_custom_call.1} parent=1 // pred_check_branch
      %117 = sbr.rel (0) target = $region49
    $region48: #{tpu_custom_call.1} parent=1 // pred_region
      %s119 = ssub.s32 512, 512
      %120 = vsyncadd [#allocation14], %s119
      %s121 = sshll.u32 [#allocation15], 4
      %s122 = int_to_ptr.vmem [resolvable:$true] %s121
      %127 = dma.hbm_to_vmem [thread:$0]  %s11, 512, %s122, [#allocation14], 128, 128, 8
    $region49: #{tpu_custom_call.1} parent=1 // pred_fallthru
      _
    // Predicated region
    $region50: #{tpu_custom_call.1} parent=1 // pred_check
      _
    $region51: #{tpu_custom_call.1} parent=1 // pred_check_branch
      %129 = sbr.rel (0) target = $region53
    $region52: #{tpu_custom_call.1} parent=1 // pred_region
      _
    $region53: #{tpu_custom_call.1} parent=1 // pred_fallthru
      _
    // Predicated region
    $region54: #{tpu_custom_call.1} parent=1 // pred_check
      _
    $region55: #{tpu_custom_call.1} parent=1 // pred_check_branch
      %131 = sbr.rel (0) target = $region57
    $region56: #{tpu_custom_call.1} parent=1 // pred_region
      _
    $region57: #{tpu_custom_call.1} parent=1 // pred_fallthru
      _
    // Predicated region
    $region58: #{tpu_custom_call.1} parent=1 // pred_check
      _
    $region59: #{tpu_custom_call.1} parent=1 // pred_check_branch
      %133 = sbr.rel (0) target = $region61
    $region60: #{tpu_custom_call.1} parent=1 // pred_region
      _
    $region61: #{tpu_custom_call.1} parent=1 // pred_fallthru
      _
    // Predicated region
    $region62: #{tpu_custom_call.1} parent=1 // pred_check
      _
    $region63: #{tpu_custom_call.1} parent=1 // pred_check_branch
      %135 = sbr.rel (0) target = $region65
    $region64: #{tpu_custom_call.1} parent=1 // pred_region
      %s137 = ssub.s32 512, 512
      %138 = vsyncadd [#allocation17], %s137
      %s139 = sshll.u32 [#allocation16], 4
      %s140 = int_to_ptr.vmem [resolvable:$true] %s139
      %145 = dma.hbm_to_vmem [thread:$0]  %s15, 512, %s140, [#allocation17], 128, 128, 8
    $region65: #{tpu_custom_call.1} parent=1 // pred_fallthru
      _
    // Predicated region
    $region66: #{tpu_custom_call.1} parent=1 // pred_check
      _
    $region67: #{tpu_custom_call.1} parent=1 // pred_check_branch
      %147 = sbr.rel (0) target = $region69
    $region68: #{tpu_custom_call.1} parent=1 // pred_region
      _
    $region69: #{tpu_custom_call.1} parent=1 // pred_fallthru
      _
    // Predicated region
    $region70: #{tpu_custom_call.1} parent=1 // pred_check
      _
    $region71: #{tpu_custom_call.1} parent=1 // pred_check_branch
      %149 = sbr.rel (0) target = $region73
    $region72: #{tpu_custom_call.1} parent=1 // pred_region
      _
    $region73: #{tpu_custom_call.1} parent=1 // pred_fallthru
      _
    // Predicated region
    $region74: #{tpu_custom_call.1} parent=1 // pred_check
      _
    $region75: #{tpu_custom_call.1} parent=1 // pred_check_branch
      %151 = sbr.rel (0) target = $region77
    $region76: #{tpu_custom_call.1} parent=1 // pred_region
      _
    $region77: #{tpu_custom_call.1} parent=1 // pred_fallthru
      _
    // Predicated region
    $region78: #{tpu_custom_call.1} parent=1 // pred_check
      _
    $region79: #{tpu_custom_call.1} parent=1 // pred_check_branch
      %153 = sbr.rel (0) target = $region81
    $region80: #{tpu_custom_call.1} parent=1 // pred_region
      _
    $region81: #{tpu_custom_call.1} parent=1 // pred_fallthru
      _
    // Predicated region
    $region82: #{tpu_custom_call.1} parent=1 // pred_check
      _
    $region83: #{tpu_custom_call.1} parent=1 // pred_check_branch
      %155 = sbr.rel (0) target = $region85
    $region84: #{tpu_custom_call.1} parent=1 // pred_region
      _
    $region85: #{tpu_custom_call.1} parent=1 // pred_fallthru
      _
    // Predicated region
    $region86: #{tpu_custom_call.1} parent=1 // pred_check
      _
    $region87: #{tpu_custom_call.1} parent=1 // pred_check_branch
      %157 = sbr.rel (0) target = $region89
    $region88: #{tpu_custom_call.1} parent=1 // pred_region
      %158 = dma.done [#allocation5], 256
    $region89: #{tpu_custom_call.1} parent=1 // pred_fallthru
      _
    // Predicated region
    $region90: #{tpu_custom_call.1} parent=1 // pred_check
      _
    $region91: #{tpu_custom_call.1} parent=1 // pred_check_branch
      %160 = sbr.rel (0) target = $region93
    $region92: #{tpu_custom_call.1} parent=1 // pred_region
      %161 = dma.done [#allocation8], 256
    $region93: #{tpu_custom_call.1} parent=1 // pred_fallthru
      _
    // Predicated region
    $region94: #{tpu_custom_call.1} parent=1 // pred_check
      _
    $region95: #{tpu_custom_call.1} parent=1 // pred_check_branch
      %163 = sbr.rel (0) target = $region97
    $region96: #{tpu_custom_call.1} parent=1 // pred_region
      %164 = dma.done [#allocation8], 256
    $region97: #{tpu_custom_call.1} parent=1 // pred_fallthru
      _
    // Predicated region
    $region98: #{tpu_custom_call.1} parent=1 // pred_check
      _
    $region99: #{tpu_custom_call.1} parent=1 // pred_check_branch
      %166 = sbr.rel (0) target = $region101
    $region100: #{tpu_custom_call.1} parent=1 // pred_region
      %167 = dma.done [#allocation11], 256
    $region101: #{tpu_custom_call.1} parent=1 // pred_fallthru
      _
    // Predicated region
    $region102: #{tpu_custom_call.1} parent=1 // pred_check
      _
    $region103: #{tpu_custom_call.1} parent=1 // pred_check_branch
      %169 = sbr.rel (0) target = $region105
    $region104: #{tpu_custom_call.1} parent=1 // pred_region
      %170 = dma.done [#allocation11], 1536
    $region105: #{tpu_custom_call.1} parent=1 // pred_fallthru
      _
    // Predicated region
    $region106: #{tpu_custom_call.1} parent=1 // pred_check
      _
    $region107: #{tpu_custom_call.1} parent=1 // pred_check_branch
      %172 = sbr.rel (0) target = $region109
    $region108: #{tpu_custom_call.1} parent=1 // pred_region
      %173 = dma.done [#allocation14], 512
    $region109: #{tpu_custom_call.1} parent=1 // pred_fallthru
      _
    // Predicated region
    $region110: #{tpu_custom_call.1} parent=1 // pred_check
      _
    $region111: #{tpu_custom_call.1} parent=1 // pred_check_branch
      %175 = sbr.rel (0) target = $region113
    $region112: #{tpu_custom_call.1} parent=1 // pred_region
      %176 = dma.done [#allocation14], 512
    $region113: #{tpu_custom_call.1} parent=1 // pred_fallthru
      _
    // Predicated region
    $region114: #{tpu_custom_call.1} parent=1 // pred_check
      _
    $region115: #{tpu_custom_call.1} parent=1 // pred_check_branch
      %178 = sbr.rel (0) target = $region117
    $region116: #{tpu_custom_call.1} parent=1 // pred_region
      %179 = dma.done [#allocation17], 512
    $region117: #{tpu_custom_call.1} parent=1 // pred_fallthru
      _
    %v180 = vld [vmem:[#allocation4] sm:$0xff]
    %v181 = vld [vmem:[#allocation4 + $0x8] sm:$0xff]
    %v182 = vld [vmem:[#allocation12] sm:$0xff]
    %v183 = vld [vmem:[#allocation12 + $0x8] sm:$0xff]
    %v184 = vld [vmem:[#allocation12 + $0x10] sm:$0xff]
    %v185 = vld [vmem:[#allocation12 + $0x18] sm:$0xff]
    %v186 = vld [vmem:[%s5] sm:$0x1]
    %v187 = vlaneseq
    %v188 = vshrl.u32 %v187, 7
    %v189 = vsub.s32 0, %v188
    %v190 = vrot.slane %v186, %v189
    %vm191 = vcmask 261120
    %v193 = vsel %vm191, %v180, 0
    %v196 = vsel %vm191, %v181, 0
    %198 = vmatprep.subr.mxu0 0.0
    %199 = vmatpush1.msra.mxu0 0.0
    %200 = vmatprep.subr.mxu0 0.0
    %201 = vmatpush1.msra.mxu0 0.0
    %202 = vmatprep.subr.mxu0 0.0
    %203 = vmatpush1.msra.mxu0 0.0
    %204 = vmatprep.subr.mxu0 0.0
    %205 = vmatpush1.msra.mxu0 0.0
    %206 = vmatprep.subr.mxu0 0.0
    %207 = vmatpush1.msra.mxu0 0.0
    %208 = vmatprep.subr.mxu0 0.0
    %209 = vmatpush1.msra.mxu0 0.0
    %210 = vmatprep.subr.mxu0 0.0
    %211 = vmatpush1.msra.mxu0 0.0
    %212 = vmatprep.subr.mxu0 0.0
    %213 = vmatpush1.msra.mxu0 0.0
    %214 = vmatprep.subr.mxu0 0.0
    %215 = vmatpush1.msra.mxu0 0.0
    %216 = vmatprep.subr.mxu0 0.0
    %217 = vmatpush1.msra.mxu0 0.0
    %218 = vmatprep.subr.mxu0 0.0
    %219 = vmatpush1.msra.mxu0 0.0
    %220 = vmatprep.subr.mxu0 0.0
    %221 = vmatpush1.msra.mxu0 0.0
    %222 = vmatprep.subr.mxu0 0.0
    %223 = vmatpush1.msra.mxu0 %v185
    %224 = vmatprep.subr.mxu0 0.0
    %225 = vmatpush1.msra.mxu0 %v184
    %226 = vmatprep.subr.mxu0 0.0
    %227 = vmatpush1.msra.mxu0 %v183
    %228 = vmatprep.subr.mxu0 0.0
    %229 = vmatpush1.msra.mxu0 %v182
    %230 = vmatprep.subr.mxu0 0.0
    %231 = vmatpush2.msra.mxu0 0.0
    %232 = vmatprep.subr.mxu0 0.0
    %233 = vmatpush2.msra.mxu0 0.0
    %234 = vmatprep.subr.mxu0 0.0
    %235 = vmatpush2.msra.mxu0 0.0
    %236 = vmatprep.subr.mxu0 0.0
    %237 = vmatpush2.msra.mxu0 0.0
    %238 = vmatprep.subr.mxu0 0.0
    %239 = vmatpush2.msra.mxu0 0.0
    %240 = vmatprep.subr.mxu0 0.0
    %241 = vmatpush2.msra.mxu0 0.0
    %242 = vmatprep.subr.mxu0 0.0
    %243 = vmatpush2.msra.mxu0 0.0
    %244 = vmatprep.subr.mxu0 0.0
    %245 = vmatpush2.msra.mxu0 0.0
    %246 = vmatprep.subr.mxu0 0.0
    %247 = vmatpush2.msra.mxu0 0.0
    %248 = vmatprep.subr.mxu0 0.0
    %249 = vmatpush2.msra.mxu0 0.0
    %250 = vmatprep.subr.mxu0 0.0
    %251 = vmatpush2.msra.mxu0 0.0
    %252 = vmatprep.subr.mxu0 0.0
    %253 = vmatpush2.msra.mxu0 0.0
    %254 = vmatprep.subr.mxu0 0.0
    %255 = vmatpush2.msra.mxu0 0.0
    %256 = vmatprep.subr.mxu0 0.0
    %257 = vmatpush2.msra.mxu0 0.0
    %258 = vmatprep.subr.mxu0 0.0
    %259 = vmatpush2.msra.mxu0 0.0
    %260 = vmatprep.subr.mxu0 0.0
    %261 = vmatpush2.msra.mxu0 0.0
    %262 = vmatprep.mubr.f32.mxu0 0.0
    %263 = vmatmul.mubr.f32.gmra.mxu0 %v193
    %v264 = vpop.f32.mrf.mxu0
    %v265 = vadd.f32 %v190, %v264
    %v266 = vpop.f32.mrf.mxu0
    %267 = vmatprep.mubr.f32.mxu0 0.0
    %268 = vmatmul.mubr.f32.gmra.mxu0 %v196
    %v269 = vpop.f32.mrf.mxu0
    %v270 = vadd.f32 %v190, %v269
    %v271 = vpop.f32.mrf.mxu0
    %272 = vdwg.mxu0
    %v273 = vld [vmem:[%s6] sm:$0x1]
    %v274 = vld [vmem:[%s7] sm:$0x1]
    %v275 = vsel %vm191, %v265, 0.0
    %276 = vadd.xlane.f32.xlu0 %v275
    %v277 = vpop.xlane.xlu0 %276
    %v278 = vsel %vm191, %v270, 0.0
    %279 = vadd.xlane.f32.xlu0 %v278
    %v280 = vpop.xlane.xlu0 %279
    %v281 = vrcp.pop 32.0
    %v282 = vmul.f32 %v277, %v281
    %v283 = vmul.f32 %v280, %v281
    %v284 = vsub.f32 %v265, %v282
    %v285 = vsub.f32 %v270, %v283
    %v286 = vmul.f32 %v284, %v284
    %v287 = vmul.f32 %v285, %v285
    %v288 = vsel %vm191, %v286, 0.0
    %289 = vadd.xlane.f32.xlu0 %v288
    %v290 = vpop.xlane.xlu0 %289
    %v291 = vsel %vm191, %v287, 0.0
    %292 = vadd.xlane.f32.xlu0 %v291
    %v293 = vpop.xlane.xlu0 %292
    %v294 = vmul.f32 %v290, %v281
    %v295 = vmul.f32 %v293, %v281
    %v296 = vadd.f32 %v294, 1e-05
    %v297 = vadd.f32 %v295, 1e-05
    %v298 = vrsqrt.pop %v296
    %v299 = vrsqrt.pop %v297
    %v300 = vmul.f32 %v284, %v298
    %v301 = vmul.f32 %v285, %v299
    %v302 = vlaneseq
    %v303 = vshrl.u32 %v302, 7
    %v304 = vsub.s32 0, %v303
    %v305 = vrot.slane %v273, %v304
    %v306 = vmul.f32 %v300, %v305
    %v307 = vmul.f32 %v301, %v305
    %v308 = vlaneseq
    %v309 = vshrl.u32 %v308, 7
    %v310 = vsub.s32 0, %v309
    %v311 = vrot.slane %v274, %v310
    %v312 = vadd.f32 %v306, %v311
    %v313 = vadd.f32 %v307, %v311
    %v314 = vld [vmem:[#allocation7] sm:$0xff]
    %v315 = vld [vmem:[#allocation7 + $0x8] sm:$0xff]
    %s316 = scalar_lea.vmem [#allocation12], 32
    %v317 = vld [vmem:[%s316] sm:$0xff]
    %v318 = vld [vmem:[%s316 + $0x8] sm:$0xff]
    %v319 = vld [vmem:[%s316 + $0x10] sm:$0xff]
    %v320 = vld [vmem:[%s316 + $0x18] sm:$0xff]
    %v321 = vld [vmem:[%s5 + $0x1] sm:$0x1]
    %v322 = vlaneseq
    %v323 = vshrl.u32 %v322, 7
    %v324 = vsub.s32 0, %v323
    %v325 = vrot.slane %v321, %v324
    %v327 = vsel %vm191, %v314, 0
    %v330 = vsel %vm191, %v315, 0
    %332 = vmatprep.subr.mxu0 0.0
    %333 = vmatpush1.msra.mxu0 0.0
    %334 = vmatprep.subr.mxu0 0.0
    %335 = vmatpush1.msra.mxu0 0.0
    %336 = vmatprep.subr.mxu0 0.0
    %337 = vmatpush1.msra.mxu0 0.0
    %338 = vmatprep.subr.mxu0 0.0
    %339 = vmatpush1.msra.mxu0 0.0
    %340 = vmatprep.subr.mxu0 0.0
    %341 = vmatpush1.msra.mxu0 0.0
    %342 = vmatprep.subr.mxu0 0.0
    %343 = vmatpush1.msra.mxu0 0.0
    %344 = vmatprep.subr.mxu0 0.0
    %345 = vmatpush1.msra.mxu0 0.0
    %346 = vmatprep.subr.mxu0 0.0
    %347 = vmatpush1.msra.mxu0 0.0
    %348 = vmatprep.subr.mxu0 0.0
    %349 = vmatpush1.msra.mxu0 0.0
    %350 = vmatprep.subr.mxu0 0.0
    %351 = vmatpush1.msra.mxu0 0.0
    %352 = vmatprep.subr.mxu0 0.0
    %353 = vmatpush1.msra.mxu0 0.0
    %354 = vmatprep.subr.mxu0 0.0
    %355 = vmatpush1.msra.mxu0 0.0
    %356 = vmatprep.subr.mxu0 0.0
    %357 = vmatpush1.msra.mxu0 %v320
    %358 = vmatprep.subr.mxu0 0.0
    %359 = vmatpush1.msra.mxu0 %v319
    %360 = vmatprep.subr.mxu0 0.0
    %361 = vmatpush1.msra.mxu0 %v318
    %362 = vmatprep.subr.mxu0 0.0
    %363 = vmatpush1.msra.mxu0 %v317
    %364 = vmatprep.subr.mxu0 0.0
    %365 = vmatpush2.msra.mxu0 0.0
    %366 = vmatprep.subr.mxu0 0.0
    %367 = vmatpush2.msra.mxu0 0.0
    %368 = vmatprep.subr.mxu0 0.0
    %369 = vmatpush2.msra.mxu0 0.0
    %370 = vmatprep.subr.mxu0 0.0
    %371 = vmatpush2.msra.mxu0 0.0
    %372 = vmatprep.subr.mxu0 0.0
    %373 = vmatpush2.msra.mxu0 0.0
    %374 = vmatprep.subr.mxu0 0.0
    %375 = vmatpush2.msra.mxu0 0.0
    %376 = vmatprep.subr.mxu0 0.0
    %377 = vmatpush2.msra.mxu0 0.0
    %378 = vmatprep.subr.mxu0 0.0
    %379 = vmatpush2.msra.mxu0 0.0
    %380 = vmatprep.subr.mxu0 0.0
    %381 = vmatpush2.msra.mxu0 0.0
    %382 = vmatprep.subr.mxu0 0.0
    %383 = vmatpush2.msra.mxu0 0.0
    %384 = vmatprep.subr.mxu0 0.0
    %385 = vmatpush2.msra.mxu0 0.0
    %386 = vmatprep.subr.mxu0 0.0
    %387 = vmatpush2.msra.mxu0 0.0
    %388 = vmatprep.subr.mxu0 0.0
    %389 = vmatpush2.msra.mxu0 0.0
    %390 = vmatprep.subr.mxu0 0.0
    %391 = vmatpush2.msra.mxu0 0.0
    %392 = vmatprep.subr.mxu0 0.0
    %393 = vmatpush2.msra.mxu0 0.0
    %394 = vmatprep.subr.mxu0 0.0
    %395 = vmatpush2.msra.mxu0 0.0
    %396 = vmatprep.mubr.f32.mxu0 0.0
    %397 = vmatmul.mubr.f32.gmra.mxu0 %v327
    %v398 = vpop.f32.mrf.mxu0
    %v399 = vadd.f32 %v325, %v398
    %v400 = vpop.f32.mrf.mxu0
    %401 = vmatprep.mubr.f32.mxu0 0.0
    %402 = vmatmul.mubr.f32.gmra.mxu0 %v330
    %v403 = vpop.f32.mrf.mxu0
    %v404 = vadd.f32 %v325, %v403
    %v405 = vpop.f32.mrf.mxu0
    %406 = vdwg.mxu0
    %v407 = vld [vmem:[%s6 + $0x1] sm:$0x1]
    %v408 = vld [vmem:[%s7 + $0x1] sm:$0x1]
    %v409 = vsel %vm191, %v399, 0.0
    %410 = vadd.xlane.f32.xlu0 %v409
    %v411 = vpop.xlane.xlu0 %410
    %v412 = vsel %vm191, %v404, 0.0
    %413 = vadd.xlane.f32.xlu0 %v412
    %v414 = vpop.xlane.xlu0 %413
    %v415 = vmul.f32 %v411, %v281
    %v416 = vmul.f32 %v414, %v281
    %v417 = vsub.f32 %v399, %v415
    %v418 = vsub.f32 %v404, %v416
    %v419 = vmul.f32 %v417, %v417
    %v420 = vmul.f32 %v418, %v418
    %v421 = vsel %vm191, %v419, 0.0
    %422 = vadd.xlane.f32.xlu0 %v421
    %v423 = vpop.xlane.xlu0 %422
    %v424 = vsel %vm191, %v420, 0.0
    %425 = vadd.xlane.f32.xlu0 %v424
    %v426 = vpop.xlane.xlu0 %425
    %v427 = vmul.f32 %v423, %v281
    %v428 = vmul.f32 %v426, %v281
    %v429 = vadd.f32 %v427, 1e-05
    %v430 = vadd.f32 %v428, 1e-05
    %v431 = vrsqrt.pop %v429
    %v432 = vrsqrt.pop %v430
    %v433 = vmul.f32 %v417, %v431
    %v434 = vmul.f32 %v418, %v432
    %v435 = vlaneseq
    %v436 = vshrl.u32 %v435, 7
    %v437 = vsub.s32 0, %v436
    %v438 = vrot.slane %v407, %v437
    %v439 = vmul.f32 %v433, %v438
    %v440 = vmul.f32 %v434, %v438
    %v441 = vlaneseq
    %v442 = vshrl.u32 %v441, 7
    %v443 = vsub.s32 0, %v442
    %v444 = vrot.slane %v408, %v443
    %v445 = vadd.f32 %v439, %v444
    %v446 = vadd.f32 %v440, %v444
    %v447 = vld [vmem:[#allocation9] sm:$0xff]
    %v448 = vld [vmem:[#allocation9 + $0x8] sm:$0xff]
    %s449 = scalar_lea.vmem [#allocation12], 64
    %v450 = vld [vmem:[%s449] sm:$0xff]
    %v451 = vld [vmem:[%s449 + $0x8] sm:$0xff]
    %v452 = vld [vmem:[%s449 + $0x10] sm:$0xff]
    %v453 = vld [vmem:[%s449 + $0x18] sm:$0xff]
    %v454 = vld [vmem:[%s5 + $0x2] sm:$0x1]
    %v455 = vlaneseq
    %v456 = vshrl.u32 %v455, 7
    %v457 = vsub.s32 0, %v456
    %v458 = vrot.slane %v454, %v457
    %v460 = vsel %vm191, %v447, 0
    %v463 = vsel %vm191, %v448, 0
    %465 = vmatprep.subr.mxu0 0.0
    %466 = vmatpush1.msra.mxu0 0.0
    %467 = vmatprep.subr.mxu0 0.0
    %468 = vmatpush1.msra.mxu0 0.0
    %469 = vmatprep.subr.mxu0 0.0
    %470 = vmatpush1.msra.mxu0 0.0
    %471 = vmatprep.subr.mxu0 0.0
    %472 = vmatpush1.msra.mxu0 0.0
    %473 = vmatprep.subr.mxu0 0.0
    %474 = vmatpush1.msra.mxu0 0.0
    %475 = vmatprep.subr.mxu0 0.0
    %476 = vmatpush1.msra.mxu0 0.0
    %477 = vmatprep.subr.mxu0 0.0
    %478 = vmatpush1.msra.mxu0 0.0
    %479 = vmatprep.subr.mxu0 0.0
    %480 = vmatpush1.msra.mxu0 0.0
    %481 = vmatprep.subr.mxu0 0.0
    %482 = vmatpush1.msra.mxu0 0.0
    %483 = vmatprep.subr.mxu0 0.0
    %484 = vmatpush1.msra.mxu0 0.0
    %485 = vmatprep.subr.mxu0 0.0
    %486 = vmatpush1.msra.mxu0 0.0
    %487 = vmatprep.subr.mxu0 0.0
    %488 = vmatpush1.msra.mxu0 0.0
    %489 = vmatprep.subr.mxu0 0.0
    %490 = vmatpush1.msra.mxu0 %v453
    %491 = vmatprep.subr.mxu0 0.0
    %492 = vmatpush1.msra.mxu0 %v452
    %493 = vmatprep.subr.mxu0 0.0
    %494 = vmatpush1.msra.mxu0 %v451
    %495 = vmatprep.subr.mxu0 0.0
    %496 = vmatpush1.msra.mxu0 %v450
    %497 = vmatprep.subr.mxu0 0.0
    %498 = vmatpush2.msra.mxu0 0.0
    %499 = vmatprep.subr.mxu0 0.0
    %500 = vmatpush2.msra.mxu0 0.0
    %501 = vmatprep.subr.mxu0 0.0
    %502 = vmatpush2.msra.mxu0 0.0
    %503 = vmatprep.subr.mxu0 0.0
    %504 = vmatpush2.msra.mxu0 0.0
    %505 = vmatprep.subr.mxu0 0.0
    %506 = vmatpush2.msra.mxu0 0.0
    %507 = vmatprep.subr.mxu0 0.0
    %508 = vmatpush2.msra.mxu0 0.0
    %509 = vmatprep.subr.mxu0 0.0
    %510 = vmatpush2.msra.mxu0 0.0
    %511 = vmatprep.subr.mxu0 0.0
    %512 = vmatpush2.msra.mxu0 0.0
    %513 = vmatprep.subr.mxu0 0.0
    %514 = vmatpush2.msra.mxu0 0.0
    %515 = vmatprep.subr.mxu0 0.0
    %516 = vmatpush2.msra.mxu0 0.0
    %517 = vmatprep.subr.mxu0 0.0
    %518 = vmatpush2.msra.mxu0 0.0
    %519 = vmatprep.subr.mxu0 0.0
    %520 = vmatpush2.msra.mxu0 0.0
    %521 = vmatprep.subr.mxu0 0.0
    %522 = vmatpush2.msra.mxu0 0.0
    %523 = vmatprep.subr.mxu0 0.0
    %524 = vmatpush2.msra.mxu0 0.0
    %525 = vmatprep.subr.mxu0 0.0
    %526 = vmatpush2.msra.mxu0 0.0
    %527 = vmatprep.subr.mxu0 0.0
    %528 = vmatpush2.msra.mxu0 0.0
    %529 = vmatprep.mubr.f32.mxu0 0.0
    %530 = vmatmul.mubr.f32.gmra.mxu0 %v460
    %v531 = vpop.f32.mrf.mxu0
    %v532 = vadd.f32 %v458, %v531
    %v533 = vpop.f32.mrf.mxu0
    %534 = vmatprep.mubr.f32.mxu0 0.0
    %535 = vmatmul.mubr.f32.gmra.mxu0 %v463
    %v536 = vpop.f32.mrf.mxu0
    %v537 = vadd.f32 %v458, %v536
    %v538 = vpop.f32.mrf.mxu0
    %539 = vdwg.mxu0
    %v540 = vld [vmem:[%s6 + $0x2] sm:$0x1]
    %v541 = vld [vmem:[%s7 + $0x2] sm:$0x1]
    %v542 = vsel %vm191, %v532, 0.0
    %543 = vadd.xlane.f32.xlu0 %v542
    %v544 = vpop.xlane.xlu0 %543
    %v545 = vsel %vm191, %v537, 0.0
    %546 = vadd.xlane.f32.xlu0 %v545
    %v547 = vpop.xlane.xlu0 %546
    %v548 = vmul.f32 %v544, %v281
    %v549 = vmul.f32 %v547, %v281
    %v550 = vsub.f32 %v532, %v548
    %v551 = vsub.f32 %v537, %v549
    %v552 = vmul.f32 %v550, %v550
    %v553 = vmul.f32 %v551, %v551
    %v554 = vsel %vm191, %v552, 0.0
    %555 = vadd.xlane.f32.xlu0 %v554
    %v556 = vpop.xlane.xlu0 %555
    %v557 = vsel %vm191, %v553, 0.0
    %558 = vadd.xlane.f32.xlu0 %v557
    %v559 = vpop.xlane.xlu0 %558
    %v560 = vmul.f32 %v556, %v281
    %v561 = vmul.f32 %v559, %v281
    %v562 = vadd.f32 %v560, 1e-05
    %v563 = vadd.f32 %v561, 1e-05
    %v564 = vrsqrt.pop %v562
    %v565 = vrsqrt.pop %v563
    %v566 = vmul.f32 %v550, %v564
    %v567 = vmul.f32 %v551, %v565
    %v568 = vlaneseq
    %v569 = vshrl.u32 %v568, 7
    %v570 = vsub.s32 0, %v569
    %v571 = vrot.slane %v540, %v570
    %v572 = vmul.f32 %v566, %v571
    %v573 = vmul.f32 %v567, %v571
    %v574 = vlaneseq
    %v575 = vshrl.u32 %v574, 7
    %v576 = vsub.s32 0, %v575
    %v577 = vrot.slane %v541, %v576
    %v578 = vadd.f32 %v572, %v577
    %v579 = vadd.f32 %v573, %v577
    %v580 = vmul.f32 %v312, %v312
    %v581 = vmul.f32 %v313, %v313
    %v582 = vsel %vm191, %v580, 0.0
    %583 = vadd.xlane.f32.xlu0 %v582
    %v584 = vpop.xlane.xlu0 %583
    %v585 = vsel %vm191, %v581, 0.0
    %586 = vadd.xlane.f32.xlu0 %v585
    %v587 = vpop.xlane.xlu0 %586
    %v588 = vmul.f32 %v445, %v445
    %v589 = vmul.f32 %v446, %v446
    %v590 = vsel %vm191, %v588, 0.0
    %591 = vadd.xlane.f32.xlu0 %v590
    %v592 = vpop.xlane.xlu0 %591
    %v593 = vsel %vm191, %v589, 0.0
    %594 = vadd.xlane.f32.xlu0 %v593
    %v595 = vpop.xlane.xlu0 %594
    %v596 = vrsqrt.pop %v584
    %v597 = vmul.f32 %v584, %v596
    %vm598 = vcmp.eq.f32.partialorder %v584, inf
    %v599 = vsel %vm598, %v584, %v597
    %vm600 = vcmp.eq.f32.partialorder %v584, 0.0
    %v601 = vand.u32 %v584, 2147483648
    %v602 = vsel %vm600, %v601, %v599
    %v603 = vrsqrt.pop %v587
    %v604 = vmul.f32 %v587, %v603
    %vm605 = vcmp.eq.f32.partialorder %v587, inf
    %v606 = vsel %vm605, %v587, %v604
    %vm607 = vcmp.eq.f32.partialorder %v587, 0.0
    %v608 = vand.u32 %v587, 2147483648
    %v609 = vsel %vm607, %v608, %v606
    %v610 = vadd.f32 %v602, 1e-06
    %v611 = vadd.f32 %v609, 1e-06
    %v612 = vrcp.pop %v610
    %v613 = vmul.f32 1.0, %v612
    %v614 = vrcp.pop %v611
    %v615 = vmul.f32 1.0, %v614
    %v616 = vrsqrt.pop %v592
    %v617 = vmul.f32 %v592, %v616
    %vm618 = vcmp.eq.f32.partialorder %v592, inf
    %v619 = vsel %vm618, %v592, %v617
    %vm620 = vcmp.eq.f32.partialorder %v592, 0.0
    %v621 = vand.u32 %v592, 2147483648
    %v622 = vsel %vm620, %v621, %v619
    %v623 = vrsqrt.pop %v595
    %v624 = vmul.f32 %v595, %v623
    %vm625 = vcmp.eq.f32.partialorder %v595, inf
    %v626 = vsel %vm625, %v595, %v624
    %vm627 = vcmp.eq.f32.partialorder %v595, 0.0
    %v628 = vand.u32 %v595, 2147483648
    %v629 = vsel %vm627, %v628, %v626
    %v630 = vadd.f32 %v622, 1e-06
    %v631 = vadd.f32 %v629, 1e-06
    %v632 = vrcp.pop %v630
    %v633 = vmul.f32 1.0, %v632
    %v634 = vrcp.pop %v631
    %v635 = vmul.f32 1.0, %v634
    %v636 = vmul.f32 %v312, %v613
    %v637 = vmul.f32 %v313, %v615
    %v638 = vmul.f32 %v445, %v633
    %v639 = vmul.f32 %v446, %v635
    %v640 = vmul.f32 %v584, %v613
    %v641 = vmul.f32 %v587, %v615
    %v642 = vmul.f32 %v640, %v613
    %v643 = vmul.f32 %v641, %v615
    %v644 = vmul.f32 %v592, %v633
    %v645 = vmul.f32 %v595, %v635
    %v646 = vmul.f32 %v644, %v633
    %v647 = vmul.f32 %v645, %v635
    %v648 = vmul.f32 %v636, %v638
    %v649 = vmul.f32 %v637, %v639
    %v650 = vsel %vm191, %v648, 0.0
    %651 = vadd.xlane.f32.xlu0 %v650
    %v652 = vpop.xlane.xlu0 %651
    %v653 = vsel %vm191, %v649, 0.0
    %654 = vadd.xlane.f32.xlu0 %v653
    %v655 = vpop.xlane.xlu0 %654
    %v656 = vmax.f32 %v652, 0.0
    %v657 = vmax.f32 %v655, 0.0
    %v658 = vadd.f32 %v642, %v656
    %v659 = vadd.f32 %v643, %v657
    %v660 = vadd.f32 %v646, %v656
    %v661 = vadd.f32 %v647, %v657
    %v662 = vld [vmem:[%s8] sm:$0x1]
    %v664 = vlaneseq
    %v665 = vshrl.u32 %v664, 7
    %v666 = vsub.s32 0, %v665
    %v667 = vrot.slane %v662, %v666
    %v669 = vmul.f32 %v578, %v667
    %v670 = vmul.f32 %v579, %v667
    %s671 = sld [smem:[#allocation2]]
    %v672 = vmul.f32 %v312, %v669
    %v673 = vmul.f32 %v313, %v670
    %v674 = vsel %vm191, %v672, 0.0
    %675 = vadd.xlane.f32.xlu0 %v674
    %v676 = vpop.xlane.xlu0 %675
    %v677 = vsel %vm191, %v673, 0.0
    %678 = vadd.xlane.f32.xlu0 %v677
    %v679 = vpop.xlane.xlu0 %678
    %v680 = vstv %s671
    %v681 = vadd.f32 %v676, %v680
    %v682 = vadd.f32 %v679, %v680
    %v683 = vmax.f32 %v681, 0.0
    %v684 = vmax.f32 %v682, 0.0
    %v685 = vadd.f32 %v658, 1e-06
    %v686 = vadd.f32 %v659, 1e-06
    %v687 = vrcp.pop %v685
    %v688 = vmul.f32 1.0, %v687
    %v689 = vrcp.pop %v686
    %v690 = vmul.f32 1.0, %v689
    %v691 = vmul.f32 %v683, %v688
    %v692 = vmul.f32 %v684, %v690
    %v693 = vmul.f32 %v445, %v669
    %v694 = vmul.f32 %v446, %v670
    %v695 = vsel %vm191, %v693, 0.0
    %696 = vadd.xlane.f32.xlu0 %v695
    %v697 = vpop.xlane.xlu0 %696
    %v698 = vsel %vm191, %v694, 0.0
    %699 = vadd.xlane.f32.xlu0 %v698
    %v700 = vpop.xlane.xlu0 %699
    %v701 = vadd.f32 %v697, %v680
    %v702 = vadd.f32 %v700, %v680
    %v703 = vmax.f32 %v701, 0.0
    %v704 = vmax.f32 %v702, 0.0
    %v705 = vadd.f32 %v660, 1e-06
    %v706 = vadd.f32 %v661, 1e-06
    %v707 = vrcp.pop %v705
    %v708 = vmul.f32 1.0, %v707
    %v709 = vrcp.pop %v706
    %v710 = vmul.f32 1.0, %v709
    %v711 = vmul.f32 %v703, %v708
    %v712 = vmul.f32 %v704, %v710
    %v713 = vadd.f32 %v691, %v711
    %v714 = vadd.f32 %v692, %v712
    %v715 = vadd.f32 %v713, 1e-06
    %v716 = vadd.f32 %v714, 1e-06
    %v717 = vrcp.pop %v715
    %v718 = vmul.f32 1.0, %v717
    %v719 = vrcp.pop %v716
    %v720 = vmul.f32 1.0, %v719
    %v721 = vmul.f32 %v691, %v718
    %v722 = vmul.f32 %v692, %v720
    %v723 = vmul.f32 %v721, %v312
    %v724 = vmul.f32 %v722, %v313
    %v725 = vmul.f32 %v711, %v718
    %v726 = vmul.f32 %v712, %v720
    %v727 = vmul.f32 %v725, %v445
    %v728 = vmul.f32 %v726, %v446
    %v729 = vadd.f32 %v723, %v727
    %v730 = vadd.f32 %v724, %v728
    %v731 = vld [vmem:[#allocation13] sm:$0xff]
    %v732 = vld [vmem:[#allocation13 + $0x8] sm:$0xff]
    %v733 = vld [vmem:[#allocation13 + $0x10] sm:$0xff]
    %v734 = vld [vmem:[#allocation13 + $0x18] sm:$0xff]
    %v735 = vld [vmem:[%s10] sm:$0x1]
    %v737 = vlaneseq
    %v738 = vshrl.u32 %v737, 7
    %v739 = vsub.s32 0, %v738
    %v740 = vrot.slane %v735, %v739
    %v743 = vsel %vm191, %v729, 0
    %v746 = vsel %vm191, %v730, 0
    %748 = vmatprep.subr.mxu0 0.0
    %749 = vmatpush1.msra.mxu0 0.0
    %750 = vmatprep.subr.mxu0 0.0
    %751 = vmatpush1.msra.mxu0 0.0
    %752 = vmatprep.subr.mxu0 0.0
    %753 = vmatpush1.msra.mxu0 0.0
    %754 = vmatprep.subr.mxu0 0.0
    %755 = vmatpush1.msra.mxu0 0.0
    %756 = vmatprep.subr.mxu0 0.0
    %757 = vmatpush1.msra.mxu0 0.0
    %758 = vmatprep.subr.mxu0 0.0
    %759 = vmatpush1.msra.mxu0 0.0
    %760 = vmatprep.subr.mxu0 0.0
    %761 = vmatpush1.msra.mxu0 0.0
    %762 = vmatprep.subr.mxu0 0.0
    %763 = vmatpush1.msra.mxu0 0.0
    %764 = vmatprep.subr.mxu0 0.0
    %765 = vmatpush1.msra.mxu0 0.0
    %766 = vmatprep.subr.mxu0 0.0
    %767 = vmatpush1.msra.mxu0 0.0
    %768 = vmatprep.subr.mxu0 0.0
    %769 = vmatpush1.msra.mxu0 0.0
    %770 = vmatprep.subr.mxu0 0.0
    %771 = vmatpush1.msra.mxu0 0.0
    %772 = vmatprep.subr.mxu0 0.0
    %773 = vmatpush1.msra.mxu0 %v734
    %774 = vmatprep.subr.mxu0 0.0
    %775 = vmatpush1.msra.mxu0 %v733
    %776 = vmatprep.subr.mxu0 0.0
    %777 = vmatpush1.msra.mxu0 %v732
    %778 = vmatprep.subr.mxu0 0.0
    %779 = vmatpush1.msra.mxu0 %v731
    %780 = vmatprep.subr.mxu0 0.0
    %781 = vmatpush2.msra.mxu0 0.0
    %782 = vmatprep.subr.mxu0 0.0
    %783 = vmatpush2.msra.mxu0 0.0
    %784 = vmatprep.subr.mxu0 0.0
    %785 = vmatpush2.msra.mxu0 0.0
    %786 = vmatprep.subr.mxu0 0.0
    %787 = vmatpush2.msra.mxu0 0.0
    %788 = vmatprep.subr.mxu0 0.0
    %789 = vmatpush2.msra.mxu0 0.0
    %790 = vmatprep.subr.mxu0 0.0
    %791 = vmatpush2.msra.mxu0 0.0
    %792 = vmatprep.subr.mxu0 0.0
    %793 = vmatpush2.msra.mxu0 0.0
    %794 = vmatprep.subr.mxu0 0.0
    %795 = vmatpush2.msra.mxu0 0.0
    %796 = vmatprep.subr.mxu0 0.0
    %797 = vmatpush2.msra.mxu0 0.0
    %798 = vmatprep.subr.mxu0 0.0
    %799 = vmatpush2.msra.mxu0 0.0
    %800 = vmatprep.subr.mxu0 0.0
    %801 = vmatpush2.msra.mxu0 0.0
    %802 = vmatprep.subr.mxu0 0.0
    %803 = vmatpush2.msra.mxu0 0.0
    %804 = vmatprep.subr.mxu0 0.0
    %805 = vmatpush2.msra.mxu0 0.0
    %806 = vmatprep.subr.mxu0 0.0
    %807 = vmatpush2.msra.mxu0 0.0
    %808 = vmatprep.subr.mxu0 0.0
    %809 = vmatpush2.msra.mxu0 0.0
    %810 = vmatprep.subr.mxu0 0.0
    %811 = vmatpush2.msra.mxu0 0.0
    %812 = vmatprep.mubr.f32.mxu0 0.0
    %813 = vmatmul.mubr.f32.gmra.mxu0 %v743
    %v814 = vpop.f32.mrf.mxu0
    %v815 = vadd.f32 %v740, %v814
    %v816 = vpop.f32.mrf.mxu0
    %817 = vmatprep.mubr.f32.mxu0 0.0
    %818 = vmatmul.mubr.f32.gmra.mxu0 %v746
    %v819 = vpop.f32.mrf.mxu0
    %v820 = vadd.f32 %v740, %v819
    %v821 = vpop.f32.mrf.mxu0
    %822 = vdwg.mxu0
    %v823 = vmax.f32 %v815, 0.0
    %v824 = vmax.f32 %v820, 0.0
    %v825 = vld [vmem:[#allocation15] sm:$0xff]
    %v826 = vld [vmem:[#allocation15 + $0x8] sm:$0xff]
    %v827 = vld [vmem:[#allocation15 + $0x10] sm:$0xff]
    %v828 = vld [vmem:[#allocation15 + $0x18] sm:$0xff]
    %v829 = vld [vmem:[%s12] sm:$0x1]
    %v831 = vlaneseq
    %v832 = vshrl.u32 %v831, 7
    %v833 = vsub.s32 0, %v832
    %v834 = vrot.slane %v829, %v833
    %v837 = vsel %vm191, %v823, 0
    %v840 = vsel %vm191, %v824, 0
    %842 = vmatprep.subr.mxu0 0.0
    %843 = vmatpush1.msra.mxu0 0.0
    %844 = vmatprep.subr.mxu0 0.0
    %845 = vmatpush1.msra.mxu0 0.0
    %846 = vmatprep.subr.mxu0 0.0
    %847 = vmatpush1.msra.mxu0 0.0
    %848 = vmatprep.subr.mxu0 0.0
    %849 = vmatpush1.msra.mxu0 0.0
    %850 = vmatprep.subr.mxu0 0.0
    %851 = vmatpush1.msra.mxu0 0.0
    %852 = vmatprep.subr.mxu0 0.0
    %853 = vmatpush1.msra.mxu0 0.0
    %854 = vmatprep.subr.mxu0 0.0
    %855 = vmatpush1.msra.mxu0 0.0
    %856 = vmatprep.subr.mxu0 0.0
    %857 = vmatpush1.msra.mxu0 0.0
    %858 = vmatprep.subr.mxu0 0.0
    %859 = vmatpush1.msra.mxu0 0.0
    %860 = vmatprep.subr.mxu0 0.0
    %861 = vmatpush1.msra.mxu0 0.0
    %862 = vmatprep.subr.mxu0 0.0
    %863 = vmatpush1.msra.mxu0 0.0
    %864 = vmatprep.subr.mxu0 0.0
    %865 = vmatpush1.msra.mxu0 0.0
    %866 = vmatprep.subr.mxu0 0.0
    %867 = vmatpush1.msra.mxu0 %v828
    %868 = vmatprep.subr.mxu0 0.0
    %869 = vmatpush1.msra.mxu0 %v827
    %870 = vmatprep.subr.mxu0 0.0
    %871 = vmatpush1.msra.mxu0 %v826
    %872 = vmatprep.subr.mxu0 0.0
    %873 = vmatpush1.msra.mxu0 %v825
    %874 = vmatprep.subr.mxu0 0.0
    %875 = vmatpush2.msra.mxu0 0.0
    %876 = vmatprep.subr.mxu0 0.0
    %877 = vmatpush2.msra.mxu0 0.0
    %878 = vmatprep.subr.mxu0 0.0
    %879 = vmatpush2.msra.mxu0 0.0
    %880 = vmatprep.subr.mxu0 0.0
    %881 = vmatpush2.msra.mxu0 0.0
    %882 = vmatprep.subr.mxu0 0.0
    %883 = vmatpush2.msra.mxu0 0.0
    %884 = vmatprep.subr.mxu0 0.0
    %885 = vmatpush2.msra.mxu0 0.0
    %886 = vmatprep.subr.mxu0 0.0
    %887 = vmatpush2.msra.mxu0 0.0
    %888 = vmatprep.subr.mxu0 0.0
    %889 = vmatpush2.msra.mxu0 0.0
    %890 = vmatprep.subr.mxu0 0.0
    %891 = vmatpush2.msra.mxu0 0.0
    %892 = vmatprep.subr.mxu0 0.0
    %893 = vmatpush2.msra.mxu0 0.0
    %894 = vmatprep.subr.mxu0 0.0
    %895 = vmatpush2.msra.mxu0 0.0
    %896 = vmatprep.subr.mxu0 0.0
    %897 = vmatpush2.msra.mxu0 0.0
    %898 = vmatprep.subr.mxu0 0.0
    %899 = vmatpush2.msra.mxu0 0.0
    %900 = vmatprep.subr.mxu0 0.0
    %901 = vmatpush2.msra.mxu0 0.0
    %902 = vmatprep.subr.mxu0 0.0
    %903 = vmatpush2.msra.mxu0 0.0
    %904 = vmatprep.subr.mxu0 0.0
    %905 = vmatpush2.msra.mxu0 0.0
    %906 = vmatprep.mubr.f32.mxu0 0.0
    %907 = vmatmul.mubr.f32.gmra.mxu0 %v837
    %v908 = vpop.f32.mrf.mxu0
    %v909 = vadd.f32 %v834, %v908
    %v910 = vpop.f32.mrf.mxu0
    %911 = vmatprep.mubr.f32.mxu0 0.0
    %912 = vmatmul.mubr.f32.gmra.mxu0 %v840
    %v913 = vpop.f32.mrf.mxu0
    %v914 = vadd.f32 %v834, %v913
    %v915 = vpop.f32.mrf.mxu0
    %916 = vdwg.mxu0
    %v917 = vld [vmem:[%s13] sm:$0x1]
    %v918 = vld [vmem:[%s14] sm:$0x1]
    %v919 = vsel %vm191, %v909, 0.0
    %920 = vadd.xlane.f32.xlu0 %v919
    %v921 = vpop.xlane.xlu0 %920
    %v922 = vsel %vm191, %v914, 0.0
    %923 = vadd.xlane.f32.xlu0 %v922
    %v924 = vpop.xlane.xlu0 %923
    %v925 = vmul.f32 %v921, %v281
    %v926 = vmul.f32 %v924, %v281
    %v927 = vsub.f32 %v909, %v925
    %v928 = vsub.f32 %v914, %v926
    %v929 = vmul.f32 %v927, %v927
    %v930 = vmul.f32 %v928, %v928
    %v931 = vsel %vm191, %v929, 0.0
    %932 = vadd.xlane.f32.xlu0 %v931
    %v933 = vpop.xlane.xlu0 %932
    %v934 = vsel %vm191, %v930, 0.0
    %935 = vadd.xlane.f32.xlu0 %v934
    %v936 = vpop.xlane.xlu0 %935
    %v937 = vmul.f32 %v933, %v281
    %v938 = vmul.f32 %v936, %v281
    %v939 = vadd.f32 %v937, 1e-05
    %v940 = vadd.f32 %v938, 1e-05
    %v941 = vrsqrt.pop %v939
    %v942 = vrsqrt.pop %v940
    %v943 = vmul.f32 %v927, %v941
    %v944 = vmul.f32 %v928, %v942
    %v946 = vlaneseq
    %v947 = vshrl.u32 %v946, 7
    %v948 = vsub.s32 0, %v947
    %v949 = vrot.slane %v917, %v948
    %v951 = vmul.f32 %v943, %v949
    %v952 = vmul.f32 %v944, %v949
    %v954 = vlaneseq
    %v955 = vshrl.u32 %v954, 7
    %v956 = vsub.s32 0, %v955
    %v957 = vrot.slane %v918, %v956
    %v959 = vadd.f32 %v951, %v957
    %v960 = vadd.f32 %v952, %v957
    %v961 = vadd.f32 %v959, %v578
    %v962 = vadd.f32 %v960, %v579
    %v963 = vmax.f32 %v961, 0.0
    %v964 = vmax.f32 %v962, 0.0
    %v965 = vld [vmem:[#allocation16] sm:$0xff]
    %v966 = vld [vmem:[#allocation16 + $0x8] sm:$0xff]
    %v967 = vld [vmem:[#allocation16 + $0x10] sm:$0xff]
    %v968 = vld [vmem:[#allocation16 + $0x18] sm:$0xff]
    %v969 = vld [vmem:[%s16] sm:$0x1]
    %v971 = vlaneseq
    %v972 = vshrl.u32 %v971, 7
    %v973 = vsub.s32 0, %v972
    %v974 = vrot.slane %v969, %v973
    %v977 = vsel %vm191, %v963, 0
    %v980 = vsel %vm191, %v964, 0
    %982 = vmatprep.subr.mxu0 0.0
    %983 = vmatpush1.msra.mxu0 0.0
    %984 = vmatprep.subr.mxu0 0.0
    %985 = vmatpush1.msra.mxu0 0.0
    %986 = vmatprep.subr.mxu0 0.0
    %987 = vmatpush1.msra.mxu0 0.0
    %988 = vmatprep.subr.mxu0 0.0
    %989 = vmatpush1.msra.mxu0 0.0
    %990 = vmatprep.subr.mxu0 0.0
    %991 = vmatpush1.msra.mxu0 0.0
    %992 = vmatprep.subr.mxu0 0.0
    %993 = vmatpush1.msra.mxu0 0.0
    %994 = vmatprep.subr.mxu0 0.0
    %995 = vmatpush1.msra.mxu0 0.0
    %996 = vmatprep.subr.mxu0 0.0
    %997 = vmatpush1.msra.mxu0 0.0
    %998 = vmatprep.subr.mxu0 0.0
    %999 = vmatpush1.msra.mxu0 0.0
    %1000 = vmatprep.subr.mxu0 0.0
    %1001 = vmatpush1.msra.mxu0 0.0
    %1002 = vmatprep.subr.mxu0 0.0
    %1003 = vmatpush1.msra.mxu0 0.0
    %1004 = vmatprep.subr.mxu0 0.0
    %1005 = vmatpush1.msra.mxu0 0.0
    %1006 = vmatprep.subr.mxu0 0.0
    %1007 = vmatpush1.msra.mxu0 %v968
    %1008 = vmatprep.subr.mxu0 0.0
    %1009 = vmatpush1.msra.mxu0 %v967
    %1010 = vmatprep.subr.mxu0 0.0
    %1011 = vmatpush1.msra.mxu0 %v966
    %1012 = vmatprep.subr.mxu0 0.0
    %1013 = vmatpush1.msra.mxu0 %v965
    %1014 = vmatprep.subr.mxu0 0.0
    %1015 = vmatpush2.msra.mxu0 0.0
    %1016 = vmatprep.subr.mxu0 0.0
    %1017 = vmatpush2.msra.mxu0 0.0
    %1018 = vmatprep.subr.mxu0 0.0
    %1019 = vmatpush2.msra.mxu0 0.0
    %1020 = vmatprep.subr.mxu0 0.0
    %1021 = vmatpush2.msra.mxu0 0.0
    %1022 = vmatprep.subr.mxu0 0.0
    %1023 = vmatpush2.msra.mxu0 0.0
    %1024 = vmatprep.subr.mxu0 0.0
    %1025 = vmatpush2.msra.mxu0 0.0
    %1026 = vmatprep.subr.mxu0 0.0
    %1027 = vmatpush2.msra.mxu0 0.0
    %1028 = vmatprep.subr.mxu0 0.0
    %1029 = vmatpush2.msra.mxu0 0.0
    %1030 = vmatprep.subr.mxu0 0.0
    %1031 = vmatpush2.msra.mxu0 0.0
    %1032 = vmatprep.subr.mxu0 0.0
    %1033 = vmatpush2.msra.mxu0 0.0
    %1034 = vmatprep.subr.mxu0 0.0
    %1035 = vmatpush2.msra.mxu0 0.0
    %1036 = vmatprep.subr.mxu0 0.0
    %1037 = vmatpush2.msra.mxu0 0.0
    %1038 = vmatprep.subr.mxu0 0.0
    %1039 = vmatpush2.msra.mxu0 0.0
    %1040 = vmatprep.subr.mxu0 0.0
    %1041 = vmatpush2.msra.mxu0 0.0
    %1042 = vmatprep.subr.mxu0 0.0
    %1043 = vmatpush2.msra.mxu0 0.0
    %1044 = vmatprep.subr.mxu0 0.0
    %1045 = vmatpush2.msra.mxu0 0.0
    %1046 = vmatprep.mubr.f32.mxu0 0.0
    %1047 = vmatmul.mubr.f32.gmra.mxu0 %v977
    %v1048 = vpop.f32.mrf.mxu0
    %v1049 = vadd.f32 %v974, %v1048
    %v1050 = vpop.f32.mrf.mxu0
    %1051 = vmatprep.mubr.f32.mxu0 0.0
    %1052 = vmatmul.mubr.f32.gmra.mxu0 %v980
    %v1053 = vpop.f32.mrf.mxu0
    %v1054 = vadd.f32 %v974, %v1053
    %v1055 = vpop.f32.mrf.mxu0
    %1056 = vdwg.mxu0
    %v1057 = vld [vmem:[%s17] sm:$0x1]
    %v1058 = vld [vmem:[%s18] sm:$0x1]
    %v1059 = vsel %vm191, %v1049, 0.0
    %1060 = vadd.xlane.f32.xlu0 %v1059
    %v1061 = vpop.xlane.xlu0 %1060
    %v1062 = vsel %vm191, %v1054, 0.0
    %1063 = vadd.xlane.f32.xlu0 %v1062
    %v1064 = vpop.xlane.xlu0 %1063
    %v1065 = vmul.f32 %v1061, %v281
    %v1066 = vmul.f32 %v1064, %v281
    %v1067 = vsub.f32 %v1049, %v1065
    %v1068 = vsub.f32 %v1054, %v1066
    %v1069 = vmul.f32 %v1067, %v1067
    %v1070 = vmul.f32 %v1068, %v1068
    %v1071 = vsel %vm191, %v1069, 0.0
    %1072 = vadd.xlane.f32.xlu0 %v1071
    %v1073 = vpop.xlane.xlu0 %1072
    %v1074 = vsel %vm191, %v1070, 0.0
    %1075 = vadd.xlane.f32.xlu0 %v1074
    %v1076 = vpop.xlane.xlu0 %1075
    %v1077 = vmul.f32 %v1073, %v281
    %v1078 = vmul.f32 %v1076, %v281
    %v1079 = vadd.f32 %v1077, 1e-05
    %v1080 = vadd.f32 %v1078, 1e-05
    %v1081 = vrsqrt.pop %v1079
    %v1082 = vrsqrt.pop %v1080
    %v1083 = vmul.f32 %v1067, %v1081
    %v1084 = vmul.f32 %v1068, %v1082
    %v1086 = vlaneseq
    %v1087 = vshrl.u32 %v1086, 7
    %v1088 = vsub.s32 0, %v1087
    %v1089 = vrot.slane %v1057, %v1088
    %v1091 = vmul.f32 %v1083, %v1089
    %v1092 = vmul.f32 %v1084, %v1089
    %v1094 = vlaneseq
    %v1095 = vshrl.u32 %v1094, 7
    %v1096 = vsub.s32 0, %v1095
    %v1097 = vrot.slane %v1058, %v1096
    %v1099 = vadd.f32 %v1091, %v1097
    %v1100 = vadd.f32 %v1092, %v1097
    %s1101 = sld [smem:[#allocation3]]
    %v1102 = vstv %s1101
    %v1103 = vrcp.pop 0.1
    %v1104 = vmul.f32 %v1102, %v1103
    %v1105 = vtanh.pop %v1104
    %v1106 = vld [vmem:[#allocation10] sm:$0xff]
    %v1107 = vld [vmem:[#allocation10 + $0x8] sm:$0xff]
    %v1108 = vmul.f32 %v1105, %v1106
    %v1109 = vmul.f32 %v1105, %v1107
    %v1110 = vadd.f32 %v1099, %v1108
    %v1111 = vadd.f32 %v1100, %v1109
    %1112 = vst.msk [vmem:[#allocation18] sm:$0xff] %vm191, %v1110
    %1113 = vst.msk [vmem:[#allocation18 + $0x8] sm:$0xff] %vm191, %v1111
    // Predicated region
    $region118: #{tpu_custom_call.1} parent=1 // pred_check
      _
    $region119: #{tpu_custom_call.1} parent=1 // pred_check_branch
      %1115 = sbr.rel (0) target = $region121
    $region120: #{tpu_custom_call.1} parent=1 // pred_region
      %s1117 = ssub.s32 256, 256
      %1118 = vsyncadd [#allocation6], %s1117
      %s1119 = sshll.u32 [#allocation18], 4
      %s1120 = int_to_ptr.vmem [resolvable:$true] %s1119
      %1125 = dma.vmem_to_hbm [thread:$0]  %s1120, 256, %s21, [#allocation6], 128, 128, 8
    $region121: #{tpu_custom_call.1} parent=1 // pred_fallthru
      _
    // Predicated region
    $region122: #{tpu_custom_call.1} parent=1 // pred_check
      _
    $region123: #{tpu_custom_call.1} parent=1 // pred_check_branch
      %1127 = sbr.rel (0) target = $region125
    $region124: #{tpu_custom_call.1} parent=1 // pred_region
      %1128 = dma.done [#allocation6], 256
    $region125: #{tpu_custom_call.1} parent=1 // pred_fallthru
      _
    %1129 = vsyncpa [#allocation5], 1
    %1130 = vsyncpa [#allocation8], 1
    %1131 = vsyncpa [#allocation11], 1
    %1132 = vsyncpa [#allocation14], 1
    %1133 = vsyncpa [#allocation17], 1
    %1134 = vsyncpa [#allocation6], 1

</llo_original>
